<compile_context>
chip_gen: v6e
topology: v6e:2x2x1
jax: 0.10.0
libtpu: 0.0.40
codegen_flags: <defaults>
</compile_context>

<pallas_src>
import functools

import jax
import jax.numpy as jnp
import numpy as np
from jax.experimental import pallas as pl
from jax.experimental.pallas import tpu as pltpu

EPS = 1e-5


def _conv3x3_same(v, w_ref, H, W, C_in, C_out, fuse_ky):
    """3x3 stride-1 SAME conv.

    v:     (H, W, C_in) value (already in the MXU operand dtype).
    w_ref: Ref of shape (3, 3*C_in, C_out); slab [kx, ky*C_in + ci, co]
           holds w_hwio[ky, kx, ci, co].  Sliced per matmul, never loaded
           whole.

    Zero padding is done in the value domain (no padded scratch buffers):
      * rows: one leading-dim concat -> (H+2, W, C_in)
      * cols: three W-shift variants (dx=-1,0,+1); only the two shifted
        variants need a relayout copy.
    fuse_ky=True: per kx, the 3 row-shifted taps are lane-concatenated into a
    (H*W, 3*C_in) patch feeding a single K=3*C_in MXU matmul.
    """
    zrow = jnp.zeros((1, W, C_in), v.dtype)
    vp = jnp.concatenate([zrow, v, zrow], axis=0)              # (H+2, W, C_in)
    zcol = jnp.zeros((H + 2, 1, C_in), v.dtype)
    cols = (
        jnp.concatenate([zcol, vp[:, :W - 1, :]], axis=1),     # dx = -1 (kx=0)
        vp,                                                    # dx =  0 (kx=1)
        jnp.concatenate([vp[:, 1:, :], zcol], axis=1),         # dx = +1 (kx=2)
    )
    acc = jnp.zeros((H * W, C_out), jnp.float32)
    for kx in range(3):
        sx = cols[kx]
        if fuse_ky:
            patch = jnp.concatenate(
                [sx[ky:ky + H] for ky in range(3)], axis=-1    # (H, W, 3*C_in)
            ).reshape(H * W, 3 * C_in)
            acc = acc + jnp.dot(patch, w_ref[kx],
                                preferred_element_type=jnp.float32)
        else:
            for ky in range(3):
                patch = sx[ky:ky + H].reshape(H * W, C_in)
                wk = w_ref[kx, ky * C_in:(ky + 1) * C_in, :]   # per-tap slice
                acc = acc + jnp.dot(patch, wk,
                                    preferred_element_type=jnp.float32)
    return acc                                                 # (H*W, C_out) f32


def _instance_norm(h, gamma, beta, inv_n):
    """Affine InstanceNorm over flattened spatial axis 0 (single read of h).

    h: (H*W, C) f32; gamma/beta: (1, C); inv_n = 1/(H*W) (static).
    Accumulates sum and sum-of-squares in one pass, then applies
    h*scale + (beta - mean*scale) - no centered temporary is materialized.
    """
    s = jnp.sum(h, axis=0, keepdims=True)
    sq = jnp.sum(h * h, axis=0, keepdims=True)
    mean = s * inv_n
    var = sq * inv_n - mean * mean                             # biased var
    scale = gamma * jax.lax.rsqrt(var + EPS)                   # (1, C)
    shift = beta - mean * scale                                # (1, C)
    return h * scale + shift


def _residual_block_kernel(x_ref, w1_ref, g1_ref, b1_ref,
                           w2_ref, g2_ref, b2_ref, o_ref, *,
                           conv_dtype, fuse_ky):
    H, W, C = x_ref.shape[1], x_ref.shape[2], x_ref.shape[3]
    inv_n = 1.0 / float(H * W)

    # conv1 -> IN1 -> ReLU   (only MXU operands are in conv_dtype; norm/ReLU f32)
    h = _conv3x3_same(x_ref[0].astype(conv_dtype), w1_ref, H, W, C, C, fuse_ky)
    h = jnp.maximum(_instance_norm(h, g1_ref[...], b1_ref[...], inv_n), 0.0)

    # conv2 -> IN2
    h2 = _conv3x3_same(h.reshape(H, W, C).astype(conv_dtype), w2_ref,
                       H, W, C, C, fuse_ky)
    h2 = _instance_norm(h2, g2_ref[...], b2_ref[...], inv_n)

    # residual add: re-read x (block is still resident in its pipeline buffer)
    # so no long-lived f32 copy of x spans both convs.
    o_ref[0] = (x_ref[0].astype(jnp.float32)
                + h2.reshape(H, W, C)).astype(o_ref.dtype)


def residual_block_nhwc(x, w1, g1, b1, w2, g2, b2, *,
                        conv_dtype=jnp.bfloat16, vmem_limit_bytes=None):
    """x: (N, H, W, C) f32; w*: (3, 3, C, C) HWIO; g*/b*: (C,)."""
    N, H, W, C = x.shape
    # dim_in == dim_out is required by the residual add (StarGAN always does this).
    assert w1.shape == (3, 3, C, C) and w2.shape == (3, 3, C, C), \
        "ResidualBlock requires dim_in == dim_out and 3x3 kernels"
    # Per-tap reshape (H, W, C) -> (H*W, C) is layout-preserving only when the
    # sublane axis stays aligned; guard instead of hitting a hidden perf cliff.
    assert W % 8 == 0, "width must be a multiple of 8 (sublane alignment)"

    # Fuse the 3 ky taps into one K=3C matmul per kx only while C under-fills
    # the 256-wide MXU contraction (v6e/v7x); at C>=256 K already fills it.
    fuse_ky = C <= 128

    # Re-pack HWIO weights into per-kx slabs (kx, ky*C + ci, co) and pre-cast
    # to the MXU operand dtype so the kernel never materializes / casts the
    # full weight tensor per grid step (also halves weight DMA bytes for bf16).
    def pack(w):
        return jnp.transpose(w, (1, 0, 2, 3)).reshape(3, 3 * C, C).astype(conv_dtype)

    w1p, w2p = pack(w1), pack(w2)

    kernel = functools.partial(_residual_block_kernel,
                               conv_dtype=conv_dtype, fuse_ky=fuse_ky)
    w_spec = pl.BlockSpec((3, 3 * C, C), lambda n: (0, 0, 0))
    v_spec = pl.BlockSpec((1, C), lambda n: (0, 0))

    cp_kwargs = dict(dimension_semantics=("parallel",))        # v7x: 2 TCs
    if vmem_limit_bytes is not None:
        cp_kwargs["vmem_limit_bytes"] = vmem_limit_bytes

    return pl.pallas_call(
        kernel,
        out_shape=jax.ShapeDtypeStruct((N, H, W, C), x.dtype),
        grid=(N,),
        in_specs=[
            pl.BlockSpec((1, H, W, C), lambda n: (n, 0, 0, 0)),   # x
            w_spec, v_spec, v_spec,                               # conv1 / IN1
            w_spec, v_spec, v_spec,                               # conv2 / IN2
        ],
        out_specs=pl.BlockSpec((1, H, W, C), lambda n: (n, 0, 0, 0)),
        compiler_params=pltpu.CompilerParams(**cp_kwargs),
    )(x, w1p, g1.reshape(1, C), b1.reshape(1, C),
      w2p, g2.reshape(1, C), b2.reshape(1, C))


def residual_block_nchw(x, w1, g1, b1, w2, g2, b2, *,
                        conv_dtype=jnp.bfloat16, vmem_limit_bytes=None):
    """PyTorch-layout entry point: x (N,C,H,W), w (C_out,C_in,3,3) OIHW."""
    xt = jnp.transpose(x, (0, 2, 3, 1))            # NCHW -> NHWC
    w1t = jnp.transpose(w1, (2, 3, 1, 0))          # OIHW -> HWIO
    w2t = jnp.transpose(w2, (2, 3, 1, 0))
    y = residual_block_nhwc(xt, w1t, g1, b1, w2t, g2, b2,
                            conv_dtype=conv_dtype,
                            vmem_limit_bytes=vmem_limit_bytes)
    return jnp.transpose(y, (0, 3, 1, 2))          # NHWC -> NCHW


# ---------------- pure-JAX reference (PyTorch NCHW / OIHW layout) ----------------
def _ref_forward_nchw(x, w1, g1, b1, w2, g2, b2):
    def conv(v, w):
        return jax.lax.conv_general_dilated(
            v, w, window_strides=(1, 1), padding="SAME",
            dimension_numbers=("NCHW", "OIHW", "NCHW"),
            precision=jax.lax.Precision.HIGHEST)

    def inorm(v, g, b):
        m = v.mean(axis=(2, 3), keepdims=True)
        var = ((v - m) ** 2).mean(axis=(2, 3), keepdims=True)
        return ((v - m) * jax.lax.rsqrt(var + EPS)
                * g.reshape(1, -1, 1, 1) + b.reshape(1, -1, 1, 1))

    h = jax.nn.relu(inorm(conv(x, w1), g1, b1))
    return x + inorm(conv(h, w2), g2, b2)


if __name__ == "__main__":
    # Small but lane-dense shapes: C=128 fills the 128-wide lane axis; with
    # ky-fusion the MXU contraction is K=384.  dim_in == dim_out as required.
    N, C, H, W = 2, 128, 16, 16

    key = jax.random.PRNGKey(0)
    kx, kw1, kw2, kg1, kb1, kg2, kb2 = jax.random.split(key, 7)

    x = jax.random.normal(kx, (N, C, H, W), jnp.float32)
    # Conv weights in PyTorch OIHW layout (bias=False in the module).
    w1 = 0.1 * jax.random.normal(kw1, (C, C, 3, 3), jnp.float32)
    w2 = 0.1 * jax.random.normal(kw2, (C, C, 3, 3), jnp.float32)
    # InstanceNorm affine params (perturbed so the affine path is exercised).
    g1 = 1.0 + 0.1 * jax.random.normal(kg1, (C,), jnp.float32)
    b1 = 0.1 * jax.random.normal(kb1, (C,), jnp.float32)
    g2 = 1.0 + 0.1 * jax.random.normal(kg2, (C,), jnp.float32)
    b2 = 0.1 * jax.random.normal(kb2, (C,), jnp.float32)

    ref = _ref_forward_nchw(x, w1, g1, b1, w2, g2, b2)

    # Exact-semantics path (f32 MXU operands): tight check against reference.
    out_f32 = residual_block_nchw(x, w1, g1, b1, w2, g2, b2,
                                  conv_dtype=jnp.float32)
    out_f32 = jax.block_until_ready(out_f32)
    np.testing.assert_allclose(np.asarray(out_f32), np.asarray(ref),
                               rtol=1e-3, atol=1e-3)

    # Production default (bf16 MXU operands, f32 accumulate): looser tolerance.
    out_bf16 = residual_block_nchw(x, w1, g1, b1, w2, g2, b2)
    out_bf16 = jax.block_until_ready(out_bf16)
    np.testing.assert_allclose(np.asarray(out_bf16), np.asarray(ref),
                               rtol=0.1, atol=0.15)

    print("KERNEL_OK")
</pallas_src>

<mosaic_0001>
module attributes {stable_mosaic.version = 11 : i64} {
  func.func @_residual_block_kernel(%arg0: i32, %arg1: memref<1x16x16x128xf32, #tpu.memory_space<vmem>>, %arg2: memref<3x384x128xf32, #tpu.memory_space<vmem>>, %arg3: memref<1x128xf32, #tpu.memory_space<vmem>>, %arg4: memref<1x128xf32, #tpu.memory_space<vmem>>, %arg5: memref<3x384x128xf32, #tpu.memory_space<vmem>>, %arg6: memref<1x128xf32, #tpu.memory_space<vmem>>, %arg7: memref<1x128xf32, #tpu.memory_space<vmem>>, %arg8: memref<1x16x16x128xf32, #tpu.memory_space<vmem>>) attributes {dimension_semantics = [#tpu.dimension_semantics<parallel>], iteration_bounds = array<i64: 2>, scalar_prefetch = 0 : i64, scratch_operands = 0 : i64, tpu.core_type = #tpu.core_type<tc>, window_params = [{transform_indices = @transform_0, window_bounds = array<i64: 1, 16, 16, 128>}, {pipeline_mode = #tpu.pipeline_mode<synchronous>, transform_indices = @transform_1, window_bounds = array<i64: 3, 384, 128>}, {pipeline_mode = #tpu.pipeline_mode<synchronous>, transform_indices = @transform_2, window_bounds = array<i64: 1, 128>}, {pipeline_mode = #tpu.pipeline_mode<synchronous>, transform_indices = @transform_3, window_bounds = array<i64: 1, 128>}, {pipeline_mode = #tpu.pipeline_mode<synchronous>, transform_indices = @transform_4, window_bounds = array<i64: 3, 384, 128>}, {pipeline_mode = #tpu.pipeline_mode<synchronous>, transform_indices = @transform_5, window_bounds = array<i64: 1, 128>}, {pipeline_mode = #tpu.pipeline_mode<synchronous>, transform_indices = @transform_6, window_bounds = array<i64: 1, 128>}, {transform_indices = @transform_7, window_bounds = array<i64: 1, 16, 16, 128>}]} {
    %c0 = arith.constant 0 : index
    %c0_0 = arith.constant 0 : index
    %c0_1 = arith.constant 0 : index
    %c0_2 = arith.constant 0 : index
    %0 = vector.load %arg1[%c0, %c0_0, %c0_1, %c0_2] : memref<1x16x16x128xf32, #tpu.memory_space<vmem>>, vector<1x16x16x128xf32>
    %1 = vector.shape_cast %0 : vector<1x16x16x128xf32> to vector<16x16x128xf32>
    %cst = arith.constant 0.000000e+00 : f32
    %2 = vector.broadcast %cst : f32 to vector<1x16x128xf32>
    %3 = tpu.concatenate %2, %1, %2 in 0 : vector<1x16x128xf32>, vector<16x16x128xf32>, vector<1x16x128xf32> -> vector<18x16x128xf32>
    %cst_3 = arith.constant 0.000000e+00 : f32
    %4 = vector.broadcast %cst_3 : f32 to vector<18x1x128xf32>
    %5 = vector.extract_strided_slice %3 {offsets = [0, 0, 0], sizes = [18, 15, 128], strides = [1, 1, 1]} : vector<18x16x128xf32> to vector<18x15x128xf32>
    %6 = tpu.concatenate %4, %5 in 1 : vector<18x1x128xf32>, vector<18x15x128xf32> -> vector<18x16x128xf32>
    %7 = vector.extract_strided_slice %3 {offsets = [0, 1, 0], sizes = [18, 15, 128], strides = [1, 1, 1]} : vector<18x16x128xf32> to vector<18x15x128xf32>
    %8 = tpu.concatenate %7, %4 in 1 : vector<18x15x128xf32>, vector<18x1x128xf32> -> vector<18x16x128xf32>
    %cst_4 = arith.constant 0.000000e+00 : f32
    %9 = vector.broadcast %cst_4 : f32 to vector<256x128xf32>
    %10 = vector.extract_strided_slice %6 {offsets = [0, 0, 0], sizes = [16, 16, 128], strides = [1, 1, 1]} : vector<18x16x128xf32> to vector<16x16x128xf32>
    %11 = vector.extract_strided_slice %6 {offsets = [1, 0, 0], sizes = [16, 16, 128], strides = [1, 1, 1]} : vector<18x16x128xf32> to vector<16x16x128xf32>
    %12 = vector.extract_strided_slice %6 {offsets = [2, 0, 0], sizes = [16, 16, 128], strides = [1, 1, 1]} : vector<18x16x128xf32> to vector<16x16x128xf32>
    %13 = tpu.concatenate %10, %11, %12 in 2 : vector<16x16x128xf32>, vector<16x16x128xf32>, vector<16x16x128xf32> -> vector<16x16x384xf32>
    %14 = vector.shape_cast %13 : vector<16x16x384xf32> to vector<256x384xf32>
    %c0_5 = arith.constant 0 : index
    %c0_6 = arith.constant 0 : index
    %c0_7 = arith.constant 0 : index
    %15 = vector.load %arg2[%c0_5, %c0_6, %c0_7] : memref<3x384x128xf32, #tpu.memory_space<vmem>>, vector<1x384x128xf32>
    %16 = vector.shape_cast %15 : vector<1x384x128xf32> to vector<384x128xf32>
    %cst_8 = arith.constant dense<0.000000e+00> : vector<256x128xf32>
    %17 = tpu.matmul %14, %16, %cst_8 {dimension_numbers = #tpu.dot_dimension_numbers<[1], [0], [0], [1], [0, 0, 1, 1], [], []>} : vector<256x384xf32>, vector<384x128xf32>, vector<256x128xf32> -> vector<256x128xf32>
    %18 = arith.addf %9, %17 : vector<256x128xf32>
    %19 = vector.extract_strided_slice %3 {offsets = [0, 0, 0], sizes = [16, 16, 128], strides = [1, 1, 1]} : vector<18x16x128xf32> to vector<16x16x128xf32>
    %20 = vector.extract_strided_slice %3 {offsets = [1, 0, 0], sizes = [16, 16, 128], strides = [1, 1, 1]} : vector<18x16x128xf32> to vector<16x16x128xf32>
    %21 = vector.extract_strided_slice %3 {offsets = [2, 0, 0], sizes = [16, 16, 128], strides = [1, 1, 1]} : vector<18x16x128xf32> to vector<16x16x128xf32>
    %22 = tpu.concatenate %19, %20, %21 in 2 : vector<16x16x128xf32>, vector<16x16x128xf32>, vector<16x16x128xf32> -> vector<16x16x384xf32>
    %23 = vector.shape_cast %22 : vector<16x16x384xf32> to vector<256x384xf32>
    %c1 = arith.constant 1 : index
    %c0_9 = arith.constant 0 : index
    %c0_10 = arith.constant 0 : index
    %24 = vector.load %arg2[%c1, %c0_9, %c0_10] : memref<3x384x128xf32, #tpu.memory_space<vmem>>, vector<1x384x128xf32>
    %25 = vector.shape_cast %24 : vector<1x384x128xf32> to vector<384x128xf32>
    %cst_11 = arith.constant dense<0.000000e+00> : vector<256x128xf32>
    %26 = tpu.matmul %23, %25, %cst_11 {dimension_numbers = #tpu.dot_dimension_numbers<[1], [0], [0], [1], [0, 0, 1, 1], [], []>} : vector<256x384xf32>, vector<384x128xf32>, vector<256x128xf32> -> vector<256x128xf32>
    %27 = arith.addf %18, %26 : vector<256x128xf32>
    %28 = vector.extract_strided_slice %8 {offsets = [0, 0, 0], sizes = [16, 16, 128], strides = [1, 1, 1]} : vector<18x16x128xf32> to vector<16x16x128xf32>
    %29 = vector.extract_strided_slice %8 {offsets = [1, 0, 0], sizes = [16, 16, 128], strides = [1, 1, 1]} : vector<18x16x128xf32> to vector<16x16x128xf32>
    %30 = vector.extract_strided_slice %8 {offsets = [2, 0, 0], sizes = [16, 16, 128], strides = [1, 1, 1]} : vector<18x16x128xf32> to vector<16x16x128xf32>
    %31 = tpu.concatenate %28, %29, %30 in 2 : vector<16x16x128xf32>, vector<16x16x128xf32>, vector<16x16x128xf32> -> vector<16x16x384xf32>
    %32 = vector.shape_cast %31 : vector<16x16x384xf32> to vector<256x384xf32>
    %c2 = arith.constant 2 : index
    %c0_12 = arith.constant 0 : index
    %c0_13 = arith.constant 0 : index
    %33 = vector.load %arg2[%c2, %c0_12, %c0_13] : memref<3x384x128xf32, #tpu.memory_space<vmem>>, vector<1x384x128xf32>
    %34 = vector.shape_cast %33 : vector<1x384x128xf32> to vector<384x128xf32>
    %cst_14 = arith.constant dense<0.000000e+00> : vector<256x128xf32>
    %35 = tpu.matmul %32, %34, %cst_14 {dimension_numbers = #tpu.dot_dimension_numbers<[1], [0], [0], [1], [0, 0, 1, 1], [], []>} : vector<256x384xf32>, vector<384x128xf32>, vector<256x128xf32> -> vector<256x128xf32>
    %36 = arith.addf %27, %35 : vector<256x128xf32>
    %c0_15 = arith.constant 0 : index
    %c0_16 = arith.constant 0 : index
    %37 = vector.load %arg3[%c0_15, %c0_16] : memref<1x128xf32, #tpu.memory_space<vmem>>, vector<1x128xf32>
    %c0_17 = arith.constant 0 : index
    %c0_18 = arith.constant 0 : index
    %38 = vector.load %arg4[%c0_17, %c0_18] : memref<1x128xf32, #tpu.memory_space<vmem>>, vector<1x128xf32>
    %cst_19 = arith.constant dense<0.000000e+00> : vector<128xf32>
    %39 = vector.multi_reduction <add>, %36, %cst_19 [0] : vector<256x128xf32> to vector<128xf32>
    %40 = vector.shape_cast %39 : vector<128xf32> to vector<1x128xf32>
    %41 = arith.mulf %36, %36 : vector<256x128xf32>
    %cst_20 = arith.constant dense<0.000000e+00> : vector<128xf32>
    %42 = vector.multi_reduction <add>, %41, %cst_20 [0] : vector<256x128xf32> to vector<128xf32>
    %43 = vector.shape_cast %42 : vector<128xf32> to vector<1x128xf32>
    %cst_21 = arith.constant 3.906250e-03 : f32
    %44 = vector.broadcast %cst_21 : f32 to vector<1x128xf32>
    %45 = arith.mulf %40, %44 : vector<1x128xf32>
    %cst_22 = arith.constant 3.906250e-03 : f32
    %46 = vector.broadcast %cst_22 : f32 to vector<1x128xf32>
    %47 = arith.mulf %43, %46 : vector<1x128xf32>
    %48 = arith.mulf %45, %45 : vector<1x128xf32>
    %49 = arith.subf %47, %48 : vector<1x128xf32>
    %cst_23 = arith.constant 9.99999974E-6 : f32
    %50 = vector.broadcast %cst_23 : f32 to vector<1x128xf32>
    %51 = arith.addf %49, %50 : vector<1x128xf32>
    %52 = math.rsqrt %51 : vector<1x128xf32>
    %53 = arith.mulf %37, %52 : vector<1x128xf32>
    %54 = arith.mulf %45, %53 : vector<1x128xf32>
    %55 = arith.subf %38, %54 : vector<1x128xf32>
    %56 = vector.broadcast %53 : vector<1x128xf32> to vector<256x128xf32>
    %57 = arith.mulf %36, %56 : vector<256x128xf32>
    %58 = vector.broadcast %55 : vector<1x128xf32> to vector<256x128xf32>
    %59 = arith.addf %57, %58 : vector<256x128xf32>
    %cst_24 = arith.constant 0.000000e+00 : f32
    %60 = vector.broadcast %cst_24 : f32 to vector<256x128xf32>
    %61 = arith.maximumf %59, %60 : vector<256x128xf32>
    %62 = vector.shape_cast %61 : vector<256x128xf32> to vector<16x16x128xf32>
    %cst_25 = arith.constant 0.000000e+00 : f32
    %63 = vector.broadcast %cst_25 : f32 to vector<1x16x128xf32>
    %64 = tpu.concatenate %63, %62, %63 in 0 : vector<1x16x128xf32>, vector<16x16x128xf32>, vector<1x16x128xf32> -> vector<18x16x128xf32>
    %cst_26 = arith.constant 0.000000e+00 : f32
    %65 = vector.broadcast %cst_26 : f32 to vector<18x1x128xf32>
    %66 = vector.extract_strided_slice %64 {offsets = [0, 0, 0], sizes = [18, 15, 128], strides = [1, 1, 1]} : vector<18x16x128xf32> to vector<18x15x128xf32>
    %67 = tpu.concatenate %65, %66 in 1 : vector<18x1x128xf32>, vector<18x15x128xf32> -> vector<18x16x128xf32>
    %68 = vector.extract_strided_slice %64 {offsets = [0, 1, 0], sizes = [18, 15, 128], strides = [1, 1, 1]} : vector<18x16x128xf32> to vector<18x15x128xf32>
    %69 = tpu.concatenate %68, %65 in 1 : vector<18x15x128xf32>, vector<18x1x128xf32> -> vector<18x16x128xf32>
    %cst_27 = arith.constant 0.000000e+00 : f32
    %70 = vector.broadcast %cst_27 : f32 to vector<256x128xf32>
    %71 = vector.extract_strided_slice %67 {offsets = [0, 0, 0], sizes = [16, 16, 128], strides = [1, 1, 1]} : vector<18x16x128xf32> to vector<16x16x128xf32>
    %72 = vector.extract_strided_slice %67 {offsets = [1, 0, 0], sizes = [16, 16, 128], strides = [1, 1, 1]} : vector<18x16x128xf32> to vector<16x16x128xf32>
    %73 = vector.extract_strided_slice %67 {offsets = [2, 0, 0], sizes = [16, 16, 128], strides = [1, 1, 1]} : vector<18x16x128xf32> to vector<16x16x128xf32>
    %74 = tpu.concatenate %71, %72, %73 in 2 : vector<16x16x128xf32>, vector<16x16x128xf32>, vector<16x16x128xf32> -> vector<16x16x384xf32>
    %75 = vector.shape_cast %74 : vector<16x16x384xf32> to vector<256x384xf32>
    %c0_28 = arith.constant 0 : index
    %c0_29 = arith.constant 0 : index
    %c0_30 = arith.constant 0 : index
    %76 = vector.load %arg5[%c0_28, %c0_29, %c0_30] : memref<3x384x128xf32, #tpu.memory_space<vmem>>, vector<1x384x128xf32>
    %77 = vector.shape_cast %76 : vector<1x384x128xf32> to vector<384x128xf32>
    %cst_31 = arith.constant dense<0.000000e+00> : vector<256x128xf32>
    %78 = tpu.matmul %75, %77, %cst_31 {dimension_numbers = #tpu.dot_dimension_numbers<[1], [0], [0], [1], [0, 0, 1, 1], [], []>} : vector<256x384xf32>, vector<384x128xf32>, vector<256x128xf32> -> vector<256x128xf32>
    %79 = arith.addf %70, %78 : vector<256x128xf32>
    %80 = vector.extract_strided_slice %64 {offsets = [0, 0, 0], sizes = [16, 16, 128], strides = [1, 1, 1]} : vector<18x16x128xf32> to vector<16x16x128xf32>
    %81 = vector.extract_strided_slice %64 {offsets = [1, 0, 0], sizes = [16, 16, 128], strides = [1, 1, 1]} : vector<18x16x128xf32> to vector<16x16x128xf32>
    %82 = vector.extract_strided_slice %64 {offsets = [2, 0, 0], sizes = [16, 16, 128], strides = [1, 1, 1]} : vector<18x16x128xf32> to vector<16x16x128xf32>
    %83 = tpu.concatenate %80, %81, %82 in 2 : vector<16x16x128xf32>, vector<16x16x128xf32>, vector<16x16x128xf32> -> vector<16x16x384xf32>
    %84 = vector.shape_cast %83 : vector<16x16x384xf32> to vector<256x384xf32>
    %c1_32 = arith.constant 1 : index
    %c0_33 = arith.constant 0 : index
    %c0_34 = arith.constant 0 : index
    %85 = vector.load %arg5[%c1_32, %c0_33, %c0_34] : memref<3x384x128xf32, #tpu.memory_space<vmem>>, vector<1x384x128xf32>
    %86 = vector.shape_cast %85 : vector<1x384x128xf32> to vector<384x128xf32>
    %cst_35 = arith.constant dense<0.000000e+00> : vector<256x128xf32>
    %87 = tpu.matmul %84, %86, %cst_35 {dimension_numbers = #tpu.dot_dimension_numbers<[1], [0], [0], [1], [0, 0, 1, 1], [], []>} : vector<256x384xf32>, vector<384x128xf32>, vector<256x128xf32> -> vector<256x128xf32>
    %88 = arith.addf %79, %87 : vector<256x128xf32>
    %89 = vector.extract_strided_slice %69 {offsets = [0, 0, 0], sizes = [16, 16, 128], strides = [1, 1, 1]} : vector<18x16x128xf32> to vector<16x16x128xf32>
    %90 = vector.extract_strided_slice %69 {offsets = [1, 0, 0], sizes = [16, 16, 128], strides = [1, 1, 1]} : vector<18x16x128xf32> to vector<16x16x128xf32>
    %91 = vector.extract_strided_slice %69 {offsets = [2, 0, 0], sizes = [16, 16, 128], strides = [1, 1, 1]} : vector<18x16x128xf32> to vector<16x16x128xf32>
    %92 = tpu.concatenate %89, %90, %91 in 2 : vector<16x16x128xf32>, vector<16x16x128xf32>, vector<16x16x128xf32> -> vector<16x16x384xf32>
    %93 = vector.shape_cast %92 : vector<16x16x384xf32> to vector<256x384xf32>
    %c2_36 = arith.constant 2 : index
    %c0_37 = arith.constant 0 : index
    %c0_38 = arith.constant 0 : index
    %94 = vector.load %arg5[%c2_36, %c0_37, %c0_38] : memref<3x384x128xf32, #tpu.memory_space<vmem>>, vector<1x384x128xf32>
    %95 = vector.shape_cast %94 : vector<1x384x128xf32> to vector<384x128xf32>
    %cst_39 = arith.constant dense<0.000000e+00> : vector<256x128xf32>
    %96 = tpu.matmul %93, %95, %cst_39 {dimension_numbers = #tpu.dot_dimension_numbers<[1], [0], [0], [1], [0, 0, 1, 1], [], []>} : vector<256x384xf32>, vector<384x128xf32>, vector<256x128xf32> -> vector<256x128xf32>
    %97 = arith.addf %88, %96 : vector<256x128xf32>
    %c0_40 = arith.constant 0 : index
    %c0_41 = arith.constant 0 : index
    %98 = vector.load %arg6[%c0_40, %c0_41] : memref<1x128xf32, #tpu.memory_space<vmem>>, vector<1x128xf32>
    %c0_42 = arith.constant 0 : index
    %c0_43 = arith.constant 0 : index
    %99 = vector.load %arg7[%c0_42, %c0_43] : memref<1x128xf32, #tpu.memory_space<vmem>>, vector<1x128xf32>
    %cst_44 = arith.constant dense<0.000000e+00> : vector<128xf32>
    %100 = vector.multi_reduction <add>, %97, %cst_44 [0] : vector<256x128xf32> to vector<128xf32>
    %101 = vector.shape_cast %100 : vector<128xf32> to vector<1x128xf32>
    %102 = arith.mulf %97, %97 : vector<256x128xf32>
    %cst_45 = arith.constant dense<0.000000e+00> : vector<128xf32>
    %103 = vector.multi_reduction <add>, %102, %cst_45 [0] : vector<256x128xf32> to vector<128xf32>
    %104 = vector.shape_cast %103 : vector<128xf32> to vector<1x128xf32>
    %cst_46 = arith.constant 3.906250e-03 : f32
    %105 = vector.broadcast %cst_46 : f32 to vector<1x128xf32>
    %106 = arith.mulf %101, %105 : vector<1x128xf32>
    %cst_47 = arith.constant 3.906250e-03 : f32
    %107 = vector.broadcast %cst_47 : f32 to vector<1x128xf32>
    %108 = arith.mulf %104, %107 : vector<1x128xf32>
    %109 = arith.mulf %106, %106 : vector<1x128xf32>
    %110 = arith.subf %108, %109 : vector<1x128xf32>
    %cst_48 = arith.constant 9.99999974E-6 : f32
    %111 = vector.broadcast %cst_48 : f32 to vector<1x128xf32>
    %112 = arith.addf %110, %111 : vector<1x128xf32>
    %113 = math.rsqrt %112 : vector<1x128xf32>
    %114 = arith.mulf %98, %113 : vector<1x128xf32>
    %115 = arith.mulf %106, %114 : vector<1x128xf32>
    %116 = arith.subf %99, %115 : vector<1x128xf32>
    %117 = vector.broadcast %114 : vector<1x128xf32> to vector<256x128xf32>
    %118 = arith.mulf %97, %117 : vector<256x128xf32>
    %119 = vector.broadcast %116 : vector<1x128xf32> to vector<256x128xf32>
    %120 = arith.addf %118, %119 : vector<256x128xf32>
    %c0_49 = arith.constant 0 : index
    %c0_50 = arith.constant 0 : index
    %c0_51 = arith.constant 0 : index
    %c0_52 = arith.constant 0 : index
    %121 = vector.load %arg1[%c0_49, %c0_50, %c0_51, %c0_52] : memref<1x16x16x128xf32, #tpu.memory_space<vmem>>, vector<1x16x16x128xf32>
    %122 = vector.shape_cast %121 : vector<1x16x16x128xf32> to vector<16x16x128xf32>
    %123 = vector.shape_cast %120 : vector<256x128xf32> to vector<16x16x128xf32>
    %124 = arith.addf %122, %123 : vector<16x16x128xf32>
    %c0_53 = arith.constant 0 : index
    %c0_54 = arith.constant 0 : index
    %c0_55 = arith.constant 0 : index
    %c0_56 = arith.constant 0 : index
    %125 = vector.load %arg8[%c0_53, %c0_54, %c0_55, %c0_56] : memref<1x16x16x128xf32, #tpu.memory_space<vmem>>, vector<1x16x16x128xf32>
    %126 = vector.shape_cast %125 : vector<1x16x16x128xf32> to vector<16x16x128xf32>
    %127 = vector.shape_cast %124 : vector<16x16x128xf32> to vector<1x16x16x128xf32>
    tpu.vector_store %arg8[%c0_53, %c0_54, %c0_55, %c0_56], %127 {strides = array<i32>} : memref<1x16x16x128xf32, #tpu.memory_space<vmem>>, vector<1x16x16x128xf32>,
    return
  }
  func.func @transform_0(%arg0: i32) -> (i32, i32, i32, i32) {
    %c0_i32 = arith.constant 0 : i32
    %c0_i32_0 = arith.constant 0 : i32
    %c0_i32_1 = arith.constant 0 : i32
    %c0_i32_2 = arith.constant 0 : i32
    return %arg0, %c0_i32, %c0_i32_0, %c0_i32_1 : i32, i32, i32, i32
  }
  func.func @transform_1(%arg0: i32) -> (i32, i32, i32) {
    %c0_i32 = arith.constant 0 : i32
    %c0_i32_0 = arith.constant 0 : i32
    %c0_i32_1 = arith.constant 0 : i32
    %c0_i32_2 = arith.constant 0 : i32
    return %c0_i32, %c0_i32_0, %c0_i32_1 : i32, i32, i32
  }
  func.func @transform_2(%arg0: i32) -> (i32, i32) {
    %c0_i32 = arith.constant 0 : i32
    %c0_i32_0 = arith.constant 0 : i32
    %c0_i32_1 = arith.constant 0 : i32
    return %c0_i32, %c0_i32_0 : i32, i32
  }
  func.func @transform_3(%arg0: i32) -> (i32, i32) {
    %c0_i32 = arith.constant 0 : i32
    %c0_i32_0 = arith.constant 0 : i32
    %c0_i32_1 = arith.constant 0 : i32
    return %c0_i32, %c0_i32_0 : i32, i32
  }
  func.func @transform_4(%arg0: i32) -> (i32, i32, i32) {
    %c0_i32 = arith.constant 0 : i32
    %c0_i32_0 = arith.constant 0 : i32
    %c0_i32_1 = arith.constant 0 : i32
    %c0_i32_2 = arith.constant 0 : i32
    return %c0_i32, %c0_i32_0, %c0_i32_1 : i32, i32, i32
  }
  func.func @transform_5(%arg0: i32) -> (i32, i32) {
    %c0_i32 = arith.constant 0 : i32
    %c0_i32_0 = arith.constant 0 : i32
    %c0_i32_1 = arith.constant 0 : i32
    return %c0_i32, %c0_i32_0 : i32, i32
  }
  func.func @transform_6(%arg0: i32) -> (i32, i32) {
    %c0_i32 = arith.constant 0 : i32
    %c0_i32_0 = arith.constant 0 : i32
    %c0_i32_1 = arith.constant 0 : i32
    return %c0_i32, %c0_i32_0 : i32, i32
  }
  func.func @transform_7(%arg0: i32) -> (i32, i32, i32, i32) {
    %c0_i32 = arith.constant 0 : i32
    %c0_i32_0 = arith.constant 0 : i32
    %c0_i32_1 = arith.constant 0 : i32
    %c0_i32_2 = arith.constant 0 : i32
    return %arg0, %c0_i32, %c0_i32_0, %c0_i32_1 : i32, i32, i32, i32
  }
}

</mosaic_0001>

<llo_original>
// kernel: tpu_custom_call.1
$region0: #{tpu_custom_call.1}
  #allocation0 [shape = 'u32[]', space=smem, size = 0x4, offset = 0x4, fixed_abs, tag = 'smem constant byte address 0x4 - core index']
  #allocation1 [shape = 'u32[144,128]{1,0:T(1,128)}', space=vmem, size = 0x12000, scoped, tag = 'internal scratch']
  %s0 = inlined_call_operand.hbm [shape: f32[2,16,16,128], index: 0, kind: input, shape index: {}]
  %s1 = inlined_call_operand.hbm [shape: f32[3,384,128], index: 1, kind: input, shape index: {}]
  %s2 = inlined_call_operand.vmem [shape: f32[1,128], index: 2, kind: input, shape index: {}]
  %s3 = inlined_call_operand.vmem [shape: f32[1,128], index: 3, kind: input, shape index: {}]
  %s4 = inlined_call_operand.hbm [shape: f32[3,384,128], index: 4, kind: input, shape index: {}]
  %s5 = inlined_call_operand.vmem [shape: f32[1,128], index: 5, kind: input, shape index: {}]
  %s6 = inlined_call_operand.vmem [shape: f32[1,128], index: 6, kind: input, shape index: {}]
  %s7 = inlined_call_operand.hbm [shape: f32[2,16,16,128], index: 7, kind: output, shape index: {}]
  %s8 = sld [smem:[#allocation0]]
  $region73: #{tpu_custom_call.1} parent=0
    _
  %s10 = ssub.s32 1, %s8
  %s11 = scalar_select 0, %s10, %s8
  $region1: #{tpu_custom_call.1} parent=0
    #allocation2 [shape = 'u8[262144]{0}', space=vmem, size = 0x40000, scoped, tag = 'input window, operand 0']
    #allocation3 [shape = 's32[2]{0}', space=sflag, size = 0x8, scoped, tag = 'scoped memory for tpu_custom_call.1']
    #allocation4 [shape = 's32[2]{0}', space=sflag, size = 0x8, scoped, tag = 'scoped memory for tpu_custom_call.1']
    #allocation5 [shape = 'u8[589824]{0}', space=vmem, size = 0x90000, scoped, tag = 'input window, operand 1, single buffered']
    #allocation6 [shape = 's32[1]{0}', space=sflag, size = 0x4, scoped, tag = 'scoped memory for tpu_custom_call.1']
    #allocation7 [shape = 'u8[589824]{0}', space=vmem, size = 0x90000, scoped, tag = 'input window, operand 4, single buffered']
    #allocation8 [shape = 'u8[262144]{0}', space=vmem, size = 0x40000, scoped, tag = 'output window, operand 0']
    %12 = vsyncpa [#allocation3], 0
    %s13 = scalar_lea.sflag [#allocation3], 1
    %14 = vsyncpa %s13, 0
    %15 = vsyncpa [#allocation6], 0
    %16 = vsyncpa [#allocation4], 0
    %s17 = scalar_lea.sflag [#allocation4], 1
    %18 = vsyncpa %s17, 0
    loop: start=0, step=1, limit=4
    $region2: #{tpu_custom_call.1} parent=1 // loop_pre_header
      _
    $region3: #{tpu_custom_call.1} parent=1 // loop_header
      %s20 = sphi 0, %s24
      %p21 = scmp.ge.s32.totalorder %s20, 4
      %s30 = sphi 0, %s32
      %s33 = sphi 0, %s30
      %s34 = sphi 0, %s33
      %s50 = sphi 0, %s34
      %s54 = sphi 0, %s54
      %s56 = sphi 0, %s54
      %s57 = sphi 0, %s56
      %s71 = sphi 0, %s57
      %s75 = sphi 0, %s75
      %s77 = sphi 0, %s75
      %s78 = sphi 0, %s77
      %s92 = sphi 0, %s78
      %s96 = sphi 0, %s96
      %s98 = sphi 0, %s96
      %s99 = sphi 0, %s98
      %s113 = sphi 0, %s99
      %s117 = sphi 0, %s117
      %s119 = sphi 0, %s117
      %s120 = sphi 0, %s119
      %s134 = sphi 0, %s120
      %s138 = sphi 0, %s138
      %s140 = sphi 0, %s138
      %s141 = sphi 0, %s140
      %s155 = sphi 0, %s141
      %s159 = sphi 0, %s159
      %s161 = sphi 0, %s159
      %s162 = sphi 0, %s161
      %s176 = sphi 0, %s162
      %s182 = sphi 0, %s184
      %s185 = sphi 0, %s182
      %s186 = sphi 0, %s185
      %s202 = sphi 0, %s186
    $region4: #{tpu_custom_call.1} parent=1 // loop_header_branch
      %23 = sbr.rel (%p21) target = $region8
    $region5: #{tpu_custom_call.1} parent=1 // loop_body
      %s25 = ssub.s32 %s20, 1
      %s26 = ssub.s32 %s20, 2
      %s27 = sadd.s32 %s20, 1
      %s28 = ssub.s32 %s20, %s27
      %p29 = scmp.eq.s32.totalorder %s28, 0
      %s31 = sadd.s32 %s30, 1
      %s32 = scalar_select %p29, %s30, %s31
      %p35 = pneg %p29
      %p36 = scmp.eq.s32.totalorder %s20, 1
      %p37 = por %p35, %p36
      %p38 = scmp.ne.s32.totalorder %s30, %s33
      %p39 = scmp.eq.s32.totalorder %s20, 0
      %p40 = por %p38, %p39
      %p41 = scmp.ne.s32.totalorder %s30, %s33
      %p42 = scmp.eq.s32.totalorder %s25, 1
      %p43 = por %p41, %p42
      %p44 = scmp.ne.s32.totalorder %s33, %s34
      %p45 = scmp.eq.s32.totalorder %s25, 0
      %p46 = por %p44, %p45
      %p47 = scmp.ne.s32.totalorder %s33, %s34
      %p48 = scmp.eq.s32.totalorder %s26, 1
      %p49 = por %p47, %p48
      %p51 = scmp.ne.s32.totalorder %s34, %s50
      %p52 = scmp.eq.s32.totalorder %s26, 0
      %p53 = por %p51, %p52
      %s55 = sadd.s32 %s54, 1
      %p58 = scmp.eq.s32.totalorder %s20, 1
      %p59 = scmp.ne.s32.totalorder %s54, %s56
      %p60 = scmp.eq.s32.totalorder %s20, 0
      %p61 = por %p59, %p60
      %p62 = scmp.ne.s32.totalorder %s54, %s56
      %p63 = scmp.eq.s32.totalorder %s25, 1
      %p64 = por %p62, %p63
      %p65 = scmp.ne.s32.totalorder %s56, %s57
      %p66 = scmp.eq.s32.totalorder %s25, 0
      %p67 = por %p65, %p66
      %p68 = scmp.ne.s32.totalorder %s56, %s57
      %p69 = scmp.eq.s32.totalorder %s26, 1
      %p70 = por %p68, %p69
      %p72 = scmp.ne.s32.totalorder %s57, %s71
      %p73 = scmp.eq.s32.totalorder %s26, 0
      %p74 = por %p72, %p73
      %s76 = sadd.s32 %s75, 1
      %p79 = scmp.eq.s32.totalorder %s20, 1
      %p80 = scmp.ne.s32.totalorder %s75, %s77
      %p81 = scmp.eq.s32.totalorder %s20, 0
      %p82 = por %p80, %p81
      %p83 = scmp.ne.s32.totalorder %s75, %s77
      %p84 = scmp.eq.s32.totalorder %s25, 1
      %p85 = por %p83, %p84
      %p86 = scmp.ne.s32.totalorder %s77, %s78
      %p87 = scmp.eq.s32.totalorder %s25, 0
      %p88 = por %p86, %p87
      %p89 = scmp.ne.s32.totalorder %s77, %s78
      %p90 = scmp.eq.s32.totalorder %s26, 1
      %p91 = por %p89, %p90
      %p93 = scmp.ne.s32.totalorder %s78, %s92
      %p94 = scmp.eq.s32.totalorder %s26, 0
      %p95 = por %p93, %p94
      %s97 = sadd.s32 %s96, 1
      %p100 = scmp.eq.s32.totalorder %s20, 1
      %p101 = scmp.ne.s32.totalorder %s96, %s98
      %p102 = scmp.eq.s32.totalorder %s20, 0
      %p103 = por %p101, %p102
      %p104 = scmp.ne.s32.totalorder %s96, %s98
      %p105 = scmp.eq.s32.totalorder %s25, 1
      %p106 = por %p104, %p105
      %p107 = scmp.ne.s32.totalorder %s98, %s99
      %p108 = scmp.eq.s32.totalorder %s25, 0
      %p109 = por %p107, %p108
      %p110 = scmp.ne.s32.totalorder %s98, %s99
      %p111 = scmp.eq.s32.totalorder %s26, 1
      %p112 = por %p110, %p111
      %p114 = scmp.ne.s32.totalorder %s99, %s113
      %p115 = scmp.eq.s32.totalorder %s26, 0
      %p116 = por %p114, %p115
      %s118 = sadd.s32 %s117, 1
      %p121 = scmp.eq.s32.totalorder %s20, 1
      %p122 = scmp.ne.s32.totalorder %s117, %s119
      %p123 = scmp.eq.s32.totalorder %s20, 0
      %p124 = por %p122, %p123
      %p125 = scmp.ne.s32.totalorder %s117, %s119
      %p126 = scmp.eq.s32.totalorder %s25, 1
      %p127 = por %p125, %p126
      %p128 = scmp.ne.s32.totalorder %s119, %s120
      %p129 = scmp.eq.s32.totalorder %s25, 0
      %p130 = por %p128, %p129
      %p131 = scmp.ne.s32.totalorder %s119, %s120
      %p132 = scmp.eq.s32.totalorder %s26, 1
      %p133 = por %p131, %p132
      %p135 = scmp.ne.s32.totalorder %s120, %s134
      %p136 = scmp.eq.s32.totalorder %s26, 0
      %p137 = por %p135, %p136
      %s139 = sadd.s32 %s138, 1
      %p142 = scmp.eq.s32.totalorder %s20, 1
      %p143 = scmp.ne.s32.totalorder %s138, %s140
      %p144 = scmp.eq.s32.totalorder %s20, 0
      %p145 = por %p143, %p144
      %p146 = scmp.ne.s32.totalorder %s138, %s140
      %p147 = scmp.eq.s32.totalorder %s25, 1
      %p148 = por %p146, %p147
      %p149 = scmp.ne.s32.totalorder %s140, %s141
      %p150 = scmp.eq.s32.totalorder %s25, 0
      %p151 = por %p149, %p150
      %p152 = scmp.ne.s32.totalorder %s140, %s141
      %p153 = scmp.eq.s32.totalorder %s26, 1
      %p154 = por %p152, %p153
      %p156 = scmp.ne.s32.totalorder %s141, %s155
      %p157 = scmp.eq.s32.totalorder %s26, 0
      %p158 = por %p156, %p157
      %s160 = sadd.s32 %s159, 1
      %p163 = scmp.eq.s32.totalorder %s20, 1
      %p164 = scmp.ne.s32.totalorder %s159, %s161
      %p165 = scmp.eq.s32.totalorder %s20, 0
      %p166 = por %p164, %p165
      %p167 = scmp.ne.s32.totalorder %s159, %s161
      %p168 = scmp.eq.s32.totalorder %s25, 1
      %p169 = por %p167, %p168
      %p170 = scmp.ne.s32.totalorder %s161, %s162
      %p171 = scmp.eq.s32.totalorder %s25, 0
      %p172 = por %p170, %p171
      %p173 = scmp.ne.s32.totalorder %s161, %s162
      %p174 = scmp.eq.s32.totalorder %s26, 1
      %p175 = por %p173, %p174
      %p177 = scmp.ne.s32.totalorder %s162, %s176
      %p178 = scmp.eq.s32.totalorder %s26, 0
      %p179 = por %p177, %p178
      %s180 = ssub.s32 %s20, %s27
      %p181 = scmp.eq.s32.totalorder %s180, 0
      %s183 = sadd.s32 %s182, 1
      %s184 = scalar_select %p181, %s182, %s183
      %p187 = pneg %p181
      %p188 = scmp.eq.s32.totalorder %s20, 1
      %p189 = por %p187, %p188
      %p190 = scmp.ne.s32.totalorder %s182, %s185
      %p191 = scmp.eq.s32.totalorder %s20, 0
      %p192 = por %p190, %p191
      %p193 = scmp.ne.s32.totalorder %s182, %s185
      %p194 = scmp.eq.s32.totalorder %s25, 1
      %p195 = por %p193, %p194
      %p196 = scmp.ne.s32.totalorder %s185, %s186
      %p197 = scmp.eq.s32.totalorder %s25, 0
      %p198 = por %p196, %p197
      %p199 = scmp.ne.s32.totalorder %s185, %s186
      %p200 = scmp.eq.s32.totalorder %s26, 1
      %p201 = por %p199, %p200
      %p203 = scmp.ne.s32.totalorder %s186, %s202
      %p204 = scmp.eq.s32.totalorder %s26, 0
      %p205 = por %p203, %p204
      %p206 = scmp.le.s32.totalorder 1, %s20
      %p207 = scmp.lt.s32.totalorder %s20, 3
      %p208 = pnand %p206, %p207
      %p209 = pneg %p208
      // Predicated region
      $region9: #{tpu_custom_call.1} parent=5 // pred_check
        _
      $region10: #{tpu_custom_call.1} parent=5 // pred_check_branch
        %211 = sbr.rel (%p208) target = $region12
      $region11: #{tpu_custom_call.1} parent=5 // pred_region
        %s212 = ssub.s32 %s20, 1
        // Predicated region
        $region13: #{tpu_custom_call.1} parent=11 // pred_check
          %p213 = pneg %p67
        $region14: #{tpu_custom_call.1} parent=11 // pred_check_branch
          %215 = sbr.rel (%p213) target = $region16
        $region15: #{tpu_custom_call.1} parent=11 // pred_region
          %s217 = ssub.s32 18432, 18432
          %218 = vsyncadd [#allocation6], %s217
          %s219 = sshll.u32 [#allocation5], 4
          %s220 = int_to_ptr.vmem [resolvable:$true] %s219
          %225 = dma.hbm_to_vmem [thread:$0]  %s1, 18432, %s220, [#allocation6], 128, 128, 8
        $region16: #{tpu_custom_call.1} parent=11 // pred_fallthru
          _
        // Predicated region
        $region17: #{tpu_custom_call.1} parent=11 // pred_check
          %p226 = pneg %p88
        $region18: #{tpu_custom_call.1} parent=11 // pred_check_branch
          %228 = sbr.rel (%p226) target = $region20
        $region19: #{tpu_custom_call.1} parent=11 // pred_region
          _
        $region20: #{tpu_custom_call.1} parent=11 // pred_fallthru
          _
        // Predicated region
        $region21: #{tpu_custom_call.1} parent=11 // pred_check
          %p229 = pneg %p109
        $region22: #{tpu_custom_call.1} parent=11 // pred_check_branch
          %231 = sbr.rel (%p229) target = $region24
        $region23: #{tpu_custom_call.1} parent=11 // pred_region
          _
        $region24: #{tpu_custom_call.1} parent=11 // pred_fallthru
          _
        // Predicated region
        $region25: #{tpu_custom_call.1} parent=11 // pred_check
          %p232 = pneg %p130
        $region26: #{tpu_custom_call.1} parent=11 // pred_check_branch
          %234 = sbr.rel (%p232) target = $region28
        $region27: #{tpu_custom_call.1} parent=11 // pred_region
          %s236 = ssub.s32 18432, 18432
          %237 = vsyncadd [#allocation6], %s236
          %s238 = sshll.u32 [#allocation7], 4
          %s239 = int_to_ptr.vmem [resolvable:$true] %s238
          %244 = dma.hbm_to_vmem [thread:$0]  %s4, 18432, %s239, [#allocation6], 128, 128, 8
        $region28: #{tpu_custom_call.1} parent=11 // pred_fallthru
          _
        // Predicated region
        $region29: #{tpu_custom_call.1} parent=11 // pred_check
          %p245 = pneg %p151
        $region30: #{tpu_custom_call.1} parent=11 // pred_check_branch
          %247 = sbr.rel (%p245) target = $region32
        $region31: #{tpu_custom_call.1} parent=11 // pred_region
          _
        $region32: #{tpu_custom_call.1} parent=11 // pred_fallthru
          _
        // Predicated region
        $region33: #{tpu_custom_call.1} parent=11 // pred_check
          %p248 = pneg %p172
        $region34: #{tpu_custom_call.1} parent=11 // pred_check_branch
          %250 = sbr.rel (%p248) target = $region36
        $region35: #{tpu_custom_call.1} parent=11 // pred_region
          _
        $region36: #{tpu_custom_call.1} parent=11 // pred_fallthru
          _
      $region12: #{tpu_custom_call.1} parent=5 // pred_fallthru
        _
      %p251 = scmp.lt.s32.totalorder %s20, 2
      // Predicated region
      $region37: #{tpu_custom_call.1} parent=5 // pred_check
        %p252 = pneg %p251
      $region38: #{tpu_custom_call.1} parent=5 // pred_check_branch
        %254 = sbr.rel (%p252) target = $region40
      $region39: #{tpu_custom_call.1} parent=5 // pred_region
        // Predicated region
        $region41: #{tpu_custom_call.1} parent=39 // pred_check
          %p255 = pneg %p40
        $region42: #{tpu_custom_call.1} parent=39 // pred_check_branch
          %257 = sbr.rel (%p255) target = $region44
        $region43: #{tpu_custom_call.1} parent=39 // pred_region
          %s258 = sand.u32 %s30, 1
          %s259 = scalar_lea.sflag [#allocation3], %s258
          %s260 = sand.u32 %s30, 1
          %s261 = smul.addr %s260, 256
          %s262 = scalar_lea.vmem [#allocation2], %s261
          %s264 = ssub.s32 4096, 4096
          %265 = vsyncadd %s259, %s264
          %s266 = smul.addr %s20, 32
          %s267 = smul.addr %s266, 128
          %s268 = scalar_lea.hbm %s0, %s267
          %s269 = sshll.u32 %s262, 4
          %s270 = int_to_ptr.vmem [resolvable:$true] %s269
          %275 = dma.hbm_to_vmem [thread:$0]  %s268, 4096, %s270, %s259, 128, 128, 8
        $region44: #{tpu_custom_call.1} parent=39 // pred_fallthru
          _
      $region40: #{tpu_custom_call.1} parent=5 // pred_fallthru
        _
      %p276 = scmp.le.s32.totalorder 1, %s20
      %p277 = scmp.lt.s32.totalorder %s20, 3
      %p278 = pnand %p276, %p277
      %p279 = pneg %p278
      // Predicated region
      $region45: #{tpu_custom_call.1} parent=5 // pred_check
        _
      $region46: #{tpu_custom_call.1} parent=5 // pred_check_branch
        %281 = sbr.rel (%p278) target = $region48
      $region47: #{tpu_custom_call.1} parent=5 // pred_region
        %s282 = ssub.s32 %s20, 1
        %s283 = sand.u32 %s33, 1
        %s284 = scalar_lea.sflag [#allocation3], %s283
        %s285 = sand.u32 %s33, 1
        %s286 = smul.addr %s285, 256
        %s287 = scalar_lea.vmem [#allocation2], %s286
        // Predicated region
        $region49: #{tpu_custom_call.1} parent=47 // pred_check
          %p288 = pneg %p46
        $region50: #{tpu_custom_call.1} parent=47 // pred_check_branch
          %290 = sbr.rel (%p288) target = $region52
        $region51: #{tpu_custom_call.1} parent=47 // pred_region
          %291 = dma.done %s284, 4096
        $region52: #{tpu_custom_call.1} parent=47 // pred_fallthru
          _
        // Predicated region
        $region53: #{tpu_custom_call.1} parent=47 // pred_check
          %p292 = pneg %p67
        $region54: #{tpu_custom_call.1} parent=47 // pred_check_branch
          %294 = sbr.rel (%p292) target = $region56
        $region55: #{tpu_custom_call.1} parent=47 // pred_region
          %295 = dma.done [#allocation6], 18432
        $region56: #{tpu_custom_call.1} parent=47 // pred_fallthru
          _
        // Predicated region
        $region57: #{tpu_custom_call.1} parent=47 // pred_check
          %p296 = pneg %p130
        $region58: #{tpu_custom_call.1} parent=47 // pred_check_branch
          %298 = sbr.rel (%p296) target = $region60
        $region59: #{tpu_custom_call.1} parent=47 // pred_region
          %299 = dma.done [#allocation6], 18432
        $region60: #{tpu_custom_call.1} parent=47 // pred_fallthru
          _
        %s300 = sand.u32 %s33, 1
        %s301 = scalar_lea.sflag [#allocation3], %s300
        %s302 = sand.u32 %s33, 1
        %s303 = smul.addr %s302, 256
        %s304 = scalar_lea.vmem [#allocation2], %s303
        %p305 = pneg %p46
        %p306 = pneg %p43
        %p307 = pneg %p67
        %p308 = pneg %p64
        %p309 = pneg %p88
        %p310 = pneg %p85
        %p311 = pneg %p109
        %p312 = pneg %p106
        %p313 = pneg %p130
        %p314 = pneg %p127
        %p315 = pneg %p151
        %p316 = pneg %p148
        %p317 = pneg %p172
        %p318 = pneg %p169
        %p319 = pneg %p198
        %p320 = pneg %p195
        %s321 = sand.u32 %s185, 1
        %s322 = scalar_lea.sflag [#allocation4], %s321
        %s323 = sand.u32 %s185, 1
        %s324 = smul.addr %s323, 256
        %s325 = scalar_lea.vmem [#allocation8], %s324
        %v326 = vld [vmem:[%s287] sm:$0xff]
        %v327 = vld [vmem:[%s287 + $0x8] sm:$0xff]
        %v328 = vld [vmem:[%s287 + $0x10] sm:$0xff]
        %v329 = vld [vmem:[%s287 + $0x18] sm:$0xff]
        %v330 = vld [vmem:[%s287 + $0x20] sm:$0xff]
        %v331 = vld [vmem:[%s287 + $0x28] sm:$0xff]
        %v332 = vld [vmem:[%s287 + $0x30] sm:$0xff]
        %v333 = vld [vmem:[%s287 + $0x38] sm:$0xff]
        %v334 = vld [vmem:[%s287 + $0x40] sm:$0xff]
        %v335 = vld [vmem:[%s287 + $0x48] sm:$0xff]
        %v336 = vld [vmem:[%s287 + $0x50] sm:$0xff]
        %v337 = vld [vmem:[%s287 + $0x58] sm:$0xff]
        %v338 = vld [vmem:[%s287 + $0x60] sm:$0xff]
        %v339 = vld [vmem:[%s287 + $0x68] sm:$0xff]
        %v340 = vld [vmem:[%s287 + $0x70] sm:$0xff]
        %v341 = vld [vmem:[%s287 + $0x78] sm:$0xff]
        %v342 = vld [vmem:[%s287 + $0x80] sm:$0xff]
        %v343 = vld [vmem:[%s287 + $0x88] sm:$0xff]
        %v344 = vld [vmem:[%s287 + $0x90] sm:$0xff]
        %v345 = vld [vmem:[%s287 + $0x98] sm:$0xff]
        %v346 = vld [vmem:[%s287 + $0xa0] sm:$0xff]
        %v347 = vld [vmem:[%s287 + $0xa8] sm:$0xff]
        %v348 = vld [vmem:[%s287 + $0xb0] sm:$0xff]
        %v349 = vld [vmem:[%s287 + $0xb8] sm:$0xff]
        %v350 = vld [vmem:[%s287 + $0xc0] sm:$0xff]
        %v351 = vld [vmem:[%s287 + $0xc8] sm:$0xff]
        %v352 = vld [vmem:[%s287 + $0xd0] sm:$0xff]
        %v353 = vld [vmem:[%s287 + $0xd8] sm:$0xff]
        %v354 = vld [vmem:[%s287 + $0xe0] sm:$0xff]
        %v355 = vld [vmem:[%s287 + $0xe8] sm:$0xff]
        %v356 = vld [vmem:[%s287 + $0xf0] sm:$0xff]
        %v357 = vld [vmem:[%s287 + $0xf8] sm:$0xff]
        %vm391 = vcmask 1040384
        %v392 = vrot.slane 0.0, 7
        %v393 = vsel %vm391, %v392, %v392
        %v394 = vrot.slane %v326, 7
        %v395 = vrot.slane %v327, 7
        %v396 = vsel %vm391, %v394, %v395
        %v397 = vrot.slane %v328, 7
        %v398 = vrot.slane %v329, 7
        %v399 = vsel %vm391, %v397, %v398
        %v400 = vrot.slane %v330, 7
        %v401 = vrot.slane %v331, 7
        %v402 = vsel %vm391, %v400, %v401
        %v403 = vrot.slane %v332, 7
        %v404 = vrot.slane %v333, 7
        %v405 = vsel %vm391, %v403, %v404
        %v406 = vrot.slane %v334, 7
        %v407 = vrot.slane %v335, 7
        %v408 = vsel %vm391, %v406, %v407
        %v409 = vrot.slane %v336, 7
        %v410 = vrot.slane %v337, 7
        %v411 = vsel %vm391, %v409, %v410
        %v412 = vrot.slane %v338, 7
        %v413 = vrot.slane %v339, 7
        %v414 = vsel %vm391, %v412, %v413
        %v415 = vrot.slane %v340, 7
        %v416 = vrot.slane %v341, 7
        %v417 = vsel %vm391, %v415, %v416
        %v418 = vrot.slane %v342, 7
        %v419 = vrot.slane %v343, 7
        %v420 = vsel %vm391, %v418, %v419
        %v421 = vrot.slane %v344, 7
        %v422 = vrot.slane %v345, 7
        %v423 = vsel %vm391, %v421, %v422
        %v424 = vrot.slane %v346, 7
        %v425 = vrot.slane %v347, 7
        %v426 = vsel %vm391, %v424, %v425
        %v427 = vrot.slane %v348, 7
        %v428 = vrot.slane %v349, 7
        %v429 = vsel %vm391, %v427, %v428
        %v430 = vrot.slane %v350, 7
        %v431 = vrot.slane %v351, 7
        %v432 = vsel %vm391, %v430, %v431
        %v433 = vrot.slane %v352, 7
        %v434 = vrot.slane %v353, 7
        %v435 = vsel %vm391, %v433, %v434
        %v436 = vrot.slane %v354, 7
        %v437 = vrot.slane %v355, 7
        %v438 = vsel %vm391, %v436, %v437
        %v439 = vrot.slane %v356, 7
        %v440 = vrot.slane %v357, 7
        %v441 = vsel %vm391, %v439, %v440
        %v476 = vsel %vm391, 0.0, %v392
        %v477 = vsel %vm391, 0.0, %v394
        %v478 = vsel %vm391, 0.0, %v397
        %v479 = vsel %vm391, 0.0, %v400
        %v480 = vsel %vm391, 0.0, %v403
        %v481 = vsel %vm391, 0.0, %v406
        %v482 = vsel %vm391, 0.0, %v409
        %v483 = vsel %vm391, 0.0, %v412
        %v484 = vsel %vm391, 0.0, %v415
        %v485 = vsel %vm391, 0.0, %v418
        %v486 = vsel %vm391, 0.0, %v421
        %v487 = vsel %vm391, 0.0, %v424
        %v488 = vsel %vm391, 0.0, %v427
        %v489 = vsel %vm391, 0.0, %v430
        %v490 = vsel %vm391, 0.0, %v433
        %v491 = vsel %vm391, 0.0, %v436
        %v492 = vsel %vm391, 0.0, %v439
        %vm493 = vcmask 1046528
        %v494 = vrot.slane 0.0, 1
        %v495 = vsel %vm493, %v494, %v494
        %v496 = vrot.slane %v326, 1
        %v497 = vrot.slane %v327, 1
        %v498 = vsel %vm493, %v496, %v497
        %v499 = vrot.slane %v328, 1
        %v500 = vrot.slane %v329, 1
        %v501 = vsel %vm493, %v499, %v500
        %v502 = vrot.slane %v330, 1
        %v503 = vrot.slane %v331, 1
        %v504 = vsel %vm493, %v502, %v503
        %v505 = vrot.slane %v332, 1
        %v506 = vrot.slane %v333, 1
        %v507 = vsel %vm493, %v505, %v506
        %v508 = vrot.slane %v334, 1
        %v509 = vrot.slane %v335, 1
        %v510 = vsel %vm493, %v508, %v509
        %v511 = vrot.slane %v336, 1
        %v512 = vrot.slane %v337, 1
        %v513 = vsel %vm493, %v511, %v512
        %v514 = vrot.slane %v338, 1
        %v515 = vrot.slane %v339, 1
        %v516 = vsel %vm493, %v514, %v515
        %v517 = vrot.slane %v340, 1
        %v518 = vrot.slane %v341, 1
        %v519 = vsel %vm493, %v517, %v518
        %v520 = vrot.slane %v342, 1
        %v521 = vrot.slane %v343, 1
        %v522 = vsel %vm493, %v520, %v521
        %v523 = vrot.slane %v344, 1
        %v524 = vrot.slane %v345, 1
        %v525 = vsel %vm493, %v523, %v524
        %v526 = vrot.slane %v346, 1
        %v527 = vrot.slane %v347, 1
        %v528 = vsel %vm493, %v526, %v527
        %v529 = vrot.slane %v348, 1
        %v530 = vrot.slane %v349, 1
        %v531 = vsel %vm493, %v529, %v530
        %v532 = vrot.slane %v350, 1
        %v533 = vrot.slane %v351, 1
        %v534 = vsel %vm493, %v532, %v533
        %v535 = vrot.slane %v352, 1
        %v536 = vrot.slane %v353, 1
        %v537 = vsel %vm493, %v535, %v536
        %v538 = vrot.slane %v354, 1
        %v539 = vrot.slane %v355, 1
        %v540 = vsel %vm493, %v538, %v539
        %v541 = vrot.slane %v356, 1
        %v542 = vrot.slane %v357, 1
        %v543 = vsel %vm493, %v541, %v542
        %v578 = vsel %vm493, %v494, 0.0
        %v579 = vsel %vm493, %v497, 0.0
        %v580 = vsel %vm493, %v500, 0.0
        %v581 = vsel %vm493, %v503, 0.0
        %v582 = vsel %vm493, %v506, 0.0
        %v583 = vsel %vm493, %v509, 0.0
        %v584 = vsel %vm493, %v512, 0.0
        %v585 = vsel %vm493, %v515, 0.0
        %v586 = vsel %vm493, %v518, 0.0
        %v587 = vsel %vm493, %v521, 0.0
        %v588 = vsel %vm493, %v524, 0.0
        %v589 = vsel %vm493, %v527, 0.0
        %v590 = vsel %vm493, %v530, 0.0
        %v591 = vsel %vm493, %v533, 0.0
        %v592 = vsel %vm493, %v536, 0.0
        %v593 = vsel %vm493, %v539, 0.0
        %v594 = vsel %vm493, %v542, 0.0
        %v595 = vld [vmem:[#allocation5] sm:$0xff]
        %v596 = vld [vmem:[#allocation5 + $0x8] sm:$0xff]
        %v597 = vld [vmem:[#allocation5 + $0x10] sm:$0xff]
        %v598 = vld [vmem:[#allocation5 + $0x18] sm:$0xff]
        %v599 = vld [vmem:[#allocation5 + $0x20] sm:$0xff]
        %v600 = vld [vmem:[#allocation5 + $0x28] sm:$0xff]
        %v601 = vld [vmem:[#allocation5 + $0x30] sm:$0xff]
        %v602 = vld [vmem:[#allocation5 + $0x38] sm:$0xff]
        %v603 = vld [vmem:[#allocation5 + $0x40] sm:$0xff]
        %v604 = vld [vmem:[#allocation5 + $0x48] sm:$0xff]
        %v605 = vld [vmem:[#allocation5 + $0x50] sm:$0xff]
        %v606 = vld [vmem:[#allocation5 + $0x58] sm:$0xff]
        %v607 = vld [vmem:[#allocation5 + $0x60] sm:$0xff]
        %v608 = vld [vmem:[#allocation5 + $0x68] sm:$0xff]
        %v609 = vld [vmem:[#allocation5 + $0x70] sm:$0xff]
        %v610 = vld [vmem:[#allocation5 + $0x78] sm:$0xff]
        %v611 = vld [vmem:[#allocation5 + $0x80] sm:$0xff]
        %v612 = vld [vmem:[#allocation5 + $0x88] sm:$0xff]
        %v613 = vld [vmem:[#allocation5 + $0x90] sm:$0xff]
        %v614 = vld [vmem:[#allocation5 + $0x98] sm:$0xff]
        %v615 = vld [vmem:[#allocation5 + $0xa0] sm:$0xff]
        %v616 = vld [vmem:[#allocation5 + $0xa8] sm:$0xff]
        %v617 = vld [vmem:[#allocation5 + $0xb0] sm:$0xff]
        %v618 = vld [vmem:[#allocation5 + $0xb8] sm:$0xff]
        %v619 = vld [vmem:[#allocation5 + $0xc0] sm:$0xff]
        %v620 = vld [vmem:[#allocation5 + $0xc8] sm:$0xff]
        %v621 = vld [vmem:[#allocation5 + $0xd0] sm:$0xff]
        %v622 = vld [vmem:[#allocation5 + $0xd8] sm:$0xff]
        %v623 = vld [vmem:[#allocation5 + $0xe0] sm:$0xff]
        %v624 = vld [vmem:[#allocation5 + $0xe8] sm:$0xff]
        %v625 = vld [vmem:[#allocation5 + $0xf0] sm:$0xff]
        %v626 = vld [vmem:[#allocation5 + $0xf8] sm:$0xff]
        %v627 = vld [vmem:[#allocation5 + $0x100] sm:$0xff]
        %v628 = vld [vmem:[#allocation5 + $0x108] sm:$0xff]
        %v629 = vld [vmem:[#allocation5 + $0x110] sm:$0xff]
        %v630 = vld [vmem:[#allocation5 + $0x118] sm:$0xff]
        %v631 = vld [vmem:[#allocation5 + $0x120] sm:$0xff]
        %v632 = vld [vmem:[#allocation5 + $0x128] sm:$0xff]
        %v633 = vld [vmem:[#allocation5 + $0x130] sm:$0xff]
        %v634 = vld [vmem:[#allocation5 + $0x138] sm:$0xff]
        %v635 = vld [vmem:[#allocation5 + $0x140] sm:$0xff]
        %v636 = vld [vmem:[#allocation5 + $0x148] sm:$0xff]
        %v637 = vld [vmem:[#allocation5 + $0x150] sm:$0xff]
        %v638 = vld [vmem:[#allocation5 + $0x158] sm:$0xff]
        %v639 = vld [vmem:[#allocation5 + $0x160] sm:$0xff]
        %v640 = vld [vmem:[#allocation5 + $0x168] sm:$0xff]
        %v641 = vld [vmem:[#allocation5 + $0x170] sm:$0xff]
        %v642 = vld [vmem:[#allocation5 + $0x178] sm:$0xff]
        %s643 = scalar_lea.vmem [#allocation5], 384
        %v644 = vld [vmem:[%s643] sm:$0xff]
        %v645 = vld [vmem:[%s643 + $0x8] sm:$0xff]
        %v646 = vld [vmem:[%s643 + $0x10] sm:$0xff]
        %v647 = vld [vmem:[%s643 + $0x18] sm:$0xff]
        %v648 = vld [vmem:[%s643 + $0x20] sm:$0xff]
        %v649 = vld [vmem:[%s643 + $0x28] sm:$0xff]
        %v650 = vld [vmem:[%s643 + $0x30] sm:$0xff]
        %v651 = vld [vmem:[%s643 + $0x38] sm:$0xff]
        %v652 = vld [vmem:[%s643 + $0x40] sm:$0xff]
        %v653 = vld [vmem:[%s643 + $0x48] sm:$0xff]
        %v654 = vld [vmem:[%s643 + $0x50] sm:$0xff]
        %v655 = vld [vmem:[%s643 + $0x58] sm:$0xff]
        %v656 = vld [vmem:[%s643 + $0x60] sm:$0xff]
        %v657 = vld [vmem:[%s643 + $0x68] sm:$0xff]
        %v658 = vld [vmem:[%s643 + $0x70] sm:$0xff]
        %v659 = vld [vmem:[%s643 + $0x78] sm:$0xff]
        %v660 = vld [vmem:[%s643 + $0x80] sm:$0xff]
        %v661 = vld [vmem:[%s643 + $0x88] sm:$0xff]
        %v662 = vld [vmem:[%s643 + $0x90] sm:$0xff]
        %v663 = vld [vmem:[%s643 + $0x98] sm:$0xff]
        %v664 = vld [vmem:[%s643 + $0xa0] sm:$0xff]
        %v665 = vld [vmem:[%s643 + $0xa8] sm:$0xff]
        %v666 = vld [vmem:[%s643 + $0xb0] sm:$0xff]
        %v667 = vld [vmem:[%s643 + $0xb8] sm:$0xff]
        %v668 = vld [vmem:[%s643 + $0xc0] sm:$0xff]
        %v669 = vld [vmem:[%s643 + $0xc8] sm:$0xff]
        %v670 = vld [vmem:[%s643 + $0xd0] sm:$0xff]
        %v671 = vld [vmem:[%s643 + $0xd8] sm:$0xff]
        %v672 = vld [vmem:[%s643 + $0xe0] sm:$0xff]
        %v673 = vld [vmem:[%s643 + $0xe8] sm:$0xff]
        %v674 = vld [vmem:[%s643 + $0xf0] sm:$0xff]
        %v675 = vld [vmem:[%s643 + $0xf8] sm:$0xff]
        %v676 = vld [vmem:[%s643 + $0x100] sm:$0xff]
        %v677 = vld [vmem:[%s643 + $0x108] sm:$0xff]
        %v678 = vld [vmem:[%s643 + $0x110] sm:$0xff]
        %v679 = vld [vmem:[%s643 + $0x118] sm:$0xff]
        %v680 = vld [vmem:[%s643 + $0x120] sm:$0xff]
        %v681 = vld [vmem:[%s643 + $0x128] sm:$0xff]
        %v682 = vld [vmem:[%s643 + $0x130] sm:$0xff]
        %v683 = vld [vmem:[%s643 + $0x138] sm:$0xff]
        %v684 = vld [vmem:[%s643 + $0x140] sm:$0xff]
        %v685 = vld [vmem:[%s643 + $0x148] sm:$0xff]
        %v686 = vld [vmem:[%s643 + $0x150] sm:$0xff]
        %v687 = vld [vmem:[%s643 + $0x158] sm:$0xff]
        %v688 = vld [vmem:[%s643 + $0x160] sm:$0xff]
        %v689 = vld [vmem:[%s643 + $0x168] sm:$0xff]
        %v690 = vld [vmem:[%s643 + $0x170] sm:$0xff]
        %v691 = vld [vmem:[%s643 + $0x178] sm:$0xff]
        %692 = vmatprep.subr.mxu0 0.0
        %693 = vmatpush1.msra.mxu0 %v659
        %694 = vmatprep.subr.mxu0 0.0
        %695 = vmatpush1.msra.mxu0 %v658
        %696 = vmatprep.subr.mxu0 0.0
        %697 = vmatpush1.msra.mxu0 %v657
        %698 = vmatprep.subr.mxu0 0.0
        %699 = vmatpush1.msra.mxu0 %v656
        %700 = vmatprep.subr.mxu0 0.0
        %701 = vmatpush1.msra.mxu0 %v655
        %702 = vmatprep.subr.mxu0 0.0
        %703 = vmatpush1.msra.mxu0 %v654
        %704 = vmatprep.subr.mxu0 0.0
        %705 = vmatpush1.msra.mxu0 %v653
        %706 = vmatprep.subr.mxu0 0.0
        %707 = vmatpush1.msra.mxu0 %v652
        %708 = vmatprep.subr.mxu0 0.0
        %709 = vmatpush1.msra.mxu0 %v651
        %710 = vmatprep.subr.mxu0 0.0
        %711 = vmatpush1.msra.mxu0 %v650
        %712 = vmatprep.subr.mxu0 0.0
        %713 = vmatpush1.msra.mxu0 %v649
        %714 = vmatprep.subr.mxu0 0.0
        %715 = vmatpush1.msra.mxu0 %v648
        %716 = vmatprep.subr.mxu0 0.0
        %717 = vmatpush1.msra.mxu0 %v647
        %718 = vmatprep.subr.mxu0 0.0
        %719 = vmatpush1.msra.mxu0 %v646
        %720 = vmatprep.subr.mxu0 0.0
        %721 = vmatpush1.msra.mxu0 %v645
        %722 = vmatprep.subr.mxu0 0.0
        %723 = vmatpush1.msra.mxu0 %v644
        %724 = vmatprep.subr.mxu0 0.0
        %725 = vmatpush2.msra.mxu0 %v675
        %726 = vmatprep.subr.mxu0 0.0
        %727 = vmatpush2.msra.mxu0 %v674
        %728 = vmatprep.subr.mxu0 0.0
        %729 = vmatpush2.msra.mxu0 %v673
        %730 = vmatprep.subr.mxu0 0.0
        %731 = vmatpush2.msra.mxu0 %v672
        %732 = vmatprep.subr.mxu0 0.0
        %733 = vmatpush2.msra.mxu0 %v671
        %734 = vmatprep.subr.mxu0 0.0
        %735 = vmatpush2.msra.mxu0 %v670
        %736 = vmatprep.subr.mxu0 0.0
        %737 = vmatpush2.msra.mxu0 %v669
        %738 = vmatprep.subr.mxu0 0.0
        %739 = vmatpush2.msra.mxu0 %v668
        %740 = vmatprep.subr.mxu0 0.0
        %741 = vmatpush2.msra.mxu0 %v667
        %742 = vmatprep.subr.mxu0 0.0
        %743 = vmatpush2.msra.mxu0 %v666
        %744 = vmatprep.subr.mxu0 0.0
        %745 = vmatpush2.msra.mxu0 %v665
        %746 = vmatprep.subr.mxu0 0.0
        %747 = vmatpush2.msra.mxu0 %v664
        %748 = vmatprep.subr.mxu0 0.0
        %749 = vmatpush2.msra.mxu0 %v663
        %750 = vmatprep.subr.mxu0 0.0
        %751 = vmatpush2.msra.mxu0 %v662
        %752 = vmatprep.subr.mxu0 0.0
        %753 = vmatpush2.msra.mxu0 %v661
        %754 = vmatprep.subr.mxu0 0.0
        %755 = vmatpush2.msra.mxu0 %v660
        %756 = vmatprep.mubr.f32.mxu0 %v326
        %757 = vmatmul.mubr.f32.gmra.mxu0 0.0
        %v758 = vpop.f32.mrf.mxu0
        %v759 = vadd.f32 0.0, %v758
        %v760 = vpop.f32.mrf.mxu0
        %761 = vmatprep.mubr.f32.mxu0 %v327
        %762 = vmatmul.mubr.f32.gmra.mxu0 0.0
        %v763 = vpop.f32.mrf.mxu0
        %v764 = vadd.f32 0.0, %v763
        %v765 = vpop.f32.mrf.mxu0
        %766 = vmatprep.mubr.f32.mxu0 %v328
        %767 = vmatmul.mubr.f32.gmra.mxu0 %v326
        %v768 = vpop.f32.mrf.mxu0
        %v769 = vadd.f32 0.0, %v768
        %v770 = vpop.f32.mrf.mxu0
        %771 = vmatprep.mubr.f32.mxu0 %v329
        %772 = vmatmul.mubr.f32.gmra.mxu0 %v327
        %v773 = vpop.f32.mrf.mxu0
        %v774 = vadd.f32 0.0, %v773
        %v775 = vpop.f32.mrf.mxu0
        %776 = vmatprep.mubr.f32.mxu0 %v330
        %777 = vmatmul.mubr.f32.gmra.mxu0 %v328
        %v778 = vpop.f32.mrf.mxu0
        %v779 = vadd.f32 0.0, %v778
        %v780 = vpop.f32.mrf.mxu0
        %781 = vmatprep.mubr.f32.mxu0 %v331
        %782 = vmatmul.mubr.f32.gmra.mxu0 %v329
        %v783 = vpop.f32.mrf.mxu0
        %v784 = vadd.f32 0.0, %v783
        %v785 = vpop.f32.mrf.mxu0
        %786 = vmatprep.mubr.f32.mxu0 %v332
        %787 = vmatmul.mubr.f32.gmra.mxu0 %v330
        %v788 = vpop.f32.mrf.mxu0
        %v789 = vadd.f32 0.0, %v788
        %v790 = vpop.f32.mrf.mxu0
        %791 = vmatprep.mubr.f32.mxu0 %v333
        %792 = vmatmul.mubr.f32.gmra.mxu0 %v331
        %v793 = vpop.f32.mrf.mxu0
        %v794 = vadd.f32 0.0, %v793
        %v795 = vpop.f32.mrf.mxu0
        %796 = vmatprep.mubr.f32.mxu0 %v334
        %797 = vmatmul.mubr.f32.gmra.mxu0 %v332
        %v798 = vpop.f32.mrf.mxu0
        %v799 = vadd.f32 0.0, %v798
        %v800 = vpop.f32.mrf.mxu0
        %801 = vmatprep.mubr.f32.mxu0 %v335
        %802 = vmatmul.mubr.f32.gmra.mxu0 %v333
        %v803 = vpop.f32.mrf.mxu0
        %v804 = vadd.f32 0.0, %v803
        %v805 = vpop.f32.mrf.mxu0
        %806 = vmatprep.mubr.f32.mxu0 %v336
        %807 = vmatmul.mubr.f32.gmra.mxu0 %v334
        %v808 = vpop.f32.mrf.mxu0
        %v809 = vadd.f32 0.0, %v808
        %v810 = vpop.f32.mrf.mxu0
        %811 = vmatprep.mubr.f32.mxu0 %v337
        %812 = vmatmul.mubr.f32.gmra.mxu0 %v335
        %v813 = vpop.f32.mrf.mxu0
        %v814 = vadd.f32 0.0, %v813
        %v815 = vpop.f32.mrf.mxu0
        %816 = vmatprep.mubr.f32.mxu0 %v338
        %817 = vmatmul.mubr.f32.gmra.mxu0 %v336
        %v818 = vpop.f32.mrf.mxu0
        %v819 = vadd.f32 0.0, %v818
        %v820 = vpop.f32.mrf.mxu0
        %821 = vmatprep.mubr.f32.mxu0 %v339
        %822 = vmatmul.mubr.f32.gmra.mxu0 %v337
        %v823 = vpop.f32.mrf.mxu0
        %v824 = vadd.f32 0.0, %v823
        %v825 = vpop.f32.mrf.mxu0
        %826 = vmatprep.mubr.f32.mxu0 %v340
        %827 = vmatmul.mubr.f32.gmra.mxu0 %v338
        %v828 = vpop.f32.mrf.mxu0
        %v829 = vadd.f32 0.0, %v828
        %v830 = vpop.f32.mrf.mxu0
        %831 = vmatprep.mubr.f32.mxu0 %v341
        %832 = vmatmul.mubr.f32.gmra.mxu0 %v339
        %v833 = vpop.f32.mrf.mxu0
        %v834 = vadd.f32 0.0, %v833
        %v835 = vpop.f32.mrf.mxu0
        %836 = vmatprep.mubr.f32.mxu0 %v342
        %837 = vmatmul.mubr.f32.gmra.mxu0 %v340
        %v838 = vpop.f32.mrf.mxu0
        %v839 = vadd.f32 0.0, %v838
        %v840 = vpop.f32.mrf.mxu0
        %841 = vmatprep.mubr.f32.mxu0 %v343
        %842 = vmatmul.mubr.f32.gmra.mxu0 %v341
        %v843 = vpop.f32.mrf.mxu0
        %v844 = vadd.f32 0.0, %v843
        %v845 = vpop.f32.mrf.mxu0
        %846 = vmatprep.mubr.f32.mxu0 %v344
        %847 = vmatmul.mubr.f32.gmra.mxu0 %v342
        %v848 = vpop.f32.mrf.mxu0
        %v849 = vadd.f32 0.0, %v848
        %v850 = vpop.f32.mrf.mxu0
        %851 = vmatprep.mubr.f32.mxu0 %v345
        %852 = vmatmul.mubr.f32.gmra.mxu0 %v343
        %v853 = vpop.f32.mrf.mxu0
        %v854 = vadd.f32 0.0, %v853
        %v855 = vpop.f32.mrf.mxu0
        %856 = vmatprep.mubr.f32.mxu0 %v346
        %857 = vmatmul.mubr.f32.gmra.mxu0 %v344
        %v858 = vpop.f32.mrf.mxu0
        %v859 = vadd.f32 0.0, %v858
        %v860 = vpop.f32.mrf.mxu0
        %861 = vmatprep.mubr.f32.mxu0 %v347
        %862 = vmatmul.mubr.f32.gmra.mxu0 %v345
        %v863 = vpop.f32.mrf.mxu0
        %v864 = vadd.f32 0.0, %v863
        %v865 = vpop.f32.mrf.mxu0
        %866 = vmatprep.mubr.f32.mxu0 %v348
        %867 = vmatmul.mubr.f32.gmra.mxu0 %v346
        %v868 = vpop.f32.mrf.mxu0
        %v869 = vadd.f32 0.0, %v868
        %v870 = vpop.f32.mrf.mxu0
        %871 = vmatprep.mubr.f32.mxu0 %v349
        %872 = vmatmul.mubr.f32.gmra.mxu0 %v347
        %v873 = vpop.f32.mrf.mxu0
        %v874 = vadd.f32 0.0, %v873
        %v875 = vpop.f32.mrf.mxu0
        %876 = vmatprep.mubr.f32.mxu0 %v350
        %877 = vmatmul.mubr.f32.gmra.mxu0 %v348
        %v878 = vpop.f32.mrf.mxu0
        %v879 = vadd.f32 0.0, %v878
        %v880 = vpop.f32.mrf.mxu0
        %881 = vmatprep.mubr.f32.mxu0 %v351
        %882 = vmatmul.mubr.f32.gmra.mxu0 %v349
        %v883 = vpop.f32.mrf.mxu0
        %v884 = vadd.f32 0.0, %v883
        %v885 = vpop.f32.mrf.mxu0
        %886 = vmatprep.mubr.f32.mxu0 %v352
        %887 = vmatmul.mubr.f32.gmra.mxu0 %v350
        %v888 = vpop.f32.mrf.mxu0
        %v889 = vadd.f32 0.0, %v888
        %v890 = vpop.f32.mrf.mxu0
        %891 = vmatprep.mubr.f32.mxu0 %v353
        %892 = vmatmul.mubr.f32.gmra.mxu0 %v351
        %v893 = vpop.f32.mrf.mxu0
        %v894 = vadd.f32 0.0, %v893
        %v895 = vpop.f32.mrf.mxu0
        %896 = vmatprep.mubr.f32.mxu0 %v354
        %897 = vmatmul.mubr.f32.gmra.mxu0 %v352
        %v898 = vpop.f32.mrf.mxu0
        %v899 = vadd.f32 0.0, %v898
        %v900 = vpop.f32.mrf.mxu0
        %901 = vmatprep.mubr.f32.mxu0 %v355
        %902 = vmatmul.mubr.f32.gmra.mxu0 %v353
        %v903 = vpop.f32.mrf.mxu0
        %v904 = vadd.f32 0.0, %v903
        %v905 = vpop.f32.mrf.mxu0
        %906 = vmatprep.mubr.f32.mxu0 %v356
        %907 = vmatmul.mubr.f32.gmra.mxu0 %v354
        %v908 = vpop.f32.mrf.mxu0
        %v909 = vadd.f32 0.0, %v908
        %v910 = vpop.f32.mrf.mxu0
        %911 = vmatprep.mubr.f32.mxu0 %v357
        %912 = vmatmul.mubr.f32.gmra.mxu0 %v355
        %v913 = vpop.f32.mrf.mxu0
        %v914 = vadd.f32 0.0, %v913
        %v915 = vpop.f32.mrf.mxu0
        %916 = vdwg.mxu0
        %917 = vmatprep.subr.mxu0 0.0
        %918 = vmatpush1.msra.mxu0 %v691
        %919 = vmatprep.subr.mxu0 0.0
        %920 = vmatpush1.msra.mxu0 %v690
        %921 = vmatprep.subr.mxu0 0.0
        %922 = vmatpush1.msra.mxu0 %v689
        %923 = vmatprep.subr.mxu0 0.0
        %924 = vmatpush1.msra.mxu0 %v688
        %925 = vmatprep.subr.mxu0 0.0
        %926 = vmatpush1.msra.mxu0 %v687
        %927 = vmatprep.subr.mxu0 0.0
        %928 = vmatpush1.msra.mxu0 %v686
        %929 = vmatprep.subr.mxu0 0.0
        %930 = vmatpush1.msra.mxu0 %v685
        %931 = vmatprep.subr.mxu0 0.0
        %932 = vmatpush1.msra.mxu0 %v684
        %933 = vmatprep.subr.mxu0 0.0
        %934 = vmatpush1.msra.mxu0 %v683
        %935 = vmatprep.subr.mxu0 0.0
        %936 = vmatpush1.msra.mxu0 %v682
        %937 = vmatprep.subr.mxu0 0.0
        %938 = vmatpush1.msra.mxu0 %v681
        %939 = vmatprep.subr.mxu0 0.0
        %940 = vmatpush1.msra.mxu0 %v680
        %941 = vmatprep.subr.mxu0 0.0
        %942 = vmatpush1.msra.mxu0 %v679
        %943 = vmatprep.subr.mxu0 0.0
        %944 = vmatpush1.msra.mxu0 %v678
        %945 = vmatprep.subr.mxu0 0.0
        %946 = vmatpush1.msra.mxu0 %v677
        %947 = vmatprep.subr.mxu0 0.0
        %948 = vmatpush1.msra.mxu0 %v676
        %949 = vmatprep.subr.mxu0 0.0
        %950 = vmatpush2.msra.mxu0 0.0
        %951 = vmatprep.subr.mxu0 0.0
        %952 = vmatpush2.msra.mxu0 0.0
        %953 = vmatprep.subr.mxu0 0.0
        %954 = vmatpush2.msra.mxu0 0.0
        %955 = vmatprep.subr.mxu0 0.0
        %956 = vmatpush2.msra.mxu0 0.0
        %957 = vmatprep.subr.mxu0 0.0
        %958 = vmatpush2.msra.mxu0 0.0
        %959 = vmatprep.subr.mxu0 0.0
        %960 = vmatpush2.msra.mxu0 0.0
        %961 = vmatprep.subr.mxu0 0.0
        %962 = vmatpush2.msra.mxu0 0.0
        %963 = vmatprep.subr.mxu0 0.0
        %964 = vmatpush2.msra.mxu0 0.0
        %965 = vmatprep.subr.mxu0 0.0
        %966 = vmatpush2.msra.mxu0 0.0
        %967 = vmatprep.subr.mxu0 0.0
        %968 = vmatpush2.msra.mxu0 0.0
        %969 = vmatprep.subr.mxu0 0.0
        %970 = vmatpush2.msra.mxu0 0.0
        %971 = vmatprep.subr.mxu0 0.0
        %972 = vmatpush2.msra.mxu0 0.0
        %973 = vmatprep.subr.mxu0 0.0
        %974 = vmatpush2.msra.mxu0 0.0
        %975 = vmatprep.subr.mxu0 0.0
        %976 = vmatpush2.msra.mxu0 0.0
        %977 = vmatprep.subr.mxu0 0.0
        %978 = vmatpush2.msra.mxu0 0.0
        %979 = vmatprep.subr.mxu0 0.0
        %980 = vmatpush2.msra.mxu0 0.0
        %981 = vmatprep.mubr.f32.mxu0 0.0
        %982 = vmatmul.mubr.f32.gmra.mxu0 %v328
        %v983 = vpop.f32.mrf.mxu0
        %v984 = vadd.f32 %v759, %v983
        %v985 = vpop.f32.mrf.mxu0
        %986 = vmatprep.mubr.f32.mxu0 0.0
        %987 = vmatmul.mubr.f32.gmra.mxu0 %v329
        %v988 = vpop.f32.mrf.mxu0
        %v989 = vadd.f32 %v764, %v988
        %v990 = vpop.f32.mrf.mxu0
        %991 = vmatprep.mubr.f32.mxu0 0.0
        %992 = vmatmul.mubr.f32.gmra.mxu0 %v330
        %v993 = vpop.f32.mrf.mxu0
        %v994 = vadd.f32 %v769, %v993
        %v995 = vpop.f32.mrf.mxu0
        %996 = vmatprep.mubr.f32.mxu0 0.0
        %997 = vmatmul.mubr.f32.gmra.mxu0 %v331
        %v998 = vpop.f32.mrf.mxu0
        %v999 = vadd.f32 %v774, %v998
        %v1000 = vpop.f32.mrf.mxu0
        %1001 = vmatprep.mubr.f32.mxu0 0.0
        %1002 = vmatmul.mubr.f32.gmra.mxu0 %v332
        %v1003 = vpop.f32.mrf.mxu0
        %v1004 = vadd.f32 %v779, %v1003
        %v1005 = vpop.f32.mrf.mxu0
        %1006 = vmatprep.mubr.f32.mxu0 0.0
        %1007 = vmatmul.mubr.f32.gmra.mxu0 %v333
        %v1008 = vpop.f32.mrf.mxu0
        %v1009 = vadd.f32 %v784, %v1008
        %v1010 = vpop.f32.mrf.mxu0
        %1011 = vmatprep.mubr.f32.mxu0 0.0
        %1012 = vmatmul.mubr.f32.gmra.mxu0 %v334
        %v1013 = vpop.f32.mrf.mxu0
        %v1014 = vadd.f32 %v789, %v1013
        %v1015 = vpop.f32.mrf.mxu0
        %1016 = vmatprep.mubr.f32.mxu0 0.0
        %1017 = vmatmul.mubr.f32.gmra.mxu0 %v335
        %v1018 = vpop.f32.mrf.mxu0
        %v1019 = vadd.f32 %v794, %v1018
        %v1020 = vpop.f32.mrf.mxu0
        %1021 = vmatprep.mubr.f32.mxu0 0.0
        %1022 = vmatmul.mubr.f32.gmra.mxu0 %v336
        %v1023 = vpop.f32.mrf.mxu0
        %v1024 = vadd.f32 %v799, %v1023
        %v1025 = vpop.f32.mrf.mxu0
        %1026 = vmatprep.mubr.f32.mxu0 0.0
        %1027 = vmatmul.mubr.f32.gmra.mxu0 %v337
        %v1028 = vpop.f32.mrf.mxu0
        %v1029 = vadd.f32 %v804, %v1028
        %v1030 = vpop.f32.mrf.mxu0
        %1031 = vmatprep.mubr.f32.mxu0 0.0
        %1032 = vmatmul.mubr.f32.gmra.mxu0 %v338
        %v1033 = vpop.f32.mrf.mxu0
        %v1034 = vadd.f32 %v809, %v1033
        %v1035 = vpop.f32.mrf.mxu0
        %1036 = vmatprep.mubr.f32.mxu0 0.0
        %1037 = vmatmul.mubr.f32.gmra.mxu0 %v339
        %v1038 = vpop.f32.mrf.mxu0
        %v1039 = vadd.f32 %v814, %v1038
        %v1040 = vpop.f32.mrf.mxu0
        %1041 = vmatprep.mubr.f32.mxu0 0.0
        %1042 = vmatmul.mubr.f32.gmra.mxu0 %v340
        %v1043 = vpop.f32.mrf.mxu0
        %v1044 = vadd.f32 %v819, %v1043
        %v1045 = vpop.f32.mrf.mxu0
        %1046 = vmatprep.mubr.f32.mxu0 0.0
        %1047 = vmatmul.mubr.f32.gmra.mxu0 %v341
        %v1048 = vpop.f32.mrf.mxu0
        %v1049 = vadd.f32 %v824, %v1048
        %v1050 = vpop.f32.mrf.mxu0
        %1051 = vmatprep.mubr.f32.mxu0 0.0
        %1052 = vmatmul.mubr.f32.gmra.mxu0 %v342
        %v1053 = vpop.f32.mrf.mxu0
        %v1054 = vadd.f32 %v829, %v1053
        %v1055 = vpop.f32.mrf.mxu0
        %1056 = vmatprep.mubr.f32.mxu0 0.0
        %1057 = vmatmul.mubr.f32.gmra.mxu0 %v343
        %v1058 = vpop.f32.mrf.mxu0
        %v1059 = vadd.f32 %v834, %v1058
        %v1060 = vpop.f32.mrf.mxu0
        %1061 = vmatprep.mubr.f32.mxu0 0.0
        %1062 = vmatmul.mubr.f32.gmra.mxu0 %v344
        %v1063 = vpop.f32.mrf.mxu0
        %v1064 = vadd.f32 %v839, %v1063
        %v1065 = vpop.f32.mrf.mxu0
        %1066 = vmatprep.mubr.f32.mxu0 0.0
        %1067 = vmatmul.mubr.f32.gmra.mxu0 %v345
        %v1068 = vpop.f32.mrf.mxu0
        %v1069 = vadd.f32 %v844, %v1068
        %v1070 = vpop.f32.mrf.mxu0
        %1071 = vmatprep.mubr.f32.mxu0 0.0
        %1072 = vmatmul.mubr.f32.gmra.mxu0 %v346
        %v1073 = vpop.f32.mrf.mxu0
        %v1074 = vadd.f32 %v849, %v1073
        %v1075 = vpop.f32.mrf.mxu0
        %1076 = vmatprep.mubr.f32.mxu0 0.0
        %1077 = vmatmul.mubr.f32.gmra.mxu0 %v347
        %v1078 = vpop.f32.mrf.mxu0
        %v1079 = vadd.f32 %v854, %v1078
        %v1080 = vpop.f32.mrf.mxu0
        %1081 = vmatprep.mubr.f32.mxu0 0.0
        %1082 = vmatmul.mubr.f32.gmra.mxu0 %v348
        %v1083 = vpop.f32.mrf.mxu0
        %v1084 = vadd.f32 %v859, %v1083
        %v1085 = vpop.f32.mrf.mxu0
        %1086 = vmatprep.mubr.f32.mxu0 0.0
        %1087 = vmatmul.mubr.f32.gmra.mxu0 %v349
        %v1088 = vpop.f32.mrf.mxu0
        %v1089 = vadd.f32 %v864, %v1088
        %v1090 = vpop.f32.mrf.mxu0
        %1091 = vmatprep.mubr.f32.mxu0 0.0
        %1092 = vmatmul.mubr.f32.gmra.mxu0 %v350
        %v1093 = vpop.f32.mrf.mxu0
        %v1094 = vadd.f32 %v869, %v1093
        %v1095 = vpop.f32.mrf.mxu0
        %1096 = vmatprep.mubr.f32.mxu0 0.0
        %1097 = vmatmul.mubr.f32.gmra.mxu0 %v351
        %v1098 = vpop.f32.mrf.mxu0
        %v1099 = vadd.f32 %v874, %v1098
        %v1100 = vpop.f32.mrf.mxu0
        %1101 = vmatprep.mubr.f32.mxu0 0.0
        %1102 = vmatmul.mubr.f32.gmra.mxu0 %v352
        %v1103 = vpop.f32.mrf.mxu0
        %v1104 = vadd.f32 %v879, %v1103
        %v1105 = vpop.f32.mrf.mxu0
        %1106 = vmatprep.mubr.f32.mxu0 0.0
        %1107 = vmatmul.mubr.f32.gmra.mxu0 %v353
        %v1108 = vpop.f32.mrf.mxu0
        %v1109 = vadd.f32 %v884, %v1108
        %v1110 = vpop.f32.mrf.mxu0
        %1111 = vmatprep.mubr.f32.mxu0 0.0
        %1112 = vmatmul.mubr.f32.gmra.mxu0 %v354
        %v1113 = vpop.f32.mrf.mxu0
        %v1114 = vadd.f32 %v889, %v1113
        %v1115 = vpop.f32.mrf.mxu0
        %1116 = vmatprep.mubr.f32.mxu0 0.0
        %1117 = vmatmul.mubr.f32.gmra.mxu0 %v355
        %v1118 = vpop.f32.mrf.mxu0
        %v1119 = vadd.f32 %v894, %v1118
        %v1120 = vpop.f32.mrf.mxu0
        %1121 = vmatprep.mubr.f32.mxu0 0.0
        %1122 = vmatmul.mubr.f32.gmra.mxu0 %v356
        %v1123 = vpop.f32.mrf.mxu0
        %v1124 = vadd.f32 %v899, %v1123
        %v1125 = vpop.f32.mrf.mxu0
        %1126 = vmatprep.mubr.f32.mxu0 0.0
        %1127 = vmatmul.mubr.f32.gmra.mxu0 %v357
        %v1128 = vpop.f32.mrf.mxu0
        %v1129 = vadd.f32 %v904, %v1128
        %v1130 = vpop.f32.mrf.mxu0
        %1131 = vmatprep.mubr.f32.mxu0 0.0
        %1132 = vmatmul.mubr.f32.gmra.mxu0 0.0
        %v1133 = vpop.f32.mrf.mxu0
        %v1134 = vadd.f32 %v909, %v1133
        %v1135 = vpop.f32.mrf.mxu0
        %1136 = vmatprep.mubr.f32.mxu0 0.0
        %1137 = vmatmul.mubr.f32.gmra.mxu0 0.0
        %v1138 = vpop.f32.mrf.mxu0
        %v1139 = vadd.f32 %v914, %v1138
        %v1140 = vpop.f32.mrf.mxu0
        %1141 = vdwg.mxu0
        %1142 = vmatprep.subr.mxu0 0.0
        %1143 = vmatpush1.msra.mxu0 %v610
        %1144 = vmatprep.subr.mxu0 0.0
        %1145 = vmatpush1.msra.mxu0 %v609
        %1146 = vmatprep.subr.mxu0 0.0
        %1147 = vmatpush1.msra.mxu0 %v608
        %1148 = vmatprep.subr.mxu0 0.0
        %1149 = vmatpush1.msra.mxu0 %v607
        %1150 = vmatprep.subr.mxu0 0.0
        %1151 = vmatpush1.msra.mxu0 %v606
        %1152 = vmatprep.subr.mxu0 0.0
        %1153 = vmatpush1.msra.mxu0 %v605
        %1154 = vmatprep.subr.mxu0 0.0
        %1155 = vmatpush1.msra.mxu0 %v604
        %1156 = vmatprep.subr.mxu0 0.0
        %1157 = vmatpush1.msra.mxu0 %v603
        %1158 = vmatprep.subr.mxu0 0.0
        %1159 = vmatpush1.msra.mxu0 %v602
        %1160 = vmatprep.subr.mxu0 0.0
        %1161 = vmatpush1.msra.mxu0 %v601
        %1162 = vmatprep.subr.mxu0 0.0
        %1163 = vmatpush1.msra.mxu0 %v600
        %1164 = vmatprep.subr.mxu0 0.0
        %1165 = vmatpush1.msra.mxu0 %v599
        %1166 = vmatprep.subr.mxu0 0.0
        %1167 = vmatpush1.msra.mxu0 %v598
        %1168 = vmatprep.subr.mxu0 0.0
        %1169 = vmatpush1.msra.mxu0 %v597
        %1170 = vmatprep.subr.mxu0 0.0
        %1171 = vmatpush1.msra.mxu0 %v596
        %1172 = vmatprep.subr.mxu0 0.0
        %1173 = vmatpush1.msra.mxu0 %v595
        %1174 = vmatprep.subr.mxu0 0.0
        %1175 = vmatpush2.msra.mxu0 %v626
        %1176 = vmatprep.subr.mxu0 0.0
        %1177 = vmatpush2.msra.mxu0 %v625
        %1178 = vmatprep.subr.mxu0 0.0
        %1179 = vmatpush2.msra.mxu0 %v624
        %1180 = vmatprep.subr.mxu0 0.0
        %1181 = vmatpush2.msra.mxu0 %v623
        %1182 = vmatprep.subr.mxu0 0.0
        %1183 = vmatpush2.msra.mxu0 %v622
        %1184 = vmatprep.subr.mxu0 0.0
        %1185 = vmatpush2.msra.mxu0 %v621
        %1186 = vmatprep.subr.mxu0 0.0
        %1187 = vmatpush2.msra.mxu0 %v620
        %1188 = vmatprep.subr.mxu0 0.0
        %1189 = vmatpush2.msra.mxu0 %v619
        %1190 = vmatprep.subr.mxu0 0.0
        %1191 = vmatpush2.msra.mxu0 %v618
        %1192 = vmatprep.subr.mxu0 0.0
        %1193 = vmatpush2.msra.mxu0 %v617
        %1194 = vmatprep.subr.mxu0 0.0
        %1195 = vmatpush2.msra.mxu0 %v616
        %1196 = vmatprep.subr.mxu0 0.0
        %1197 = vmatpush2.msra.mxu0 %v615
        %1198 = vmatprep.subr.mxu0 0.0
        %1199 = vmatpush2.msra.mxu0 %v614
        %1200 = vmatprep.subr.mxu0 0.0
        %1201 = vmatpush2.msra.mxu0 %v613
        %1202 = vmatprep.subr.mxu0 0.0
        %1203 = vmatpush2.msra.mxu0 %v612
        %1204 = vmatprep.subr.mxu0 0.0
        %1205 = vmatpush2.msra.mxu0 %v611
        %1206 = vmatprep.mubr.f32.mxu0 %v477
        %1207 = vmatmul.mubr.f32.gmra.mxu0 %v476
        %v1208 = vpop.f32.mrf.mxu0
        %v1209 = vadd.f32 %v984, %v1208
        %v1210 = vpop.f32.mrf.mxu0
        %1211 = vmatprep.mubr.f32.mxu0 %v396
        %1212 = vmatmul.mubr.f32.gmra.mxu0 %v393
        %v1213 = vpop.f32.mrf.mxu0
        %v1214 = vadd.f32 %v989, %v1213
        %v1215 = vpop.f32.mrf.mxu0
        %1216 = vmatprep.mubr.f32.mxu0 %v478
        %1217 = vmatmul.mubr.f32.gmra.mxu0 %v477
        %v1218 = vpop.f32.mrf.mxu0
        %v1219 = vadd.f32 %v994, %v1218
        %v1220 = vpop.f32.mrf.mxu0
        %1221 = vmatprep.mubr.f32.mxu0 %v399
        %1222 = vmatmul.mubr.f32.gmra.mxu0 %v396
        %v1223 = vpop.f32.mrf.mxu0
        %v1224 = vadd.f32 %v999, %v1223
        %v1225 = vpop.f32.mrf.mxu0
        %1226 = vmatprep.mubr.f32.mxu0 %v479
        %1227 = vmatmul.mubr.f32.gmra.mxu0 %v478
        %v1228 = vpop.f32.mrf.mxu0
        %v1229 = vadd.f32 %v1004, %v1228
        %v1230 = vpop.f32.mrf.mxu0
        %1231 = vmatprep.mubr.f32.mxu0 %v402
        %1232 = vmatmul.mubr.f32.gmra.mxu0 %v399
        %v1233 = vpop.f32.mrf.mxu0
        %v1234 = vadd.f32 %v1009, %v1233
        %v1235 = vpop.f32.mrf.mxu0
        %1236 = vmatprep.mubr.f32.mxu0 %v480
        %1237 = vmatmul.mubr.f32.gmra.mxu0 %v479
        %v1238 = vpop.f32.mrf.mxu0
        %v1239 = vadd.f32 %v1014, %v1238
        %v1240 = vpop.f32.mrf.mxu0
        %1241 = vmatprep.mubr.f32.mxu0 %v405
        %1242 = vmatmul.mubr.f32.gmra.mxu0 %v402
        %v1243 = vpop.f32.mrf.mxu0
        %v1244 = vadd.f32 %v1019, %v1243
        %v1245 = vpop.f32.mrf.mxu0
        %1246 = vmatprep.mubr.f32.mxu0 %v481
        %1247 = vmatmul.mubr.f32.gmra.mxu0 %v480
        %v1248 = vpop.f32.mrf.mxu0
        %v1249 = vadd.f32 %v1024, %v1248
        %v1250 = vpop.f32.mrf.mxu0
        %1251 = vmatprep.mubr.f32.mxu0 %v408
        %1252 = vmatmul.mubr.f32.gmra.mxu0 %v405
        %v1253 = vpop.f32.mrf.mxu0
        %v1254 = vadd.f32 %v1029, %v1253
        %v1255 = vpop.f32.mrf.mxu0
        %1256 = vmatprep.mubr.f32.mxu0 %v482
        %1257 = vmatmul.mubr.f32.gmra.mxu0 %v481
        %v1258 = vpop.f32.mrf.mxu0
        %v1259 = vadd.f32 %v1034, %v1258
        %v1260 = vpop.f32.mrf.mxu0
        %1261 = vmatprep.mubr.f32.mxu0 %v411
        %1262 = vmatmul.mubr.f32.gmra.mxu0 %v408
        %v1263 = vpop.f32.mrf.mxu0
        %v1264 = vadd.f32 %v1039, %v1263
        %v1265 = vpop.f32.mrf.mxu0
        %1266 = vmatprep.mubr.f32.mxu0 %v483
        %1267 = vmatmul.mubr.f32.gmra.mxu0 %v482
        %v1268 = vpop.f32.mrf.mxu0
        %v1269 = vadd.f32 %v1044, %v1268
        %v1270 = vpop.f32.mrf.mxu0
        %1271 = vmatprep.mubr.f32.mxu0 %v414
        %1272 = vmatmul.mubr.f32.gmra.mxu0 %v411
        %v1273 = vpop.f32.mrf.mxu0
        %v1274 = vadd.f32 %v1049, %v1273
        %v1275 = vpop.f32.mrf.mxu0
        %1276 = vmatprep.mubr.f32.mxu0 %v484
        %1277 = vmatmul.mubr.f32.gmra.mxu0 %v483
        %v1278 = vpop.f32.mrf.mxu0
        %v1279 = vadd.f32 %v1054, %v1278
        %v1280 = vpop.f32.mrf.mxu0
        %1281 = vmatprep.mubr.f32.mxu0 %v417
        %1282 = vmatmul.mubr.f32.gmra.mxu0 %v414
        %v1283 = vpop.f32.mrf.mxu0
        %v1284 = vadd.f32 %v1059, %v1283
        %v1285 = vpop.f32.mrf.mxu0
        %1286 = vmatprep.mubr.f32.mxu0 %v485
        %1287 = vmatmul.mubr.f32.gmra.mxu0 %v484
        %v1288 = vpop.f32.mrf.mxu0
        %v1289 = vadd.f32 %v1064, %v1288
        %v1290 = vpop.f32.mrf.mxu0
        %1291 = vmatprep.mubr.f32.mxu0 %v420
        %1292 = vmatmul.mubr.f32.gmra.mxu0 %v417
        %v1293 = vpop.f32.mrf.mxu0
        %v1294 = vadd.f32 %v1069, %v1293
        %v1295 = vpop.f32.mrf.mxu0
        %1296 = vmatprep.mubr.f32.mxu0 %v486
        %1297 = vmatmul.mubr.f32.gmra.mxu0 %v485
        %v1298 = vpop.f32.mrf.mxu0
        %v1299 = vadd.f32 %v1074, %v1298
        %v1300 = vpop.f32.mrf.mxu0
        %1301 = vmatprep.mubr.f32.mxu0 %v423
        %1302 = vmatmul.mubr.f32.gmra.mxu0 %v420
        %v1303 = vpop.f32.mrf.mxu0
        %v1304 = vadd.f32 %v1079, %v1303
        %v1305 = vpop.f32.mrf.mxu0
        %1306 = vmatprep.mubr.f32.mxu0 %v487
        %1307 = vmatmul.mubr.f32.gmra.mxu0 %v486
        %v1308 = vpop.f32.mrf.mxu0
        %v1309 = vadd.f32 %v1084, %v1308
        %v1310 = vpop.f32.mrf.mxu0
        %1311 = vmatprep.mubr.f32.mxu0 %v426
        %1312 = vmatmul.mubr.f32.gmra.mxu0 %v423
        %v1313 = vpop.f32.mrf.mxu0
        %v1314 = vadd.f32 %v1089, %v1313
        %v1315 = vpop.f32.mrf.mxu0
        %1316 = vmatprep.mubr.f32.mxu0 %v488
        %1317 = vmatmul.mubr.f32.gmra.mxu0 %v487
        %v1318 = vpop.f32.mrf.mxu0
        %v1319 = vadd.f32 %v1094, %v1318
        %v1320 = vpop.f32.mrf.mxu0
        %1321 = vmatprep.mubr.f32.mxu0 %v429
        %1322 = vmatmul.mubr.f32.gmra.mxu0 %v426
        %v1323 = vpop.f32.mrf.mxu0
        %v1324 = vadd.f32 %v1099, %v1323
        %v1325 = vpop.f32.mrf.mxu0
        %1326 = vmatprep.mubr.f32.mxu0 %v489
        %1327 = vmatmul.mubr.f32.gmra.mxu0 %v488
        %v1328 = vpop.f32.mrf.mxu0
        %v1329 = vadd.f32 %v1104, %v1328
        %v1330 = vpop.f32.mrf.mxu0
        %1331 = vmatprep.mubr.f32.mxu0 %v432
        %1332 = vmatmul.mubr.f32.gmra.mxu0 %v429
        %v1333 = vpop.f32.mrf.mxu0
        %v1334 = vadd.f32 %v1109, %v1333
        %v1335 = vpop.f32.mrf.mxu0
        %1336 = vmatprep.mubr.f32.mxu0 %v490
        %1337 = vmatmul.mubr.f32.gmra.mxu0 %v489
        %v1338 = vpop.f32.mrf.mxu0
        %v1339 = vadd.f32 %v1114, %v1338
        %v1340 = vpop.f32.mrf.mxu0
        %1341 = vmatprep.mubr.f32.mxu0 %v435
        %1342 = vmatmul.mubr.f32.gmra.mxu0 %v432
        %v1343 = vpop.f32.mrf.mxu0
        %v1344 = vadd.f32 %v1119, %v1343
        %v1345 = vpop.f32.mrf.mxu0
        %1346 = vmatprep.mubr.f32.mxu0 %v491
        %1347 = vmatmul.mubr.f32.gmra.mxu0 %v490
        %v1348 = vpop.f32.mrf.mxu0
        %v1349 = vadd.f32 %v1124, %v1348
        %v1350 = vpop.f32.mrf.mxu0
        %1351 = vmatprep.mubr.f32.mxu0 %v438
        %1352 = vmatmul.mubr.f32.gmra.mxu0 %v435
        %v1353 = vpop.f32.mrf.mxu0
        %v1354 = vadd.f32 %v1129, %v1353
        %v1355 = vpop.f32.mrf.mxu0
        %1356 = vmatprep.mubr.f32.mxu0 %v492
        %1357 = vmatmul.mubr.f32.gmra.mxu0 %v491
        %v1358 = vpop.f32.mrf.mxu0
        %v1359 = vadd.f32 %v1134, %v1358
        %v1360 = vpop.f32.mrf.mxu0
        %1361 = vmatprep.mubr.f32.mxu0 %v441
        %1362 = vmatmul.mubr.f32.gmra.mxu0 %v438
        %v1363 = vpop.f32.mrf.mxu0
        %v1364 = vadd.f32 %v1139, %v1363
        %v1365 = vpop.f32.mrf.mxu0
        %1366 = vdwg.mxu0
        %1367 = vmatprep.subr.mxu0 0.0
        %1368 = vmatpush1.msra.mxu0 %v642
        %1369 = vmatprep.subr.mxu0 0.0
        %1370 = vmatpush1.msra.mxu0 %v641
        %1371 = vmatprep.subr.mxu0 0.0
        %1372 = vmatpush1.msra.mxu0 %v640
        %1373 = vmatprep.subr.mxu0 0.0
        %1374 = vmatpush1.msra.mxu0 %v639
        %1375 = vmatprep.subr.mxu0 0.0
        %1376 = vmatpush1.msra.mxu0 %v638
        %1377 = vmatprep.subr.mxu0 0.0
        %1378 = vmatpush1.msra.mxu0 %v637
        %1379 = vmatprep.subr.mxu0 0.0
        %1380 = vmatpush1.msra.mxu0 %v636
        %1381 = vmatprep.subr.mxu0 0.0
        %1382 = vmatpush1.msra.mxu0 %v635
        %1383 = vmatprep.subr.mxu0 0.0
        %1384 = vmatpush1.msra.mxu0 %v634
        %1385 = vmatprep.subr.mxu0 0.0
        %1386 = vmatpush1.msra.mxu0 %v633
        %1387 = vmatprep.subr.mxu0 0.0
        %1388 = vmatpush1.msra.mxu0 %v632
        %1389 = vmatprep.subr.mxu0 0.0
        %1390 = vmatpush1.msra.mxu0 %v631
        %1391 = vmatprep.subr.mxu0 0.0
        %1392 = vmatpush1.msra.mxu0 %v630
        %1393 = vmatprep.subr.mxu0 0.0
        %1394 = vmatpush1.msra.mxu0 %v629
        %1395 = vmatprep.subr.mxu0 0.0
        %1396 = vmatpush1.msra.mxu0 %v628
        %1397 = vmatprep.subr.mxu0 0.0
        %1398 = vmatpush1.msra.mxu0 %v627
        %1399 = vmatprep.subr.mxu0 0.0
        %1400 = vmatpush2.msra.mxu0 0.0
        %1401 = vmatprep.subr.mxu0 0.0
        %1402 = vmatpush2.msra.mxu0 0.0
        %1403 = vmatprep.subr.mxu0 0.0
        %1404 = vmatpush2.msra.mxu0 0.0
        %1405 = vmatprep.subr.mxu0 0.0
        %1406 = vmatpush2.msra.mxu0 0.0
        %1407 = vmatprep.subr.mxu0 0.0
        %1408 = vmatpush2.msra.mxu0 0.0
        %1409 = vmatprep.subr.mxu0 0.0
        %1410 = vmatpush2.msra.mxu0 0.0
        %1411 = vmatprep.subr.mxu0 0.0
        %1412 = vmatpush2.msra.mxu0 0.0
        %1413 = vmatprep.subr.mxu0 0.0
        %1414 = vmatpush2.msra.mxu0 0.0
        %1415 = vmatprep.subr.mxu0 0.0
        %1416 = vmatpush2.msra.mxu0 0.0
        %1417 = vmatprep.subr.mxu0 0.0
        %1418 = vmatpush2.msra.mxu0 0.0
        %1419 = vmatprep.subr.mxu0 0.0
        %1420 = vmatpush2.msra.mxu0 0.0
        %1421 = vmatprep.subr.mxu0 0.0
        %1422 = vmatpush2.msra.mxu0 0.0
        %1423 = vmatprep.subr.mxu0 0.0
        %1424 = vmatpush2.msra.mxu0 0.0
        %1425 = vmatprep.subr.mxu0 0.0
        %1426 = vmatpush2.msra.mxu0 0.0
        %1427 = vmatprep.subr.mxu0 0.0
        %1428 = vmatpush2.msra.mxu0 0.0
        %1429 = vmatprep.subr.mxu0 0.0
        %1430 = vmatpush2.msra.mxu0 0.0
        %1431 = vmatprep.mubr.f32.mxu0 0.0
        %1432 = vmatmul.mubr.f32.gmra.mxu0 %v478
        %v1433 = vpop.f32.mrf.mxu0
        %v1434 = vadd.f32 %v1209, %v1433
        %v1435 = vpop.f32.mrf.mxu0
        %1436 = vmatprep.mubr.f32.mxu0 0.0
        %1437 = vmatmul.mubr.f32.gmra.mxu0 %v399
        %v1438 = vpop.f32.mrf.mxu0
        %v1439 = vadd.f32 %v1214, %v1438
        %v1440 = vpop.f32.mrf.mxu0
        %1441 = vmatprep.mubr.f32.mxu0 0.0
        %1442 = vmatmul.mubr.f32.gmra.mxu0 %v479
        %v1443 = vpop.f32.mrf.mxu0
        %v1444 = vadd.f32 %v1219, %v1443
        %v1445 = vpop.f32.mrf.mxu0
        %1446 = vmatprep.mubr.f32.mxu0 0.0
        %1447 = vmatmul.mubr.f32.gmra.mxu0 %v402
        %v1448 = vpop.f32.mrf.mxu0
        %v1449 = vadd.f32 %v1224, %v1448
        %v1450 = vpop.f32.mrf.mxu0
        %1451 = vmatprep.mubr.f32.mxu0 0.0
        %1452 = vmatmul.mubr.f32.gmra.mxu0 %v480
        %v1453 = vpop.f32.mrf.mxu0
        %v1454 = vadd.f32 %v1229, %v1453
        %v1455 = vpop.f32.mrf.mxu0
        %1456 = vmatprep.mubr.f32.mxu0 0.0
        %1457 = vmatmul.mubr.f32.gmra.mxu0 %v405
        %v1458 = vpop.f32.mrf.mxu0
        %v1459 = vadd.f32 %v1234, %v1458
        %v1460 = vpop.f32.mrf.mxu0
        %1461 = vmatprep.mubr.f32.mxu0 0.0
        %1462 = vmatmul.mubr.f32.gmra.mxu0 %v481
        %v1463 = vpop.f32.mrf.mxu0
        %v1464 = vadd.f32 %v1239, %v1463
        %v1465 = vpop.f32.mrf.mxu0
        %1466 = vmatprep.mubr.f32.mxu0 0.0
        %1467 = vmatmul.mubr.f32.gmra.mxu0 %v408
        %v1468 = vpop.f32.mrf.mxu0
        %v1469 = vadd.f32 %v1244, %v1468
        %v1470 = vpop.f32.mrf.mxu0
        %1471 = vmatprep.mubr.f32.mxu0 0.0
        %1472 = vmatmul.mubr.f32.gmra.mxu0 %v482
        %v1473 = vpop.f32.mrf.mxu0
        %v1474 = vadd.f32 %v1249, %v1473
        %v1475 = vpop.f32.mrf.mxu0
        %1476 = vmatprep.mubr.f32.mxu0 0.0
        %1477 = vmatmul.mubr.f32.gmra.mxu0 %v411
        %v1478 = vpop.f32.mrf.mxu0
        %v1479 = vadd.f32 %v1254, %v1478
        %v1480 = vpop.f32.mrf.mxu0
        %1481 = vmatprep.mubr.f32.mxu0 0.0
        %1482 = vmatmul.mubr.f32.gmra.mxu0 %v483
        %v1483 = vpop.f32.mrf.mxu0
        %v1484 = vadd.f32 %v1259, %v1483
        %v1485 = vpop.f32.mrf.mxu0
        %1486 = vmatprep.mubr.f32.mxu0 0.0
        %1487 = vmatmul.mubr.f32.gmra.mxu0 %v414
        %v1488 = vpop.f32.mrf.mxu0
        %v1489 = vadd.f32 %v1264, %v1488
        %v1490 = vpop.f32.mrf.mxu0
        %1491 = vmatprep.mubr.f32.mxu0 0.0
        %1492 = vmatmul.mubr.f32.gmra.mxu0 %v484
        %v1493 = vpop.f32.mrf.mxu0
        %v1494 = vadd.f32 %v1269, %v1493
        %v1495 = vpop.f32.mrf.mxu0
        %1496 = vmatprep.mubr.f32.mxu0 0.0
        %1497 = vmatmul.mubr.f32.gmra.mxu0 %v417
        %v1498 = vpop.f32.mrf.mxu0
        %v1499 = vadd.f32 %v1274, %v1498
        %v1500 = vpop.f32.mrf.mxu0
        %1501 = vmatprep.mubr.f32.mxu0 0.0
        %1502 = vmatmul.mubr.f32.gmra.mxu0 %v485
        %v1503 = vpop.f32.mrf.mxu0
        %v1504 = vadd.f32 %v1279, %v1503
        %v1505 = vpop.f32.mrf.mxu0
        %1506 = vmatprep.mubr.f32.mxu0 0.0
        %1507 = vmatmul.mubr.f32.gmra.mxu0 %v420
        %v1508 = vpop.f32.mrf.mxu0
        %v1509 = vadd.f32 %v1284, %v1508
        %v1510 = vpop.f32.mrf.mxu0
        %1511 = vmatprep.mubr.f32.mxu0 0.0
        %1512 = vmatmul.mubr.f32.gmra.mxu0 %v486
        %v1513 = vpop.f32.mrf.mxu0
        %v1514 = vadd.f32 %v1289, %v1513
        %v1515 = vpop.f32.mrf.mxu0
        %1516 = vmatprep.mubr.f32.mxu0 0.0
        %1517 = vmatmul.mubr.f32.gmra.mxu0 %v423
        %v1518 = vpop.f32.mrf.mxu0
        %v1519 = vadd.f32 %v1294, %v1518
        %v1520 = vpop.f32.mrf.mxu0
        %1521 = vmatprep.mubr.f32.mxu0 0.0
        %1522 = vmatmul.mubr.f32.gmra.mxu0 %v487
        %v1523 = vpop.f32.mrf.mxu0
        %v1524 = vadd.f32 %v1299, %v1523
        %v1525 = vpop.f32.mrf.mxu0
        %1526 = vmatprep.mubr.f32.mxu0 0.0
        %1527 = vmatmul.mubr.f32.gmra.mxu0 %v426
        %v1528 = vpop.f32.mrf.mxu0
        %v1529 = vadd.f32 %v1304, %v1528
        %v1530 = vpop.f32.mrf.mxu0
        %1531 = vmatprep.mubr.f32.mxu0 0.0
        %1532 = vmatmul.mubr.f32.gmra.mxu0 %v488
        %v1533 = vpop.f32.mrf.mxu0
        %v1534 = vadd.f32 %v1309, %v1533
        %v1535 = vpop.f32.mrf.mxu0
        %1536 = vmatprep.mubr.f32.mxu0 0.0
        %1537 = vmatmul.mubr.f32.gmra.mxu0 %v429
        %v1538 = vpop.f32.mrf.mxu0
        %v1539 = vadd.f32 %v1314, %v1538
        %v1540 = vpop.f32.mrf.mxu0
        %1541 = vmatprep.mubr.f32.mxu0 0.0
        %1542 = vmatmul.mubr.f32.gmra.mxu0 %v489
        %v1543 = vpop.f32.mrf.mxu0
        %v1544 = vadd.f32 %v1319, %v1543
        %v1545 = vpop.f32.mrf.mxu0
        %1546 = vmatprep.mubr.f32.mxu0 0.0
        %1547 = vmatmul.mubr.f32.gmra.mxu0 %v432
        %v1548 = vpop.f32.mrf.mxu0
        %v1549 = vadd.f32 %v1324, %v1548
        %v1550 = vpop.f32.mrf.mxu0
        %1551 = vmatprep.mubr.f32.mxu0 0.0
        %1552 = vmatmul.mubr.f32.gmra.mxu0 %v490
        %v1553 = vpop.f32.mrf.mxu0
        %v1554 = vadd.f32 %v1329, %v1553
        %v1555 = vpop.f32.mrf.mxu0
        %1556 = vmatprep.mubr.f32.mxu0 0.0
        %1557 = vmatmul.mubr.f32.gmra.mxu0 %v435
        %v1558 = vpop.f32.mrf.mxu0
        %v1559 = vadd.f32 %v1334, %v1558
        %v1560 = vpop.f32.mrf.mxu0
        %1561 = vmatprep.mubr.f32.mxu0 0.0
        %1562 = vmatmul.mubr.f32.gmra.mxu0 %v491
        %v1563 = vpop.f32.mrf.mxu0
        %v1564 = vadd.f32 %v1339, %v1563
        %v1565 = vpop.f32.mrf.mxu0
        %1566 = vmatprep.mubr.f32.mxu0 0.0
        %1567 = vmatmul.mubr.f32.gmra.mxu0 %v438
        %v1568 = vpop.f32.mrf.mxu0
        %v1569 = vadd.f32 %v1344, %v1568
        %v1570 = vpop.f32.mrf.mxu0
        %1571 = vmatprep.mubr.f32.mxu0 0.0
        %1572 = vmatmul.mubr.f32.gmra.mxu0 %v492
        %v1573 = vpop.f32.mrf.mxu0
        %v1574 = vadd.f32 %v1349, %v1573
        %v1575 = vpop.f32.mrf.mxu0
        %1576 = vmatprep.mubr.f32.mxu0 0.0
        %1577 = vmatmul.mubr.f32.gmra.mxu0 %v441
        %v1578 = vpop.f32.mrf.mxu0
        %v1579 = vadd.f32 %v1354, %v1578
        %v1580 = vpop.f32.mrf.mxu0
        %1581 = vmatprep.mubr.f32.mxu0 0.0
        %1582 = vmatmul.mubr.f32.gmra.mxu0 %v476
        %v1583 = vpop.f32.mrf.mxu0
        %v1584 = vadd.f32 %v1359, %v1583
        %v1585 = vpop.f32.mrf.mxu0
        %1586 = vmatprep.mubr.f32.mxu0 0.0
        %1587 = vmatmul.mubr.f32.gmra.mxu0 %v393
        %v1588 = vpop.f32.mrf.mxu0
        %v1589 = vadd.f32 %v1364, %v1588
        %v1590 = vpop.f32.mrf.mxu0
        %1591 = vdwg.mxu0
        %s1592 = scalar_lea.vmem [#allocation5], 768
        %v1593 = vld [vmem:[%s1592] sm:$0xff]
        %v1594 = vld [vmem:[%s1592 + $0x8] sm:$0xff]
        %v1595 = vld [vmem:[%s1592 + $0x10] sm:$0xff]
        %v1596 = vld [vmem:[%s1592 + $0x18] sm:$0xff]
        %v1597 = vld [vmem:[%s1592 + $0x20] sm:$0xff]
        %v1598 = vld [vmem:[%s1592 + $0x28] sm:$0xff]
        %v1599 = vld [vmem:[%s1592 + $0x30] sm:$0xff]
        %v1600 = vld [vmem:[%s1592 + $0x38] sm:$0xff]
        %v1601 = vld [vmem:[%s1592 + $0x40] sm:$0xff]
        %v1602 = vld [vmem:[%s1592 + $0x48] sm:$0xff]
        %v1603 = vld [vmem:[%s1592 + $0x50] sm:$0xff]
        %v1604 = vld [vmem:[%s1592 + $0x58] sm:$0xff]
        %v1605 = vld [vmem:[%s1592 + $0x60] sm:$0xff]
        %v1606 = vld [vmem:[%s1592 + $0x68] sm:$0xff]
        %v1607 = vld [vmem:[%s1592 + $0x70] sm:$0xff]
        %v1608 = vld [vmem:[%s1592 + $0x78] sm:$0xff]
        %v1609 = vld [vmem:[%s1592 + $0x80] sm:$0xff]
        %v1610 = vld [vmem:[%s1592 + $0x88] sm:$0xff]
        %v1611 = vld [vmem:[%s1592 + $0x90] sm:$0xff]
        %v1612 = vld [vmem:[%s1592 + $0x98] sm:$0xff]
        %v1613 = vld [vmem:[%s1592 + $0xa0] sm:$0xff]
        %v1614 = vld [vmem:[%s1592 + $0xa8] sm:$0xff]
        %v1615 = vld [vmem:[%s1592 + $0xb0] sm:$0xff]
        %v1616 = vld [vmem:[%s1592 + $0xb8] sm:$0xff]
        %v1617 = vld [vmem:[%s1592 + $0xc0] sm:$0xff]
        %v1618 = vld [vmem:[%s1592 + $0xc8] sm:$0xff]
        %v1619 = vld [vmem:[%s1592 + $0xd0] sm:$0xff]
        %v1620 = vld [vmem:[%s1592 + $0xd8] sm:$0xff]
        %v1621 = vld [vmem:[%s1592 + $0xe0] sm:$0xff]
        %v1622 = vld [vmem:[%s1592 + $0xe8] sm:$0xff]
        %v1623 = vld [vmem:[%s1592 + $0xf0] sm:$0xff]
        %v1624 = vld [vmem:[%s1592 + $0xf8] sm:$0xff]
        %v1625 = vld [vmem:[%s1592 + $0x100] sm:$0xff]
        %v1626 = vld [vmem:[%s1592 + $0x108] sm:$0xff]
        %v1627 = vld [vmem:[%s1592 + $0x110] sm:$0xff]
        %v1628 = vld [vmem:[%s1592 + $0x118] sm:$0xff]
        %v1629 = vld [vmem:[%s1592 + $0x120] sm:$0xff]
        %v1630 = vld [vmem:[%s1592 + $0x128] sm:$0xff]
        %v1631 = vld [vmem:[%s1592 + $0x130] sm:$0xff]
        %v1632 = vld [vmem:[%s1592 + $0x138] sm:$0xff]
        %v1633 = vld [vmem:[%s1592 + $0x140] sm:$0xff]
        %v1634 = vld [vmem:[%s1592 + $0x148] sm:$0xff]
        %v1635 = vld [vmem:[%s1592 + $0x150] sm:$0xff]
        %v1636 = vld [vmem:[%s1592 + $0x158] sm:$0xff]
        %v1637 = vld [vmem:[%s1592 + $0x160] sm:$0xff]
        %v1638 = vld [vmem:[%s1592 + $0x168] sm:$0xff]
        %v1639 = vld [vmem:[%s1592 + $0x170] sm:$0xff]
        %v1640 = vld [vmem:[%s1592 + $0x178] sm:$0xff]
        %1641 = vmatprep.subr.mxu0 0.0
        %1642 = vmatpush1.msra.mxu0 %v1608
        %1643 = vmatprep.subr.mxu0 0.0
        %1644 = vmatpush1.msra.mxu0 %v1607
        %1645 = vmatprep.subr.mxu0 0.0
        %1646 = vmatpush1.msra.mxu0 %v1606
        %1647 = vmatprep.subr.mxu0 0.0
        %1648 = vmatpush1.msra.mxu0 %v1605
        %1649 = vmatprep.subr.mxu0 0.0
        %1650 = vmatpush1.msra.mxu0 %v1604
        %1651 = vmatprep.subr.mxu0 0.0
        %1652 = vmatpush1.msra.mxu0 %v1603
        %1653 = vmatprep.subr.mxu0 0.0
        %1654 = vmatpush1.msra.mxu0 %v1602
        %1655 = vmatprep.subr.mxu0 0.0
        %1656 = vmatpush1.msra.mxu0 %v1601
        %1657 = vmatprep.subr.mxu0 0.0
        %1658 = vmatpush1.msra.mxu0 %v1600
        %1659 = vmatprep.subr.mxu0 0.0
        %1660 = vmatpush1.msra.mxu0 %v1599
        %1661 = vmatprep.subr.mxu0 0.0
        %1662 = vmatpush1.msra.mxu0 %v1598
        %1663 = vmatprep.subr.mxu0 0.0
        %1664 = vmatpush1.msra.mxu0 %v1597
        %1665 = vmatprep.subr.mxu0 0.0
        %1666 = vmatpush1.msra.mxu0 %v1596
        %1667 = vmatprep.subr.mxu0 0.0
        %1668 = vmatpush1.msra.mxu0 %v1595
        %1669 = vmatprep.subr.mxu0 0.0
        %1670 = vmatpush1.msra.mxu0 %v1594
        %1671 = vmatprep.subr.mxu0 0.0
        %1672 = vmatpush1.msra.mxu0 %v1593
        %1673 = vmatprep.subr.mxu0 0.0
        %1674 = vmatpush2.msra.mxu0 %v1624
        %1675 = vmatprep.subr.mxu0 0.0
        %1676 = vmatpush2.msra.mxu0 %v1623
        %1677 = vmatprep.subr.mxu0 0.0
        %1678 = vmatpush2.msra.mxu0 %v1622
        %1679 = vmatprep.subr.mxu0 0.0
        %1680 = vmatpush2.msra.mxu0 %v1621
        %1681 = vmatprep.subr.mxu0 0.0
        %1682 = vmatpush2.msra.mxu0 %v1620
        %1683 = vmatprep.subr.mxu0 0.0
        %1684 = vmatpush2.msra.mxu0 %v1619
        %1685 = vmatprep.subr.mxu0 0.0
        %1686 = vmatpush2.msra.mxu0 %v1618
        %1687 = vmatprep.subr.mxu0 0.0
        %1688 = vmatpush2.msra.mxu0 %v1617
        %1689 = vmatprep.subr.mxu0 0.0
        %1690 = vmatpush2.msra.mxu0 %v1616
        %1691 = vmatprep.subr.mxu0 0.0
        %1692 = vmatpush2.msra.mxu0 %v1615
        %1693 = vmatprep.subr.mxu0 0.0
        %1694 = vmatpush2.msra.mxu0 %v1614
        %1695 = vmatprep.subr.mxu0 0.0
        %1696 = vmatpush2.msra.mxu0 %v1613
        %1697 = vmatprep.subr.mxu0 0.0
        %1698 = vmatpush2.msra.mxu0 %v1612
        %1699 = vmatprep.subr.mxu0 0.0
        %1700 = vmatpush2.msra.mxu0 %v1611
        %1701 = vmatprep.subr.mxu0 0.0
        %1702 = vmatpush2.msra.mxu0 %v1610
        %1703 = vmatprep.subr.mxu0 0.0
        %1704 = vmatpush2.msra.mxu0 %v1609
        %1705 = vmatprep.mubr.f32.mxu0 %v498
        %1706 = vmatmul.mubr.f32.gmra.mxu0 %v495
        %v1707 = vpop.f32.mrf.mxu0
        %v1708 = vadd.f32 0.0, %v1707
        %v1709 = vpop.f32.mrf.mxu0
        %1710 = vmatprep.mubr.f32.mxu0 %v579
        %1711 = vmatmul.mubr.f32.gmra.mxu0 %v578
        %v1712 = vpop.f32.mrf.mxu0
        %v1713 = vadd.f32 0.0, %v1712
        %v1714 = vpop.f32.mrf.mxu0
        %1715 = vmatprep.mubr.f32.mxu0 %v501
        %1716 = vmatmul.mubr.f32.gmra.mxu0 %v498
        %v1717 = vpop.f32.mrf.mxu0
        %v1718 = vadd.f32 0.0, %v1717
        %v1719 = vpop.f32.mrf.mxu0
        %1720 = vmatprep.mubr.f32.mxu0 %v580
        %1721 = vmatmul.mubr.f32.gmra.mxu0 %v579
        %v1722 = vpop.f32.mrf.mxu0
        %v1723 = vadd.f32 0.0, %v1722
        %v1724 = vpop.f32.mrf.mxu0
        %1725 = vmatprep.mubr.f32.mxu0 %v504
        %1726 = vmatmul.mubr.f32.gmra.mxu0 %v501
        %v1727 = vpop.f32.mrf.mxu0
        %v1728 = vadd.f32 0.0, %v1727
        %v1729 = vpop.f32.mrf.mxu0
        %1730 = vmatprep.mubr.f32.mxu0 %v581
        %1731 = vmatmul.mubr.f32.gmra.mxu0 %v580
        %v1732 = vpop.f32.mrf.mxu0
        %v1733 = vadd.f32 0.0, %v1732
        %v1734 = vpop.f32.mrf.mxu0
        %1735 = vmatprep.mubr.f32.mxu0 %v507
        %1736 = vmatmul.mubr.f32.gmra.mxu0 %v504
        %v1737 = vpop.f32.mrf.mxu0
        %v1738 = vadd.f32 0.0, %v1737
        %v1739 = vpop.f32.mrf.mxu0
        %1740 = vmatprep.mubr.f32.mxu0 %v582
        %1741 = vmatmul.mubr.f32.gmra.mxu0 %v581
        %v1742 = vpop.f32.mrf.mxu0
        %v1743 = vadd.f32 0.0, %v1742
        %v1744 = vpop.f32.mrf.mxu0
        %1745 = vmatprep.mubr.f32.mxu0 %v510
        %1746 = vmatmul.mubr.f32.gmra.mxu0 %v507
        %v1747 = vpop.f32.mrf.mxu0
        %v1748 = vadd.f32 0.0, %v1747
        %v1749 = vpop.f32.mrf.mxu0
        %1750 = vmatprep.mubr.f32.mxu0 %v583
        %1751 = vmatmul.mubr.f32.gmra.mxu0 %v582
        %v1752 = vpop.f32.mrf.mxu0
        %v1753 = vadd.f32 0.0, %v1752
        %v1754 = vpop.f32.mrf.mxu0
        %1755 = vmatprep.mubr.f32.mxu0 %v513
        %1756 = vmatmul.mubr.f32.gmra.mxu0 %v510
        %v1757 = vpop.f32.mrf.mxu0
        %v1758 = vadd.f32 0.0, %v1757
        %v1759 = vpop.f32.mrf.mxu0
        %1760 = vmatprep.mubr.f32.mxu0 %v584
        %1761 = vmatmul.mubr.f32.gmra.mxu0 %v583
        %v1762 = vpop.f32.mrf.mxu0
        %v1763 = vadd.f32 0.0, %v1762
        %v1764 = vpop.f32.mrf.mxu0
        %1765 = vmatprep.mubr.f32.mxu0 %v516
        %1766 = vmatmul.mubr.f32.gmra.mxu0 %v513
        %v1767 = vpop.f32.mrf.mxu0
        %v1768 = vadd.f32 0.0, %v1767
        %v1769 = vpop.f32.mrf.mxu0
        %1770 = vmatprep.mubr.f32.mxu0 %v585
        %1771 = vmatmul.mubr.f32.gmra.mxu0 %v584
        %v1772 = vpop.f32.mrf.mxu0
        %v1773 = vadd.f32 0.0, %v1772
        %v1774 = vpop.f32.mrf.mxu0
        %1775 = vmatprep.mubr.f32.mxu0 %v519
        %1776 = vmatmul.mubr.f32.gmra.mxu0 %v516
        %v1777 = vpop.f32.mrf.mxu0
        %v1778 = vadd.f32 0.0, %v1777
        %v1779 = vpop.f32.mrf.mxu0
        %1780 = vmatprep.mubr.f32.mxu0 %v586
        %1781 = vmatmul.mubr.f32.gmra.mxu0 %v585
        %v1782 = vpop.f32.mrf.mxu0
        %v1783 = vadd.f32 0.0, %v1782
        %v1784 = vpop.f32.mrf.mxu0
        %1785 = vmatprep.mubr.f32.mxu0 %v522
        %1786 = vmatmul.mubr.f32.gmra.mxu0 %v519
        %v1787 = vpop.f32.mrf.mxu0
        %v1788 = vadd.f32 0.0, %v1787
        %v1789 = vpop.f32.mrf.mxu0
        %1790 = vmatprep.mubr.f32.mxu0 %v587
        %1791 = vmatmul.mubr.f32.gmra.mxu0 %v586
        %v1792 = vpop.f32.mrf.mxu0
        %v1793 = vadd.f32 0.0, %v1792
        %v1794 = vpop.f32.mrf.mxu0
        %1795 = vmatprep.mubr.f32.mxu0 %v525
        %1796 = vmatmul.mubr.f32.gmra.mxu0 %v522
        %v1797 = vpop.f32.mrf.mxu0
        %v1798 = vadd.f32 0.0, %v1797
        %v1799 = vpop.f32.mrf.mxu0
        %1800 = vmatprep.mubr.f32.mxu0 %v588
        %1801 = vmatmul.mubr.f32.gmra.mxu0 %v587
        %v1802 = vpop.f32.mrf.mxu0
        %v1803 = vadd.f32 0.0, %v1802
        %v1804 = vpop.f32.mrf.mxu0
        %1805 = vmatprep.mubr.f32.mxu0 %v528
        %1806 = vmatmul.mubr.f32.gmra.mxu0 %v525
        %v1807 = vpop.f32.mrf.mxu0
        %v1808 = vadd.f32 0.0, %v1807
        %v1809 = vpop.f32.mrf.mxu0
        %1810 = vmatprep.mubr.f32.mxu0 %v589
        %1811 = vmatmul.mubr.f32.gmra.mxu0 %v588
        %v1812 = vpop.f32.mrf.mxu0
        %v1813 = vadd.f32 0.0, %v1812
        %v1814 = vpop.f32.mrf.mxu0
        %1815 = vmatprep.mubr.f32.mxu0 %v531
        %1816 = vmatmul.mubr.f32.gmra.mxu0 %v528
        %v1817 = vpop.f32.mrf.mxu0
        %v1818 = vadd.f32 0.0, %v1817
        %v1819 = vpop.f32.mrf.mxu0
        %1820 = vmatprep.mubr.f32.mxu0 %v590
        %1821 = vmatmul.mubr.f32.gmra.mxu0 %v589
        %v1822 = vpop.f32.mrf.mxu0
        %v1823 = vadd.f32 0.0, %v1822
        %v1824 = vpop.f32.mrf.mxu0
        %1825 = vmatprep.mubr.f32.mxu0 %v534
        %1826 = vmatmul.mubr.f32.gmra.mxu0 %v531
        %v1827 = vpop.f32.mrf.mxu0
        %v1828 = vadd.f32 0.0, %v1827
        %v1829 = vpop.f32.mrf.mxu0
        %1830 = vmatprep.mubr.f32.mxu0 %v591
        %1831 = vmatmul.mubr.f32.gmra.mxu0 %v590
        %v1832 = vpop.f32.mrf.mxu0
        %v1833 = vadd.f32 0.0, %v1832
        %v1834 = vpop.f32.mrf.mxu0
        %1835 = vmatprep.mubr.f32.mxu0 %v537
        %1836 = vmatmul.mubr.f32.gmra.mxu0 %v534
        %v1837 = vpop.f32.mrf.mxu0
        %v1838 = vadd.f32 0.0, %v1837
        %v1839 = vpop.f32.mrf.mxu0
        %1840 = vmatprep.mubr.f32.mxu0 %v592
        %1841 = vmatmul.mubr.f32.gmra.mxu0 %v591
        %v1842 = vpop.f32.mrf.mxu0
        %v1843 = vadd.f32 0.0, %v1842
        %v1844 = vpop.f32.mrf.mxu0
        %1845 = vmatprep.mubr.f32.mxu0 %v540
        %1846 = vmatmul.mubr.f32.gmra.mxu0 %v537
        %v1847 = vpop.f32.mrf.mxu0
        %v1848 = vadd.f32 0.0, %v1847
        %v1849 = vpop.f32.mrf.mxu0
        %1850 = vmatprep.mubr.f32.mxu0 %v593
        %1851 = vmatmul.mubr.f32.gmra.mxu0 %v592
        %v1852 = vpop.f32.mrf.mxu0
        %v1853 = vadd.f32 0.0, %v1852
        %v1854 = vpop.f32.mrf.mxu0
        %1855 = vmatprep.mubr.f32.mxu0 %v543
        %1856 = vmatmul.mubr.f32.gmra.mxu0 %v540
        %v1857 = vpop.f32.mrf.mxu0
        %v1858 = vadd.f32 0.0, %v1857
        %v1859 = vpop.f32.mrf.mxu0
        %1860 = vmatprep.mubr.f32.mxu0 %v594
        %1861 = vmatmul.mubr.f32.gmra.mxu0 %v593
        %v1862 = vpop.f32.mrf.mxu0
        %v1863 = vadd.f32 0.0, %v1862
        %v1864 = vpop.f32.mrf.mxu0
        %1865 = vdwg.mxu0
        %1866 = vmatprep.subr.mxu0 0.0
        %1867 = vmatpush1.msra.mxu0 %v1640
        %1868 = vmatprep.subr.mxu0 0.0
        %1869 = vmatpush1.msra.mxu0 %v1639
        %1870 = vmatprep.subr.mxu0 0.0
        %1871 = vmatpush1.msra.mxu0 %v1638
        %1872 = vmatprep.subr.mxu0 0.0
        %1873 = vmatpush1.msra.mxu0 %v1637
        %1874 = vmatprep.subr.mxu0 0.0
        %1875 = vmatpush1.msra.mxu0 %v1636
        %1876 = vmatprep.subr.mxu0 0.0
        %1877 = vmatpush1.msra.mxu0 %v1635
        %1878 = vmatprep.subr.mxu0 0.0
        %1879 = vmatpush1.msra.mxu0 %v1634
        %1880 = vmatprep.subr.mxu0 0.0
        %1881 = vmatpush1.msra.mxu0 %v1633
        %1882 = vmatprep.subr.mxu0 0.0
        %1883 = vmatpush1.msra.mxu0 %v1632
        %1884 = vmatprep.subr.mxu0 0.0
        %1885 = vmatpush1.msra.mxu0 %v1631
        %1886 = vmatprep.subr.mxu0 0.0
        %1887 = vmatpush1.msra.mxu0 %v1630
        %1888 = vmatprep.subr.mxu0 0.0
        %1889 = vmatpush1.msra.mxu0 %v1629
        %1890 = vmatprep.subr.mxu0 0.0
        %1891 = vmatpush1.msra.mxu0 %v1628
        %1892 = vmatprep.subr.mxu0 0.0
        %1893 = vmatpush1.msra.mxu0 %v1627
        %1894 = vmatprep.subr.mxu0 0.0
        %1895 = vmatpush1.msra.mxu0 %v1626
        %1896 = vmatprep.subr.mxu0 0.0
        %1897 = vmatpush1.msra.mxu0 %v1625
        %1898 = vmatprep.subr.mxu0 0.0
        %1899 = vmatpush2.msra.mxu0 0.0
        %1900 = vmatprep.subr.mxu0 0.0
        %1901 = vmatpush2.msra.mxu0 0.0
        %1902 = vmatprep.subr.mxu0 0.0
        %1903 = vmatpush2.msra.mxu0 0.0
        %1904 = vmatprep.subr.mxu0 0.0
        %1905 = vmatpush2.msra.mxu0 0.0
        %1906 = vmatprep.subr.mxu0 0.0
        %1907 = vmatpush2.msra.mxu0 0.0
        %1908 = vmatprep.subr.mxu0 0.0
        %1909 = vmatpush2.msra.mxu0 0.0
        %1910 = vmatprep.subr.mxu0 0.0
        %1911 = vmatpush2.msra.mxu0 0.0
        %1912 = vmatprep.subr.mxu0 0.0
        %1913 = vmatpush2.msra.mxu0 0.0
        %1914 = vmatprep.subr.mxu0 0.0
        %1915 = vmatpush2.msra.mxu0 0.0
        %1916 = vmatprep.subr.mxu0 0.0
        %1917 = vmatpush2.msra.mxu0 0.0
        %1918 = vmatprep.subr.mxu0 0.0
        %1919 = vmatpush2.msra.mxu0 0.0
        %1920 = vmatprep.subr.mxu0 0.0
        %1921 = vmatpush2.msra.mxu0 0.0
        %1922 = vmatprep.subr.mxu0 0.0
        %1923 = vmatpush2.msra.mxu0 0.0
        %1924 = vmatprep.subr.mxu0 0.0
        %1925 = vmatpush2.msra.mxu0 0.0
        %1926 = vmatprep.subr.mxu0 0.0
        %1927 = vmatpush2.msra.mxu0 0.0
        %1928 = vmatprep.subr.mxu0 0.0
        %1929 = vmatpush2.msra.mxu0 0.0
        %1930 = vmatprep.mubr.f32.mxu0 0.0
        %1931 = vmatmul.mubr.f32.gmra.mxu0 %v501
        %v1932 = vpop.f32.mrf.mxu0
        %v1933 = vadd.f32 %v1708, %v1932
        %v1934 = vpop.f32.mrf.mxu0
        %1935 = vmatprep.mubr.f32.mxu0 0.0
        %1936 = vmatmul.mubr.f32.gmra.mxu0 %v580
        %v1937 = vpop.f32.mrf.mxu0
        %v1938 = vadd.f32 %v1713, %v1937
        %v1939 = vpop.f32.mrf.mxu0
        %1940 = vmatprep.mubr.f32.mxu0 0.0
        %1941 = vmatmul.mubr.f32.gmra.mxu0 %v504
        %v1942 = vpop.f32.mrf.mxu0
        %v1943 = vadd.f32 %v1718, %v1942
        %v1944 = vpop.f32.mrf.mxu0
        %1945 = vmatprep.mubr.f32.mxu0 0.0
        %1946 = vmatmul.mubr.f32.gmra.mxu0 %v581
        %v1947 = vpop.f32.mrf.mxu0
        %v1948 = vadd.f32 %v1723, %v1947
        %v1949 = vpop.f32.mrf.mxu0
        %1950 = vmatprep.mubr.f32.mxu0 0.0
        %1951 = vmatmul.mubr.f32.gmra.mxu0 %v507
        %v1952 = vpop.f32.mrf.mxu0
        %v1953 = vadd.f32 %v1728, %v1952
        %v1954 = vpop.f32.mrf.mxu0
        %1955 = vmatprep.mubr.f32.mxu0 0.0
        %1956 = vmatmul.mubr.f32.gmra.mxu0 %v582
        %v1957 = vpop.f32.mrf.mxu0
        %v1958 = vadd.f32 %v1733, %v1957
        %v1959 = vpop.f32.mrf.mxu0
        %1960 = vmatprep.mubr.f32.mxu0 0.0
        %1961 = vmatmul.mubr.f32.gmra.mxu0 %v510
        %v1962 = vpop.f32.mrf.mxu0
        %v1963 = vadd.f32 %v1738, %v1962
        %v1964 = vpop.f32.mrf.mxu0
        %1965 = vmatprep.mubr.f32.mxu0 0.0
        %1966 = vmatmul.mubr.f32.gmra.mxu0 %v583
        %v1967 = vpop.f32.mrf.mxu0
        %v1968 = vadd.f32 %v1743, %v1967
        %v1969 = vpop.f32.mrf.mxu0
        %1970 = vmatprep.mubr.f32.mxu0 0.0
        %1971 = vmatmul.mubr.f32.gmra.mxu0 %v513
        %v1972 = vpop.f32.mrf.mxu0
        %v1973 = vadd.f32 %v1748, %v1972
        %v1974 = vpop.f32.mrf.mxu0
        %1975 = vmatprep.mubr.f32.mxu0 0.0
        %1976 = vmatmul.mubr.f32.gmra.mxu0 %v584
        %v1977 = vpop.f32.mrf.mxu0
        %v1978 = vadd.f32 %v1753, %v1977
        %v1979 = vpop.f32.mrf.mxu0
        %1980 = vmatprep.mubr.f32.mxu0 0.0
        %1981 = vmatmul.mubr.f32.gmra.mxu0 %v516
        %v1982 = vpop.f32.mrf.mxu0
        %v1983 = vadd.f32 %v1758, %v1982
        %v1984 = vpop.f32.mrf.mxu0
        %1985 = vmatprep.mubr.f32.mxu0 0.0
        %1986 = vmatmul.mubr.f32.gmra.mxu0 %v585
        %v1987 = vpop.f32.mrf.mxu0
        %v1988 = vadd.f32 %v1763, %v1987
        %v1989 = vpop.f32.mrf.mxu0
        %1990 = vmatprep.mubr.f32.mxu0 0.0
        %1991 = vmatmul.mubr.f32.gmra.mxu0 %v519
        %v1992 = vpop.f32.mrf.mxu0
        %v1993 = vadd.f32 %v1768, %v1992
        %v1994 = vpop.f32.mrf.mxu0
        %1995 = vmatprep.mubr.f32.mxu0 0.0
        %1996 = vmatmul.mubr.f32.gmra.mxu0 %v586
        %v1997 = vpop.f32.mrf.mxu0
        %v1998 = vadd.f32 %v1773, %v1997
        %v1999 = vpop.f32.mrf.mxu0
        %2000 = vmatprep.mubr.f32.mxu0 0.0
        %2001 = vmatmul.mubr.f32.gmra.mxu0 %v522
        %v2002 = vpop.f32.mrf.mxu0
        %v2003 = vadd.f32 %v1778, %v2002
        %v2004 = vpop.f32.mrf.mxu0
        %2005 = vmatprep.mubr.f32.mxu0 0.0
        %2006 = vmatmul.mubr.f32.gmra.mxu0 %v587
        %v2007 = vpop.f32.mrf.mxu0
        %v2008 = vadd.f32 %v1783, %v2007
        %v2009 = vpop.f32.mrf.mxu0
        %2010 = vmatprep.mubr.f32.mxu0 0.0
        %2011 = vmatmul.mubr.f32.gmra.mxu0 %v525
        %v2012 = vpop.f32.mrf.mxu0
        %v2013 = vadd.f32 %v1788, %v2012
        %v2014 = vpop.f32.mrf.mxu0
        %2015 = vmatprep.mubr.f32.mxu0 0.0
        %2016 = vmatmul.mubr.f32.gmra.mxu0 %v588
        %v2017 = vpop.f32.mrf.mxu0
        %v2018 = vadd.f32 %v1793, %v2017
        %v2019 = vpop.f32.mrf.mxu0
        %2020 = vmatprep.mubr.f32.mxu0 0.0
        %2021 = vmatmul.mubr.f32.gmra.mxu0 %v528
        %v2022 = vpop.f32.mrf.mxu0
        %v2023 = vadd.f32 %v1798, %v2022
        %v2024 = vpop.f32.mrf.mxu0
        %2025 = vmatprep.mubr.f32.mxu0 0.0
        %2026 = vmatmul.mubr.f32.gmra.mxu0 %v589
        %v2027 = vpop.f32.mrf.mxu0
        %v2028 = vadd.f32 %v1803, %v2027
        %v2029 = vpop.f32.mrf.mxu0
        %2030 = vmatprep.mubr.f32.mxu0 0.0
        %2031 = vmatmul.mubr.f32.gmra.mxu0 %v531
        %v2032 = vpop.f32.mrf.mxu0
        %v2033 = vadd.f32 %v1808, %v2032
        %v2034 = vpop.f32.mrf.mxu0
        %2035 = vmatprep.mubr.f32.mxu0 0.0
        %2036 = vmatmul.mubr.f32.gmra.mxu0 %v590
        %v2037 = vpop.f32.mrf.mxu0
        %v2038 = vadd.f32 %v1813, %v2037
        %v2039 = vpop.f32.mrf.mxu0
        %2040 = vmatprep.mubr.f32.mxu0 0.0
        %2041 = vmatmul.mubr.f32.gmra.mxu0 %v534
        %v2042 = vpop.f32.mrf.mxu0
        %v2043 = vadd.f32 %v1818, %v2042
        %v2044 = vpop.f32.mrf.mxu0
        %2045 = vmatprep.mubr.f32.mxu0 0.0
        %2046 = vmatmul.mubr.f32.gmra.mxu0 %v591
        %v2047 = vpop.f32.mrf.mxu0
        %v2048 = vadd.f32 %v1823, %v2047
        %v2049 = vpop.f32.mrf.mxu0
        %2050 = vmatprep.mubr.f32.mxu0 0.0
        %2051 = vmatmul.mubr.f32.gmra.mxu0 %v537
        %v2052 = vpop.f32.mrf.mxu0
        %v2053 = vadd.f32 %v1828, %v2052
        %v2054 = vpop.f32.mrf.mxu0
        %2055 = vmatprep.mubr.f32.mxu0 0.0
        %2056 = vmatmul.mubr.f32.gmra.mxu0 %v592
        %v2057 = vpop.f32.mrf.mxu0
        %v2058 = vadd.f32 %v1833, %v2057
        %v2059 = vpop.f32.mrf.mxu0
        %2060 = vmatprep.mubr.f32.mxu0 0.0
        %2061 = vmatmul.mubr.f32.gmra.mxu0 %v540
        %v2062 = vpop.f32.mrf.mxu0
        %v2063 = vadd.f32 %v1838, %v2062
        %v2064 = vpop.f32.mrf.mxu0
        %2065 = vmatprep.mubr.f32.mxu0 0.0
        %2066 = vmatmul.mubr.f32.gmra.mxu0 %v593
        %v2067 = vpop.f32.mrf.mxu0
        %v2068 = vadd.f32 %v1843, %v2067
        %v2069 = vpop.f32.mrf.mxu0
        %2070 = vmatprep.mubr.f32.mxu0 0.0
        %2071 = vmatmul.mubr.f32.gmra.mxu0 %v543
        %v2072 = vpop.f32.mrf.mxu0
        %v2073 = vadd.f32 %v1848, %v2072
        %v2074 = vpop.f32.mrf.mxu0
        %2075 = vmatprep.mubr.f32.mxu0 0.0
        %2076 = vmatmul.mubr.f32.gmra.mxu0 %v594
        %v2077 = vpop.f32.mrf.mxu0
        %v2078 = vadd.f32 %v1853, %v2077
        %v2079 = vpop.f32.mrf.mxu0
        %2080 = vmatprep.mubr.f32.mxu0 0.0
        %2081 = vmatmul.mubr.f32.gmra.mxu0 %v495
        %v2082 = vpop.f32.mrf.mxu0
        %v2083 = vadd.f32 %v1858, %v2082
        %v2084 = vpop.f32.mrf.mxu0
        %2085 = vmatprep.mubr.f32.mxu0 0.0
        %2086 = vmatmul.mubr.f32.gmra.mxu0 %v578
        %v2087 = vpop.f32.mrf.mxu0
        %v2088 = vadd.f32 %v1863, %v2087
        %v2089 = vpop.f32.mrf.mxu0
        %2090 = vdwg.mxu0
        %v2091 = vadd.f32 %v1434, %v1933
        %v2092 = vadd.f32 %v1439, %v1938
        %v2093 = vadd.f32 %v1444, %v1943
        %v2094 = vadd.f32 %v1449, %v1948
        %v2095 = vadd.f32 %v1454, %v1953
        %v2096 = vadd.f32 %v1459, %v1958
        %v2097 = vadd.f32 %v1464, %v1963
        %v2098 = vadd.f32 %v1469, %v1968
        %v2099 = vadd.f32 %v1474, %v1973
        %v2100 = vadd.f32 %v1479, %v1978
        %v2101 = vadd.f32 %v1484, %v1983
        %v2102 = vadd.f32 %v1489, %v1988
        %v2103 = vadd.f32 %v1494, %v1993
        %v2104 = vadd.f32 %v1499, %v1998
        %v2105 = vadd.f32 %v1504, %v2003
        %v2106 = vadd.f32 %v1509, %v2008
        %v2107 = vadd.f32 %v1514, %v2013
        %v2108 = vadd.f32 %v1519, %v2018
        %v2109 = vadd.f32 %v1524, %v2023
        %v2110 = vadd.f32 %v1529, %v2028
        %v2111 = vadd.f32 %v1534, %v2033
        %v2112 = vadd.f32 %v1539, %v2038
        %v2113 = vadd.f32 %v1544, %v2043
        %v2114 = vadd.f32 %v1549, %v2048
        %v2115 = vadd.f32 %v1554, %v2053
        %v2116 = vadd.f32 %v1559, %v2058
        %v2117 = vadd.f32 %v1564, %v2063
        %v2118 = vadd.f32 %v1569, %v2068
        %v2119 = vadd.f32 %v1574, %v2073
        %v2120 = vadd.f32 %v1579, %v2078
        %v2121 = vadd.f32 %v1584, %v2083
        %v2122 = vadd.f32 %v1589, %v2088
        %v2123 = vld [vmem:[%s2] sm:$0x1]
        %v2124 = vld [vmem:[%s3] sm:$0x1]
        %v2125 = vadd.f32 %v2091, %v2092
        %v2126 = vadd.f32 %v2125, %v2093
        %v2127 = vadd.f32 %v2126, %v2094
        %v2128 = vadd.f32 %v2127, %v2095
        %v2129 = vadd.f32 %v2128, %v2096
        %v2130 = vadd.f32 %v2129, %v2097
        %v2131 = vadd.f32 %v2130, %v2098
        %v2132 = vadd.f32 %v2131, %v2099
        %v2133 = vadd.f32 %v2132, %v2100
        %v2134 = vadd.f32 %v2133, %v2101
        %v2135 = vadd.f32 %v2134, %v2102
        %v2136 = vadd.f32 %v2135, %v2103
        %v2137 = vadd.f32 %v2136, %v2104
        %v2138 = vadd.f32 %v2137, %v2105
        %v2139 = vadd.f32 %v2138, %v2106
        %v2140 = vadd.f32 %v2139, %v2107
        %v2141 = vadd.f32 %v2140, %v2108
        %v2142 = vadd.f32 %v2141, %v2109
        %v2143 = vadd.f32 %v2142, %v2110
        %v2144 = vadd.f32 %v2143, %v2111
        %v2145 = vadd.f32 %v2144, %v2112
        %v2146 = vadd.f32 %v2145, %v2113
        %v2147 = vadd.f32 %v2146, %v2114
        %v2148 = vadd.f32 %v2147, %v2115
        %v2149 = vadd.f32 %v2148, %v2116
        %v2150 = vadd.f32 %v2149, %v2117
        %v2151 = vadd.f32 %v2150, %v2118
        %v2152 = vadd.f32 %v2151, %v2119
        %v2153 = vadd.f32 %v2152, %v2120
        %v2154 = vadd.f32 %v2153, %v2121
        %v2155 = vadd.f32 %v2154, %v2122
        %v2156 = vrot.slane %v2155, 4
        %v2157 = vadd.f32 %v2155, %v2156
        %v2158 = vrot.slane %v2157, 2
        %v2159 = vadd.f32 %v2157, %v2158
        %v2160 = vrot.slane %v2159, 1
        %v2161 = vadd.f32 %v2159, %v2160
        %v2162 = vmul.f32 %v2091, %v2091
        %v2163 = vmul.f32 %v2092, %v2092
        %v2164 = vmul.f32 %v2093, %v2093
        %v2165 = vmul.f32 %v2094, %v2094
        %v2166 = vmul.f32 %v2095, %v2095
        %v2167 = vmul.f32 %v2096, %v2096
        %v2168 = vmul.f32 %v2097, %v2097
        %v2169 = vmul.f32 %v2098, %v2098
        %v2170 = vmul.f32 %v2099, %v2099
        %v2171 = vmul.f32 %v2100, %v2100
        %v2172 = vmul.f32 %v2101, %v2101
        %v2173 = vmul.f32 %v2102, %v2102
        %v2174 = vmul.f32 %v2103, %v2103
        %v2175 = vmul.f32 %v2104, %v2104
        %v2176 = vmul.f32 %v2105, %v2105
        %v2177 = vmul.f32 %v2106, %v2106
        %v2178 = vmul.f32 %v2107, %v2107
        %v2179 = vmul.f32 %v2108, %v2108
        %v2180 = vmul.f32 %v2109, %v2109
        %v2181 = vmul.f32 %v2110, %v2110
        %v2182 = vmul.f32 %v2111, %v2111
        %v2183 = vmul.f32 %v2112, %v2112
        %v2184 = vmul.f32 %v2113, %v2113
        %v2185 = vmul.f32 %v2114, %v2114
        %v2186 = vmul.f32 %v2115, %v2115
        %v2187 = vmul.f32 %v2116, %v2116
        %v2188 = vmul.f32 %v2117, %v2117
        %v2189 = vmul.f32 %v2118, %v2118
        %v2190 = vmul.f32 %v2119, %v2119
        %v2191 = vmul.f32 %v2120, %v2120
        %v2192 = vmul.f32 %v2121, %v2121
        %v2193 = vmul.f32 %v2122, %v2122
        %v2194 = vadd.f32 %v2162, %v2163
        %v2195 = vadd.f32 %v2194, %v2164
        %v2196 = vadd.f32 %v2195, %v2165
        %v2197 = vadd.f32 %v2196, %v2166
        %v2198 = vadd.f32 %v2197, %v2167
        %v2199 = vadd.f32 %v2198, %v2168
        %v2200 = vadd.f32 %v2199, %v2169
        %v2201 = vadd.f32 %v2200, %v2170
        %v2202 = vadd.f32 %v2201, %v2171
        %v2203 = vadd.f32 %v2202, %v2172
        %v2204 = vadd.f32 %v2203, %v2173
        %v2205 = vadd.f32 %v2204, %v2174
        %v2206 = vadd.f32 %v2205, %v2175
        %v2207 = vadd.f32 %v2206, %v2176
        %v2208 = vadd.f32 %v2207, %v2177
        %v2209 = vadd.f32 %v2208, %v2178
        %v2210 = vadd.f32 %v2209, %v2179
        %v2211 = vadd.f32 %v2210, %v2180
        %v2212 = vadd.f32 %v2211, %v2181
        %v2213 = vadd.f32 %v2212, %v2182
        %v2214 = vadd.f32 %v2213, %v2183
        %v2215 = vadd.f32 %v2214, %v2184
        %v2216 = vadd.f32 %v2215, %v2185
        %v2217 = vadd.f32 %v2216, %v2186
        %v2218 = vadd.f32 %v2217, %v2187
        %v2219 = vadd.f32 %v2218, %v2188
        %v2220 = vadd.f32 %v2219, %v2189
        %v2221 = vadd.f32 %v2220, %v2190
        %v2222 = vadd.f32 %v2221, %v2191
        %v2223 = vadd.f32 %v2222, %v2192
        %v2224 = vadd.f32 %v2223, %v2193
        %v2225 = vrot.slane %v2224, 4
        %v2226 = vadd.f32 %v2224, %v2225
        %v2227 = vrot.slane %v2226, 2
        %v2228 = vadd.f32 %v2226, %v2227
        %v2229 = vrot.slane %v2228, 1
        %v2230 = vadd.f32 %v2228, %v2229
        %v2231 = vmul.f32 %v2161, 0.00390625
        %v2232 = vmul.f32 %v2230, 0.00390625
        %v2233 = vmul.f32 %v2231, %v2231
        %v2234 = vsub.f32 %v2232, %v2233
        %v2235 = vadd.f32 %v2234, 1e-05
        %v2236 = vrsqrt.pop %v2235
        %v2237 = vmul.f32 %v2123, %v2236
        %v2238 = vmul.f32 %v2231, %v2237
        %v2239 = vsub.f32 %v2124, %v2238
        %v2241 = vlaneseq
        %v2242 = vshrl.u32 %v2241, 7
        %v2243 = vsub.s32 0, %v2242
        %v2244 = vrot.slane %v2237, %v2243
        %v2246 = vmul.f32 %v2091, %v2244
        %v2247 = vmul.f32 %v2092, %v2244
        %v2248 = vmul.f32 %v2093, %v2244
        %v2249 = vmul.f32 %v2094, %v2244
        %v2250 = vmul.f32 %v2095, %v2244
        %v2251 = vmul.f32 %v2096, %v2244
        %v2252 = vmul.f32 %v2097, %v2244
        %v2253 = vmul.f32 %v2098, %v2244
        %v2254 = vmul.f32 %v2099, %v2244
        %v2255 = vmul.f32 %v2100, %v2244
        %v2256 = vmul.f32 %v2101, %v2244
        %v2257 = vmul.f32 %v2102, %v2244
        %v2258 = vmul.f32 %v2103, %v2244
        %v2259 = vmul.f32 %v2104, %v2244
        %v2260 = vmul.f32 %v2105, %v2244
        %v2261 = vmul.f32 %v2106, %v2244
        %v2262 = vmul.f32 %v2107, %v2244
        %v2263 = vmul.f32 %v2108, %v2244
        %v2264 = vmul.f32 %v2109, %v2244
        %v2265 = vmul.f32 %v2110, %v2244
        %v2266 = vmul.f32 %v2111, %v2244
        %v2267 = vmul.f32 %v2112, %v2244
        %v2268 = vmul.f32 %v2113, %v2244
        %v2269 = vmul.f32 %v2114, %v2244
        %v2270 = vmul.f32 %v2115, %v2244
        %v2271 = vmul.f32 %v2116, %v2244
        %v2272 = vmul.f32 %v2117, %v2244
        %v2273 = vmul.f32 %v2118, %v2244
        %v2274 = vmul.f32 %v2119, %v2244
        %v2275 = vmul.f32 %v2120, %v2244
        %v2276 = vmul.f32 %v2121, %v2244
        %v2277 = vmul.f32 %v2122, %v2244
        %v2279 = vlaneseq
        %v2280 = vshrl.u32 %v2279, 7
        %v2281 = vsub.s32 0, %v2280
        %v2282 = vrot.slane %v2239, %v2281
        %v2284 = vadd.f32 %v2246, %v2282
        %v2285 = vadd.f32 %v2247, %v2282
        %v2286 = vadd.f32 %v2248, %v2282
        %v2287 = vadd.f32 %v2249, %v2282
        %v2288 = vadd.f32 %v2250, %v2282
        %v2289 = vadd.f32 %v2251, %v2282
        %v2290 = vadd.f32 %v2252, %v2282
        %v2291 = vadd.f32 %v2253, %v2282
        %v2292 = vadd.f32 %v2254, %v2282
        %v2293 = vadd.f32 %v2255, %v2282
        %v2294 = vadd.f32 %v2256, %v2282
        %v2295 = vadd.f32 %v2257, %v2282
        %v2296 = vadd.f32 %v2258, %v2282
        %v2297 = vadd.f32 %v2259, %v2282
        %v2298 = vadd.f32 %v2260, %v2282
        %v2299 = vadd.f32 %v2261, %v2282
        %v2300 = vadd.f32 %v2262, %v2282
        %v2301 = vadd.f32 %v2263, %v2282
        %v2302 = vadd.f32 %v2264, %v2282
        %v2303 = vadd.f32 %v2265, %v2282
        %v2304 = vadd.f32 %v2266, %v2282
        %v2305 = vadd.f32 %v2267, %v2282
        %v2306 = vadd.f32 %v2268, %v2282
        %v2307 = vadd.f32 %v2269, %v2282
        %v2308 = vadd.f32 %v2270, %v2282
        %v2309 = vadd.f32 %v2271, %v2282
        %v2310 = vadd.f32 %v2272, %v2282
        %v2311 = vadd.f32 %v2273, %v2282
        %v2312 = vadd.f32 %v2274, %v2282
        %v2313 = vadd.f32 %v2275, %v2282
        %v2314 = vadd.f32 %v2276, %v2282
        %v2315 = vadd.f32 %v2277, %v2282
        %v2316 = vmax.f32 %v2284, 0.0
        %v2317 = vmax.f32 %v2285, 0.0
        %v2318 = vmax.f32 %v2286, 0.0
        %v2319 = vmax.f32 %v2287, 0.0
        %v2320 = vmax.f32 %v2288, 0.0
        %v2321 = vmax.f32 %v2289, 0.0
        %v2322 = vmax.f32 %v2290, 0.0
        %v2323 = vmax.f32 %v2291, 0.0
        %v2324 = vmax.f32 %v2292, 0.0
        %v2325 = vmax.f32 %v2293, 0.0
        %v2326 = vmax.f32 %v2294, 0.0
        %v2327 = vmax.f32 %v2295, 0.0
        %v2328 = vmax.f32 %v2296, 0.0
        %v2329 = vmax.f32 %v2297, 0.0
        %v2330 = vmax.f32 %v2298, 0.0
        %v2331 = vmax.f32 %v2299, 0.0
        %v2332 = vmax.f32 %v2300, 0.0
        %v2333 = vmax.f32 %v2301, 0.0
        %v2334 = vmax.f32 %v2302, 0.0
        %v2335 = vmax.f32 %v2303, 0.0
        %v2336 = vmax.f32 %v2304, 0.0
        %v2337 = vmax.f32 %v2305, 0.0
        %v2338 = vmax.f32 %v2306, 0.0
        %v2339 = vmax.f32 %v2307, 0.0
        %v2340 = vmax.f32 %v2308, 0.0
        %v2341 = vmax.f32 %v2309, 0.0
        %v2342 = vmax.f32 %v2310, 0.0
        %v2343 = vmax.f32 %v2311, 0.0
        %v2344 = vmax.f32 %v2312, 0.0
        %v2345 = vmax.f32 %v2313, 0.0
        %v2346 = vmax.f32 %v2314, 0.0
        %v2347 = vmax.f32 %v2315, 0.0
        %v2380 = vrot.slane %v2316, 7
        %v2381 = vrot.slane %v2317, 7
        %v2382 = vsel %vm391, %v2380, %v2381
        %v2383 = vrot.slane %v2318, 7
        %v2384 = vrot.slane %v2319, 7
        %v2385 = vsel %vm391, %v2383, %v2384
        %v2386 = vrot.slane %v2320, 7
        %v2387 = vrot.slane %v2321, 7
        %v2388 = vsel %vm391, %v2386, %v2387
        %v2389 = vrot.slane %v2322, 7
        %v2390 = vrot.slane %v2323, 7
        %v2391 = vsel %vm391, %v2389, %v2390
        %v2392 = vrot.slane %v2324, 7
        %v2393 = vrot.slane %v2325, 7
        %v2394 = vsel %vm391, %v2392, %v2393
        %v2395 = vrot.slane %v2326, 7
        %v2396 = vrot.slane %v2327, 7
        %v2397 = vsel %vm391, %v2395, %v2396
        %v2398 = vrot.slane %v2328, 7
        %v2399 = vrot.slane %v2329, 7
        %v2400 = vsel %vm391, %v2398, %v2399
        %v2401 = vrot.slane %v2330, 7
        %v2402 = vrot.slane %v2331, 7
        %v2403 = vsel %vm391, %v2401, %v2402
        %v2404 = vrot.slane %v2332, 7
        %v2405 = vrot.slane %v2333, 7
        %v2406 = vsel %vm391, %v2404, %v2405
        %v2407 = vrot.slane %v2334, 7
        %v2408 = vrot.slane %v2335, 7
        %v2409 = vsel %vm391, %v2407, %v2408
        %v2410 = vrot.slane %v2336, 7
        %v2411 = vrot.slane %v2337, 7
        %v2412 = vsel %vm391, %v2410, %v2411
        %v2413 = vrot.slane %v2338, 7
        %v2414 = vrot.slane %v2339, 7
        %v2415 = vsel %vm391, %v2413, %v2414
        %v2416 = vrot.slane %v2340, 7
        %v2417 = vrot.slane %v2341, 7
        %v2418 = vsel %vm391, %v2416, %v2417
        %v2419 = vrot.slane %v2342, 7
        %v2420 = vrot.slane %v2343, 7
        %v2421 = vsel %vm391, %v2419, %v2420
        %v2422 = vrot.slane %v2344, 7
        %v2423 = vrot.slane %v2345, 7
        %v2424 = vsel %vm391, %v2422, %v2423
        %v2425 = vrot.slane %v2346, 7
        %v2426 = vrot.slane %v2347, 7
        %v2427 = vsel %vm391, %v2425, %v2426
        %v2460 = vsel %vm391, 0.0, %v2380
        %v2461 = vsel %vm391, 0.0, %v2383
        %v2462 = vsel %vm391, 0.0, %v2386
        %v2463 = vsel %vm391, 0.0, %v2389
        %v2464 = vsel %vm391, 0.0, %v2392
        %v2465 = vsel %vm391, 0.0, %v2395
        %v2466 = vsel %vm391, 0.0, %v2398
        %v2467 = vsel %vm391, 0.0, %v2401
        %v2468 = vsel %vm391, 0.0, %v2404
        %v2469 = vsel %vm391, 0.0, %v2407
        %v2470 = vsel %vm391, 0.0, %v2410
        %v2471 = vsel %vm391, 0.0, %v2413
        %v2472 = vsel %vm391, 0.0, %v2416
        %v2473 = vsel %vm391, 0.0, %v2419
        %v2474 = vsel %vm391, 0.0, %v2422
        %v2475 = vsel %vm391, 0.0, %v2425
        %v2476 = vrot.slane %v2316, 1
        %v2477 = vrot.slane %v2317, 1
        %v2478 = vsel %vm493, %v2476, %v2477
        %v2479 = vrot.slane %v2318, 1
        %v2480 = vrot.slane %v2319, 1
        %v2481 = vsel %vm493, %v2479, %v2480
        %v2482 = vrot.slane %v2320, 1
        %v2483 = vrot.slane %v2321, 1
        %v2484 = vsel %vm493, %v2482, %v2483
        %v2485 = vrot.slane %v2322, 1
        %v2486 = vrot.slane %v2323, 1
        %v2487 = vsel %vm493, %v2485, %v2486
        %v2488 = vrot.slane %v2324, 1
        %v2489 = vrot.slane %v2325, 1
        %v2490 = vsel %vm493, %v2488, %v2489
        %v2491 = vrot.slane %v2326, 1
        %v2492 = vrot.slane %v2327, 1
        %v2493 = vsel %vm493, %v2491, %v2492
        %v2494 = vrot.slane %v2328, 1
        %v2495 = vrot.slane %v2329, 1
        %v2496 = vsel %vm493, %v2494, %v2495
        %v2497 = vrot.slane %v2330, 1
        %v2498 = vrot.slane %v2331, 1
        %v2499 = vsel %vm493, %v2497, %v2498
        %v2500 = vrot.slane %v2332, 1
        %v2501 = vrot.slane %v2333, 1
        %v2502 = vsel %vm493, %v2500, %v2501
        %v2503 = vrot.slane %v2334, 1
        %v2504 = vrot.slane %v2335, 1
        %v2505 = vsel %vm493, %v2503, %v2504
        %v2506 = vrot.slane %v2336, 1
        %v2507 = vrot.slane %v2337, 1
        %v2508 = vsel %vm493, %v2506, %v2507
        %v2509 = vrot.slane %v2338, 1
        %v2510 = vrot.slane %v2339, 1
        %v2511 = vsel %vm493, %v2509, %v2510
        %v2512 = vrot.slane %v2340, 1
        %v2513 = vrot.slane %v2341, 1
        %v2514 = vsel %vm493, %v2512, %v2513
        %v2515 = vrot.slane %v2342, 1
        %v2516 = vrot.slane %v2343, 1
        %v2517 = vsel %vm493, %v2515, %v2516
        %v2518 = vrot.slane %v2344, 1
        %v2519 = vrot.slane %v2345, 1
        %v2520 = vsel %vm493, %v2518, %v2519
        %v2521 = vrot.slane %v2346, 1
        %v2522 = vrot.slane %v2347, 1
        %v2523 = vsel %vm493, %v2521, %v2522
        %v2556 = vsel %vm493, %v2477, 0.0
        %v2557 = vsel %vm493, %v2480, 0.0
        %v2558 = vsel %vm493, %v2483, 0.0
        %v2559 = vsel %vm493, %v2486, 0.0
        %v2560 = vsel %vm493, %v2489, 0.0
        %v2561 = vsel %vm493, %v2492, 0.0
        %v2562 = vsel %vm493, %v2495, 0.0
        %v2563 = vsel %vm493, %v2498, 0.0
        %v2564 = vsel %vm493, %v2501, 0.0
        %v2565 = vsel %vm493, %v2504, 0.0
        %v2566 = vsel %vm493, %v2507, 0.0
        %v2567 = vsel %vm493, %v2510, 0.0
        %v2568 = vsel %vm493, %v2513, 0.0
        %v2569 = vsel %vm493, %v2516, 0.0
        %v2570 = vsel %vm493, %v2519, 0.0
        %v2571 = vsel %vm493, %v2522, 0.0
        %v2572 = vld [vmem:[#allocation7] sm:$0xff]
        %v2573 = vld [vmem:[#allocation7 + $0x8] sm:$0xff]
        %v2574 = vld [vmem:[#allocation7 + $0x10] sm:$0xff]
        %v2575 = vld [vmem:[#allocation7 + $0x18] sm:$0xff]
        %v2576 = vld [vmem:[#allocation7 + $0x20] sm:$0xff]
        %v2577 = vld [vmem:[#allocation7 + $0x28] sm:$0xff]
        %v2578 = vld [vmem:[#allocation7 + $0x30] sm:$0xff]
        %v2579 = vld [vmem:[#allocation7 + $0x38] sm:$0xff]
        %v2580 = vld [vmem:[#allocation7 + $0x40] sm:$0xff]
        %v2581 = vld [vmem:[#allocation7 + $0x48] sm:$0xff]
        %v2582 = vld [vmem:[#allocation7 + $0x50] sm:$0xff]
        %v2583 = vld [vmem:[#allocation7 + $0x58] sm:$0xff]
        %v2584 = vld [vmem:[#allocation7 + $0x60] sm:$0xff]
        %v2585 = vld [vmem:[#allocation7 + $0x68] sm:$0xff]
        %v2586 = vld [vmem:[#allocation7 + $0x70] sm:$0xff]
        %v2587 = vld [vmem:[#allocation7 + $0x78] sm:$0xff]
        %v2588 = vld [vmem:[#allocation7 + $0x80] sm:$0xff]
        %v2589 = vld [vmem:[#allocation7 + $0x88] sm:$0xff]
        %v2590 = vld [vmem:[#allocation7 + $0x90] sm:$0xff]
        %v2591 = vld [vmem:[#allocation7 + $0x98] sm:$0xff]
        %v2592 = vld [vmem:[#allocation7 + $0xa0] sm:$0xff]
        %v2593 = vld [vmem:[#allocation7 + $0xa8] sm:$0xff]
        %v2594 = vld [vmem:[#allocation7 + $0xb0] sm:$0xff]
        %v2595 = vld [vmem:[#allocation7 + $0xb8] sm:$0xff]
        %v2596 = vld [vmem:[#allocation7 + $0xc0] sm:$0xff]
        %v2597 = vld [vmem:[#allocation7 + $0xc8] sm:$0xff]
        %v2598 = vld [vmem:[#allocation7 + $0xd0] sm:$0xff]
        %v2599 = vld [vmem:[#allocation7 + $0xd8] sm:$0xff]
        %v2600 = vld [vmem:[#allocation7 + $0xe0] sm:$0xff]
        %v2601 = vld [vmem:[#allocation7 + $0xe8] sm:$0xff]
        %v2602 = vld [vmem:[#allocation7 + $0xf0] sm:$0xff]
        %v2603 = vld [vmem:[#allocation7 + $0xf8] sm:$0xff]
        %v2604 = vld [vmem:[#allocation7 + $0x100] sm:$0xff]
        %v2605 = vld [vmem:[#allocation7 + $0x108] sm:$0xff]
        %v2606 = vld [vmem:[#allocation7 + $0x110] sm:$0xff]
        %v2607 = vld [vmem:[#allocation7 + $0x118] sm:$0xff]
        %v2608 = vld [vmem:[#allocation7 + $0x120] sm:$0xff]
        %v2609 = vld [vmem:[#allocation7 + $0x128] sm:$0xff]
        %v2610 = vld [vmem:[#allocation7 + $0x130] sm:$0xff]
        %v2611 = vld [vmem:[#allocation7 + $0x138] sm:$0xff]
        %v2612 = vld [vmem:[#allocation7 + $0x140] sm:$0xff]
        %v2613 = vld [vmem:[#allocation7 + $0x148] sm:$0xff]
        %v2614 = vld [vmem:[#allocation7 + $0x150] sm:$0xff]
        %v2615 = vld [vmem:[#allocation7 + $0x158] sm:$0xff]
        %v2616 = vld [vmem:[#allocation7 + $0x160] sm:$0xff]
        %v2617 = vld [vmem:[#allocation7 + $0x168] sm:$0xff]
        %v2618 = vld [vmem:[#allocation7 + $0x170] sm:$0xff]
        %v2619 = vld [vmem:[#allocation7 + $0x178] sm:$0xff]
        %s2620 = scalar_lea.vmem [#allocation7], 384
        %v2621 = vld [vmem:[%s2620] sm:$0xff]
        %v2622 = vld [vmem:[%s2620 + $0x8] sm:$0xff]
        %v2623 = vld [vmem:[%s2620 + $0x10] sm:$0xff]
        %v2624 = vld [vmem:[%s2620 + $0x18] sm:$0xff]
        %v2625 = vld [vmem:[%s2620 + $0x20] sm:$0xff]
        %v2626 = vld [vmem:[%s2620 + $0x28] sm:$0xff]
        %v2627 = vld [vmem:[%s2620 + $0x30] sm:$0xff]
        %v2628 = vld [vmem:[%s2620 + $0x38] sm:$0xff]
        %v2629 = vld [vmem:[%s2620 + $0x40] sm:$0xff]
        %v2630 = vld [vmem:[%s2620 + $0x48] sm:$0xff]
        %v2631 = vld [vmem:[%s2620 + $0x50] sm:$0xff]
        %v2632 = vld [vmem:[%s2620 + $0x58] sm:$0xff]
        %v2633 = vld [vmem:[%s2620 + $0x60] sm:$0xff]
        %v2634 = vld [vmem:[%s2620 + $0x68] sm:$0xff]
        %v2635 = vld [vmem:[%s2620 + $0x70] sm:$0xff]
        %v2636 = vld [vmem:[%s2620 + $0x78] sm:$0xff]
        %v2637 = vld [vmem:[%s2620 + $0x80] sm:$0xff]
        %v2638 = vld [vmem:[%s2620 + $0x88] sm:$0xff]
        %v2639 = vld [vmem:[%s2620 + $0x90] sm:$0xff]
        %v2640 = vld [vmem:[%s2620 + $0x98] sm:$0xff]
        %v2641 = vld [vmem:[%s2620 + $0xa0] sm:$0xff]
        %v2642 = vld [vmem:[%s2620 + $0xa8] sm:$0xff]
        %v2643 = vld [vmem:[%s2620 + $0xb0] sm:$0xff]
        %v2644 = vld [vmem:[%s2620 + $0xb8] sm:$0xff]
        %v2645 = vld [vmem:[%s2620 + $0xc0] sm:$0xff]
        %v2646 = vld [vmem:[%s2620 + $0xc8] sm:$0xff]
        %v2647 = vld [vmem:[%s2620 + $0xd0] sm:$0xff]
        %v2648 = vld [vmem:[%s2620 + $0xd8] sm:$0xff]
        %v2649 = vld [vmem:[%s2620 + $0xe0] sm:$0xff]
        %v2650 = vld [vmem:[%s2620 + $0xe8] sm:$0xff]
        %v2651 = vld [vmem:[%s2620 + $0xf0] sm:$0xff]
        %v2652 = vld [vmem:[%s2620 + $0xf8] sm:$0xff]
        %v2653 = vld [vmem:[%s2620 + $0x100] sm:$0xff]
        %v2654 = vld [vmem:[%s2620 + $0x108] sm:$0xff]
        %v2655 = vld [vmem:[%s2620 + $0x110] sm:$0xff]
        %v2656 = vld [vmem:[%s2620 + $0x118] sm:$0xff]
        %v2657 = vld [vmem:[%s2620 + $0x120] sm:$0xff]
        %v2658 = vld [vmem:[%s2620 + $0x128] sm:$0xff]
        %v2659 = vld [vmem:[%s2620 + $0x130] sm:$0xff]
        %v2660 = vld [vmem:[%s2620 + $0x138] sm:$0xff]
        %v2661 = vld [vmem:[%s2620 + $0x140] sm:$0xff]
        %v2662 = vld [vmem:[%s2620 + $0x148] sm:$0xff]
        %v2663 = vld [vmem:[%s2620 + $0x150] sm:$0xff]
        %v2664 = vld [vmem:[%s2620 + $0x158] sm:$0xff]
        %v2665 = vld [vmem:[%s2620 + $0x160] sm:$0xff]
        %v2666 = vld [vmem:[%s2620 + $0x168] sm:$0xff]
        %v2667 = vld [vmem:[%s2620 + $0x170] sm:$0xff]
        %v2668 = vld [vmem:[%s2620 + $0x178] sm:$0xff]
        %2669 = vmatprep.subr.mxu0 0.0
        %2670 = vmatpush1.msra.mxu0 %v2636
        %2671 = vmatprep.subr.mxu0 0.0
        %2672 = vmatpush1.msra.mxu0 %v2635
        %2673 = vmatprep.subr.mxu0 0.0
        %2674 = vmatpush1.msra.mxu0 %v2634
        %2675 = vmatprep.subr.mxu0 0.0
        %2676 = vmatpush1.msra.mxu0 %v2633
        %2677 = vmatprep.subr.mxu0 0.0
        %2678 = vmatpush1.msra.mxu0 %v2632
        %2679 = vmatprep.subr.mxu0 0.0
        %2680 = vmatpush1.msra.mxu0 %v2631
        %2681 = vmatprep.subr.mxu0 0.0
        %2682 = vmatpush1.msra.mxu0 %v2630
        %2683 = vmatprep.subr.mxu0 0.0
        %2684 = vmatpush1.msra.mxu0 %v2629
        %2685 = vmatprep.subr.mxu0 0.0
        %2686 = vmatpush1.msra.mxu0 %v2628
        %2687 = vmatprep.subr.mxu0 0.0
        %2688 = vmatpush1.msra.mxu0 %v2627
        %2689 = vmatprep.subr.mxu0 0.0
        %2690 = vmatpush1.msra.mxu0 %v2626
        %2691 = vmatprep.subr.mxu0 0.0
        %2692 = vmatpush1.msra.mxu0 %v2625
        %2693 = vmatprep.subr.mxu0 0.0
        %2694 = vmatpush1.msra.mxu0 %v2624
        %2695 = vmatprep.subr.mxu0 0.0
        %2696 = vmatpush1.msra.mxu0 %v2623
        %2697 = vmatprep.subr.mxu0 0.0
        %2698 = vmatpush1.msra.mxu0 %v2622
        %2699 = vmatprep.subr.mxu0 0.0
        %2700 = vmatpush1.msra.mxu0 %v2621
        %2701 = vmatprep.subr.mxu0 0.0
        %2702 = vmatpush2.msra.mxu0 %v2652
        %2703 = vmatprep.subr.mxu0 0.0
        %2704 = vmatpush2.msra.mxu0 %v2651
        %2705 = vmatprep.subr.mxu0 0.0
        %2706 = vmatpush2.msra.mxu0 %v2650
        %2707 = vmatprep.subr.mxu0 0.0
        %2708 = vmatpush2.msra.mxu0 %v2649
        %2709 = vmatprep.subr.mxu0 0.0
        %2710 = vmatpush2.msra.mxu0 %v2648
        %2711 = vmatprep.subr.mxu0 0.0
        %2712 = vmatpush2.msra.mxu0 %v2647
        %2713 = vmatprep.subr.mxu0 0.0
        %2714 = vmatpush2.msra.mxu0 %v2646
        %2715 = vmatprep.subr.mxu0 0.0
        %2716 = vmatpush2.msra.mxu0 %v2645
        %2717 = vmatprep.subr.mxu0 0.0
        %2718 = vmatpush2.msra.mxu0 %v2644
        %2719 = vmatprep.subr.mxu0 0.0
        %2720 = vmatpush2.msra.mxu0 %v2643
        %2721 = vmatprep.subr.mxu0 0.0
        %2722 = vmatpush2.msra.mxu0 %v2642
        %2723 = vmatprep.subr.mxu0 0.0
        %2724 = vmatpush2.msra.mxu0 %v2641
        %2725 = vmatprep.subr.mxu0 0.0
        %2726 = vmatpush2.msra.mxu0 %v2640
        %2727 = vmatprep.subr.mxu0 0.0
        %2728 = vmatpush2.msra.mxu0 %v2639
        %2729 = vmatprep.subr.mxu0 0.0
        %2730 = vmatpush2.msra.mxu0 %v2638
        %2731 = vmatprep.subr.mxu0 0.0
        %2732 = vmatpush2.msra.mxu0 %v2637
        %2733 = vmatprep.mubr.f32.mxu0 %v2316
        %2734 = vmatmul.mubr.f32.gmra.mxu0 0.0
        %v2735 = vpop.f32.mrf.mxu0
        %v2736 = vadd.f32 0.0, %v2735
        %v2737 = vpop.f32.mrf.mxu0
        %2738 = vmatprep.mubr.f32.mxu0 %v2317
        %2739 = vmatmul.mubr.f32.gmra.mxu0 0.0
        %v2740 = vpop.f32.mrf.mxu0
        %v2741 = vadd.f32 0.0, %v2740
        %v2742 = vpop.f32.mrf.mxu0
        %2743 = vmatprep.mubr.f32.mxu0 %v2318
        %2744 = vmatmul.mubr.f32.gmra.mxu0 %v2316
        %v2745 = vpop.f32.mrf.mxu0
        %v2746 = vadd.f32 0.0, %v2745
        %v2747 = vpop.f32.mrf.mxu0
        %2748 = vmatprep.mubr.f32.mxu0 %v2319
        %2749 = vmatmul.mubr.f32.gmra.mxu0 %v2317
        %v2750 = vpop.f32.mrf.mxu0
        %v2751 = vadd.f32 0.0, %v2750
        %v2752 = vpop.f32.mrf.mxu0
        %2753 = vmatprep.mubr.f32.mxu0 %v2320
        %2754 = vmatmul.mubr.f32.gmra.mxu0 %v2318
        %v2755 = vpop.f32.mrf.mxu0
        %v2756 = vadd.f32 0.0, %v2755
        %v2757 = vpop.f32.mrf.mxu0
        %2758 = vmatprep.mubr.f32.mxu0 %v2321
        %2759 = vmatmul.mubr.f32.gmra.mxu0 %v2319
        %v2760 = vpop.f32.mrf.mxu0
        %v2761 = vadd.f32 0.0, %v2760
        %v2762 = vpop.f32.mrf.mxu0
        %2763 = vmatprep.mubr.f32.mxu0 %v2322
        %2764 = vmatmul.mubr.f32.gmra.mxu0 %v2320
        %v2765 = vpop.f32.mrf.mxu0
        %v2766 = vadd.f32 0.0, %v2765
        %v2767 = vpop.f32.mrf.mxu0
        %2768 = vmatprep.mubr.f32.mxu0 %v2323
        %2769 = vmatmul.mubr.f32.gmra.mxu0 %v2321
        %v2770 = vpop.f32.mrf.mxu0
        %v2771 = vadd.f32 0.0, %v2770
        %v2772 = vpop.f32.mrf.mxu0
        %2773 = vmatprep.mubr.f32.mxu0 %v2324
        %2774 = vmatmul.mubr.f32.gmra.mxu0 %v2322
        %v2775 = vpop.f32.mrf.mxu0
        %v2776 = vadd.f32 0.0, %v2775
        %v2777 = vpop.f32.mrf.mxu0
        %2778 = vmatprep.mubr.f32.mxu0 %v2325
        %2779 = vmatmul.mubr.f32.gmra.mxu0 %v2323
        %v2780 = vpop.f32.mrf.mxu0
        %v2781 = vadd.f32 0.0, %v2780
        %v2782 = vpop.f32.mrf.mxu0
        %2783 = vmatprep.mubr.f32.mxu0 %v2326
        %2784 = vmatmul.mubr.f32.gmra.mxu0 %v2324
        %v2785 = vpop.f32.mrf.mxu0
        %v2786 = vadd.f32 0.0, %v2785
        %v2787 = vpop.f32.mrf.mxu0
        %2788 = vmatprep.mubr.f32.mxu0 %v2327
        %2789 = vmatmul.mubr.f32.gmra.mxu0 %v2325
        %v2790 = vpop.f32.mrf.mxu0
        %v2791 = vadd.f32 0.0, %v2790
        %v2792 = vpop.f32.mrf.mxu0
        %2793 = vmatprep.mubr.f32.mxu0 %v2328
        %2794 = vmatmul.mubr.f32.gmra.mxu0 %v2326
        %v2795 = vpop.f32.mrf.mxu0
        %v2796 = vadd.f32 0.0, %v2795
        %v2797 = vpop.f32.mrf.mxu0
        %2798 = vmatprep.mubr.f32.mxu0 %v2329
        %2799 = vmatmul.mubr.f32.gmra.mxu0 %v2327
        %v2800 = vpop.f32.mrf.mxu0
        %v2801 = vadd.f32 0.0, %v2800
        %v2802 = vpop.f32.mrf.mxu0
        %2803 = vmatprep.mubr.f32.mxu0 %v2330
        %2804 = vmatmul.mubr.f32.gmra.mxu0 %v2328
        %v2805 = vpop.f32.mrf.mxu0
        %v2806 = vadd.f32 0.0, %v2805
        %v2807 = vpop.f32.mrf.mxu0
        %2808 = vmatprep.mubr.f32.mxu0 %v2331
        %2809 = vmatmul.mubr.f32.gmra.mxu0 %v2329
        %v2810 = vpop.f32.mrf.mxu0
        %v2811 = vadd.f32 0.0, %v2810
        %v2812 = vpop.f32.mrf.mxu0
        %2813 = vmatprep.mubr.f32.mxu0 %v2332
        %2814 = vmatmul.mubr.f32.gmra.mxu0 %v2330
        %v2815 = vpop.f32.mrf.mxu0
        %v2816 = vadd.f32 0.0, %v2815
        %v2817 = vpop.f32.mrf.mxu0
        %2818 = vmatprep.mubr.f32.mxu0 %v2333
        %2819 = vmatmul.mubr.f32.gmra.mxu0 %v2331
        %v2820 = vpop.f32.mrf.mxu0
        %v2821 = vadd.f32 0.0, %v2820
        %v2822 = vpop.f32.mrf.mxu0
        %2823 = vmatprep.mubr.f32.mxu0 %v2334
        %2824 = vmatmul.mubr.f32.gmra.mxu0 %v2332
        %v2825 = vpop.f32.mrf.mxu0
        %v2826 = vadd.f32 0.0, %v2825
        %v2827 = vpop.f32.mrf.mxu0
        %2828 = vmatprep.mubr.f32.mxu0 %v2335
        %2829 = vmatmul.mubr.f32.gmra.mxu0 %v2333
        %v2830 = vpop.f32.mrf.mxu0
        %v2831 = vadd.f32 0.0, %v2830
        %v2832 = vpop.f32.mrf.mxu0
        %2833 = vmatprep.mubr.f32.mxu0 %v2336
        %2834 = vmatmul.mubr.f32.gmra.mxu0 %v2334
        %v2835 = vpop.f32.mrf.mxu0
        %v2836 = vadd.f32 0.0, %v2835
        %v2837 = vpop.f32.mrf.mxu0
        %2838 = vmatprep.mubr.f32.mxu0 %v2337
        %2839 = vmatmul.mubr.f32.gmra.mxu0 %v2335
        %v2840 = vpop.f32.mrf.mxu0
        %v2841 = vadd.f32 0.0, %v2840
        %v2842 = vpop.f32.mrf.mxu0
        %2843 = vmatprep.mubr.f32.mxu0 %v2338
        %2844 = vmatmul.mubr.f32.gmra.mxu0 %v2336
        %v2845 = vpop.f32.mrf.mxu0
        %v2846 = vadd.f32 0.0, %v2845
        %v2847 = vpop.f32.mrf.mxu0
        %2848 = vmatprep.mubr.f32.mxu0 %v2339
        %2849 = vmatmul.mubr.f32.gmra.mxu0 %v2337
        %v2850 = vpop.f32.mrf.mxu0
        %v2851 = vadd.f32 0.0, %v2850
        %v2852 = vpop.f32.mrf.mxu0
        %2853 = vmatprep.mubr.f32.mxu0 %v2340
        %2854 = vmatmul.mubr.f32.gmra.mxu0 %v2338
        %v2855 = vpop.f32.mrf.mxu0
        %v2856 = vadd.f32 0.0, %v2855
        %v2857 = vpop.f32.mrf.mxu0
        %2858 = vmatprep.mubr.f32.mxu0 %v2341
        %2859 = vmatmul.mubr.f32.gmra.mxu0 %v2339
        %v2860 = vpop.f32.mrf.mxu0
        %v2861 = vadd.f32 0.0, %v2860
        %v2862 = vpop.f32.mrf.mxu0
        %2863 = vmatprep.mubr.f32.mxu0 %v2342
        %2864 = vmatmul.mubr.f32.gmra.mxu0 %v2340
        %v2865 = vpop.f32.mrf.mxu0
        %v2866 = vadd.f32 0.0, %v2865
        %v2867 = vpop.f32.mrf.mxu0
        %2868 = vmatprep.mubr.f32.mxu0 %v2343
        %2869 = vmatmul.mubr.f32.gmra.mxu0 %v2341
        %v2870 = vpop.f32.mrf.mxu0
        %v2871 = vadd.f32 0.0, %v2870
        %v2872 = vpop.f32.mrf.mxu0
        %2873 = vmatprep.mubr.f32.mxu0 %v2344
        %2874 = vmatmul.mubr.f32.gmra.mxu0 %v2342
        %v2875 = vpop.f32.mrf.mxu0
        %v2876 = vadd.f32 0.0, %v2875
        %v2877 = vpop.f32.mrf.mxu0
        %2878 = vmatprep.mubr.f32.mxu0 %v2345
        %2879 = vmatmul.mubr.f32.gmra.mxu0 %v2343
        %v2880 = vpop.f32.mrf.mxu0
        %v2881 = vadd.f32 0.0, %v2880
        %v2882 = vpop.f32.mrf.mxu0
        %2883 = vmatprep.mubr.f32.mxu0 %v2346
        %2884 = vmatmul.mubr.f32.gmra.mxu0 %v2344
        %v2885 = vpop.f32.mrf.mxu0
        %v2886 = vadd.f32 0.0, %v2885
        %v2887 = vpop.f32.mrf.mxu0
        %2888 = vmatprep.mubr.f32.mxu0 %v2347
        %2889 = vmatmul.mubr.f32.gmra.mxu0 %v2345
        %v2890 = vpop.f32.mrf.mxu0
        %v2891 = vadd.f32 0.0, %v2890
        %v2892 = vpop.f32.mrf.mxu0
        %2893 = vdwg.mxu0
        %2894 = vmatprep.subr.mxu0 0.0
        %2895 = vmatpush1.msra.mxu0 %v2668
        %2896 = vmatprep.subr.mxu0 0.0
        %2897 = vmatpush1.msra.mxu0 %v2667
        %2898 = vmatprep.subr.mxu0 0.0
        %2899 = vmatpush1.msra.mxu0 %v2666
        %2900 = vmatprep.subr.mxu0 0.0
        %2901 = vmatpush1.msra.mxu0 %v2665
        %2902 = vmatprep.subr.mxu0 0.0
        %2903 = vmatpush1.msra.mxu0 %v2664
        %2904 = vmatprep.subr.mxu0 0.0
        %2905 = vmatpush1.msra.mxu0 %v2663
        %2906 = vmatprep.subr.mxu0 0.0
        %2907 = vmatpush1.msra.mxu0 %v2662
        %2908 = vmatprep.subr.mxu0 0.0
        %2909 = vmatpush1.msra.mxu0 %v2661
        %2910 = vmatprep.subr.mxu0 0.0
        %2911 = vmatpush1.msra.mxu0 %v2660
        %2912 = vmatprep.subr.mxu0 0.0
        %2913 = vmatpush1.msra.mxu0 %v2659
        %2914 = vmatprep.subr.mxu0 0.0
        %2915 = vmatpush1.msra.mxu0 %v2658
        %2916 = vmatprep.subr.mxu0 0.0
        %2917 = vmatpush1.msra.mxu0 %v2657
        %2918 = vmatprep.subr.mxu0 0.0
        %2919 = vmatpush1.msra.mxu0 %v2656
        %2920 = vmatprep.subr.mxu0 0.0
        %2921 = vmatpush1.msra.mxu0 %v2655
        %2922 = vmatprep.subr.mxu0 0.0
        %2923 = vmatpush1.msra.mxu0 %v2654
        %2924 = vmatprep.subr.mxu0 0.0
        %2925 = vmatpush1.msra.mxu0 %v2653
        %2926 = vmatprep.subr.mxu0 0.0
        %2927 = vmatpush2.msra.mxu0 0.0
        %2928 = vmatprep.subr.mxu0 0.0
        %2929 = vmatpush2.msra.mxu0 0.0
        %2930 = vmatprep.subr.mxu0 0.0
        %2931 = vmatpush2.msra.mxu0 0.0
        %2932 = vmatprep.subr.mxu0 0.0
        %2933 = vmatpush2.msra.mxu0 0.0
        %2934 = vmatprep.subr.mxu0 0.0
        %2935 = vmatpush2.msra.mxu0 0.0
        %2936 = vmatprep.subr.mxu0 0.0
        %2937 = vmatpush2.msra.mxu0 0.0
        %2938 = vmatprep.subr.mxu0 0.0
        %2939 = vmatpush2.msra.mxu0 0.0
        %2940 = vmatprep.subr.mxu0 0.0
        %2941 = vmatpush2.msra.mxu0 0.0
        %2942 = vmatprep.subr.mxu0 0.0
        %2943 = vmatpush2.msra.mxu0 0.0
        %2944 = vmatprep.subr.mxu0 0.0
        %2945 = vmatpush2.msra.mxu0 0.0
        %2946 = vmatprep.subr.mxu0 0.0
        %2947 = vmatpush2.msra.mxu0 0.0
        %2948 = vmatprep.subr.mxu0 0.0
        %2949 = vmatpush2.msra.mxu0 0.0
        %2950 = vmatprep.subr.mxu0 0.0
        %2951 = vmatpush2.msra.mxu0 0.0
        %2952 = vmatprep.subr.mxu0 0.0
        %2953 = vmatpush2.msra.mxu0 0.0
        %2954 = vmatprep.subr.mxu0 0.0
        %2955 = vmatpush2.msra.mxu0 0.0
        %2956 = vmatprep.subr.mxu0 0.0
        %2957 = vmatpush2.msra.mxu0 0.0
        %2958 = vmatprep.mubr.f32.mxu0 0.0
        %2959 = vmatmul.mubr.f32.gmra.mxu0 %v2318
        %v2960 = vpop.f32.mrf.mxu0
        %v2961 = vadd.f32 %v2736, %v2960
        %v2962 = vpop.f32.mrf.mxu0
        %2963 = vmatprep.mubr.f32.mxu0 0.0
        %2964 = vmatmul.mubr.f32.gmra.mxu0 %v2319
        %v2965 = vpop.f32.mrf.mxu0
        %v2966 = vadd.f32 %v2741, %v2965
        %v2967 = vpop.f32.mrf.mxu0
        %2968 = vmatprep.mubr.f32.mxu0 0.0
        %2969 = vmatmul.mubr.f32.gmra.mxu0 %v2320
        %v2970 = vpop.f32.mrf.mxu0
        %v2971 = vadd.f32 %v2746, %v2970
        %v2972 = vpop.f32.mrf.mxu0
        %2973 = vmatprep.mubr.f32.mxu0 0.0
        %2974 = vmatmul.mubr.f32.gmra.mxu0 %v2321
        %v2975 = vpop.f32.mrf.mxu0
        %v2976 = vadd.f32 %v2751, %v2975
        %v2977 = vpop.f32.mrf.mxu0
        %2978 = vmatprep.mubr.f32.mxu0 0.0
        %2979 = vmatmul.mubr.f32.gmra.mxu0 %v2322
        %v2980 = vpop.f32.mrf.mxu0
        %v2981 = vadd.f32 %v2756, %v2980
        %v2982 = vpop.f32.mrf.mxu0
        %2983 = vmatprep.mubr.f32.mxu0 0.0
        %2984 = vmatmul.mubr.f32.gmra.mxu0 %v2323
        %v2985 = vpop.f32.mrf.mxu0
        %v2986 = vadd.f32 %v2761, %v2985
        %v2987 = vpop.f32.mrf.mxu0
        %2988 = vmatprep.mubr.f32.mxu0 0.0
        %2989 = vmatmul.mubr.f32.gmra.mxu0 %v2324
        %v2990 = vpop.f32.mrf.mxu0
        %v2991 = vadd.f32 %v2766, %v2990
        %v2992 = vpop.f32.mrf.mxu0
        %2993 = vmatprep.mubr.f32.mxu0 0.0
        %2994 = vmatmul.mubr.f32.gmra.mxu0 %v2325
        %v2995 = vpop.f32.mrf.mxu0
        %v2996 = vadd.f32 %v2771, %v2995
        %v2997 = vpop.f32.mrf.mxu0
        %2998 = vmatprep.mubr.f32.mxu0 0.0
        %2999 = vmatmul.mubr.f32.gmra.mxu0 %v2326
        %v3000 = vpop.f32.mrf.mxu0
        %v3001 = vadd.f32 %v2776, %v3000
        %v3002 = vpop.f32.mrf.mxu0
        %3003 = vmatprep.mubr.f32.mxu0 0.0
        %3004 = vmatmul.mubr.f32.gmra.mxu0 %v2327
        %v3005 = vpop.f32.mrf.mxu0
        %v3006 = vadd.f32 %v2781, %v3005
        %v3007 = vpop.f32.mrf.mxu0
        %3008 = vmatprep.mubr.f32.mxu0 0.0
        %3009 = vmatmul.mubr.f32.gmra.mxu0 %v2328
        %v3010 = vpop.f32.mrf.mxu0
        %v3011 = vadd.f32 %v2786, %v3010
        %v3012 = vpop.f32.mrf.mxu0
        %3013 = vmatprep.mubr.f32.mxu0 0.0
        %3014 = vmatmul.mubr.f32.gmra.mxu0 %v2329
        %v3015 = vpop.f32.mrf.mxu0
        %v3016 = vadd.f32 %v2791, %v3015
        %v3017 = vpop.f32.mrf.mxu0
        %3018 = vmatprep.mubr.f32.mxu0 0.0
        %3019 = vmatmul.mubr.f32.gmra.mxu0 %v2330
        %v3020 = vpop.f32.mrf.mxu0
        %v3021 = vadd.f32 %v2796, %v3020
        %v3022 = vpop.f32.mrf.mxu0
        %3023 = vmatprep.mubr.f32.mxu0 0.0
        %3024 = vmatmul.mubr.f32.gmra.mxu0 %v2331
        %v3025 = vpop.f32.mrf.mxu0
        %v3026 = vadd.f32 %v2801, %v3025
        %v3027 = vpop.f32.mrf.mxu0
        %3028 = vmatprep.mubr.f32.mxu0 0.0
        %3029 = vmatmul.mubr.f32.gmra.mxu0 %v2332
        %v3030 = vpop.f32.mrf.mxu0
        %v3031 = vadd.f32 %v2806, %v3030
        %v3032 = vpop.f32.mrf.mxu0
        %3033 = vmatprep.mubr.f32.mxu0 0.0
        %3034 = vmatmul.mubr.f32.gmra.mxu0 %v2333
        %v3035 = vpop.f32.mrf.mxu0
        %v3036 = vadd.f32 %v2811, %v3035
        %v3037 = vpop.f32.mrf.mxu0
        %3038 = vmatprep.mubr.f32.mxu0 0.0
        %3039 = vmatmul.mubr.f32.gmra.mxu0 %v2334
        %v3040 = vpop.f32.mrf.mxu0
        %v3041 = vadd.f32 %v2816, %v3040
        %v3042 = vpop.f32.mrf.mxu0
        %3043 = vmatprep.mubr.f32.mxu0 0.0
        %3044 = vmatmul.mubr.f32.gmra.mxu0 %v2335
        %v3045 = vpop.f32.mrf.mxu0
        %v3046 = vadd.f32 %v2821, %v3045
        %v3047 = vpop.f32.mrf.mxu0
        %3048 = vmatprep.mubr.f32.mxu0 0.0
        %3049 = vmatmul.mubr.f32.gmra.mxu0 %v2336
        %v3050 = vpop.f32.mrf.mxu0
        %v3051 = vadd.f32 %v2826, %v3050
        %v3052 = vpop.f32.mrf.mxu0
        %3053 = vmatprep.mubr.f32.mxu0 0.0
        %3054 = vmatmul.mubr.f32.gmra.mxu0 %v2337
        %v3055 = vpop.f32.mrf.mxu0
        %v3056 = vadd.f32 %v2831, %v3055
        %v3057 = vpop.f32.mrf.mxu0
        %3058 = vmatprep.mubr.f32.mxu0 0.0
        %3059 = vmatmul.mubr.f32.gmra.mxu0 %v2338
        %v3060 = vpop.f32.mrf.mxu0
        %v3061 = vadd.f32 %v2836, %v3060
        %v3062 = vpop.f32.mrf.mxu0
        %3063 = vmatprep.mubr.f32.mxu0 0.0
        %3064 = vmatmul.mubr.f32.gmra.mxu0 %v2339
        %v3065 = vpop.f32.mrf.mxu0
        %v3066 = vadd.f32 %v2841, %v3065
        %v3067 = vpop.f32.mrf.mxu0
        %3068 = vmatprep.mubr.f32.mxu0 0.0
        %3069 = vmatmul.mubr.f32.gmra.mxu0 %v2340
        %v3070 = vpop.f32.mrf.mxu0
        %v3071 = vadd.f32 %v2846, %v3070
        %v3072 = vpop.f32.mrf.mxu0
        %3073 = vmatprep.mubr.f32.mxu0 0.0
        %3074 = vmatmul.mubr.f32.gmra.mxu0 %v2341
        %v3075 = vpop.f32.mrf.mxu0
        %v3076 = vadd.f32 %v2851, %v3075
        %v3077 = vpop.f32.mrf.mxu0
        %3078 = vmatprep.mubr.f32.mxu0 0.0
        %3079 = vmatmul.mubr.f32.gmra.mxu0 %v2342
        %v3080 = vpop.f32.mrf.mxu0
        %v3081 = vadd.f32 %v2856, %v3080
        %v3082 = vpop.f32.mrf.mxu0
        %3083 = vmatprep.mubr.f32.mxu0 0.0
        %3084 = vmatmul.mubr.f32.gmra.mxu0 %v2343
        %v3085 = vpop.f32.mrf.mxu0
        %v3086 = vadd.f32 %v2861, %v3085
        %v3087 = vpop.f32.mrf.mxu0
        %3088 = vmatprep.mubr.f32.mxu0 0.0
        %3089 = vmatmul.mubr.f32.gmra.mxu0 %v2344
        %v3090 = vpop.f32.mrf.mxu0
        %v3091 = vadd.f32 %v2866, %v3090
        %v3092 = vpop.f32.mrf.mxu0
        %3093 = vmatprep.mubr.f32.mxu0 0.0
        %3094 = vmatmul.mubr.f32.gmra.mxu0 %v2345
        %v3095 = vpop.f32.mrf.mxu0
        %v3096 = vadd.f32 %v2871, %v3095
        %v3097 = vpop.f32.mrf.mxu0
        %3098 = vmatprep.mubr.f32.mxu0 0.0
        %3099 = vmatmul.mubr.f32.gmra.mxu0 %v2346
        %v3100 = vpop.f32.mrf.mxu0
        %v3101 = vadd.f32 %v2876, %v3100
        %v3102 = vpop.f32.mrf.mxu0
        %3103 = vmatprep.mubr.f32.mxu0 0.0
        %3104 = vmatmul.mubr.f32.gmra.mxu0 %v2347
        %v3105 = vpop.f32.mrf.mxu0
        %v3106 = vadd.f32 %v2881, %v3105
        %v3107 = vpop.f32.mrf.mxu0
        %3108 = vmatprep.mubr.f32.mxu0 0.0
        %3109 = vmatmul.mubr.f32.gmra.mxu0 0.0
        %v3110 = vpop.f32.mrf.mxu0
        %v3111 = vadd.f32 %v2886, %v3110
        %v3112 = vpop.f32.mrf.mxu0
        %3113 = vmatprep.mubr.f32.mxu0 0.0
        %3114 = vmatmul.mubr.f32.gmra.mxu0 0.0
        %v3115 = vpop.f32.mrf.mxu0
        %v3116 = vadd.f32 %v2891, %v3115
        %v3117 = vpop.f32.mrf.mxu0
        %3118 = vdwg.mxu0
        %3119 = vmatprep.subr.mxu0 0.0
        %3120 = vmatpush1.msra.mxu0 %v2587
        %3121 = vmatprep.subr.mxu0 0.0
        %3122 = vmatpush1.msra.mxu0 %v2586
        %3123 = vmatprep.subr.mxu0 0.0
        %3124 = vmatpush1.msra.mxu0 %v2585
        %3125 = vmatprep.subr.mxu0 0.0
        %3126 = vmatpush1.msra.mxu0 %v2584
        %3127 = vmatprep.subr.mxu0 0.0
        %3128 = vmatpush1.msra.mxu0 %v2583
        %3129 = vmatprep.subr.mxu0 0.0
        %3130 = vmatpush1.msra.mxu0 %v2582
        %3131 = vmatprep.subr.mxu0 0.0
        %3132 = vmatpush1.msra.mxu0 %v2581
        %3133 = vmatprep.subr.mxu0 0.0
        %3134 = vmatpush1.msra.mxu0 %v2580
        %3135 = vmatprep.subr.mxu0 0.0
        %3136 = vmatpush1.msra.mxu0 %v2579
        %3137 = vmatprep.subr.mxu0 0.0
        %3138 = vmatpush1.msra.mxu0 %v2578
        %3139 = vmatprep.subr.mxu0 0.0
        %3140 = vmatpush1.msra.mxu0 %v2577
        %3141 = vmatprep.subr.mxu0 0.0
        %3142 = vmatpush1.msra.mxu0 %v2576
        %3143 = vmatprep.subr.mxu0 0.0
        %3144 = vmatpush1.msra.mxu0 %v2575
        %3145 = vmatprep.subr.mxu0 0.0
        %3146 = vmatpush1.msra.mxu0 %v2574
        %3147 = vmatprep.subr.mxu0 0.0
        %3148 = vmatpush1.msra.mxu0 %v2573
        %3149 = vmatprep.subr.mxu0 0.0
        %3150 = vmatpush1.msra.mxu0 %v2572
        %3151 = vmatprep.subr.mxu0 0.0
        %3152 = vmatpush2.msra.mxu0 %v2603
        %3153 = vmatprep.subr.mxu0 0.0
        %3154 = vmatpush2.msra.mxu0 %v2602
        %3155 = vmatprep.subr.mxu0 0.0
        %3156 = vmatpush2.msra.mxu0 %v2601
        %3157 = vmatprep.subr.mxu0 0.0
        %3158 = vmatpush2.msra.mxu0 %v2600
        %3159 = vmatprep.subr.mxu0 0.0
        %3160 = vmatpush2.msra.mxu0 %v2599
        %3161 = vmatprep.subr.mxu0 0.0
        %3162 = vmatpush2.msra.mxu0 %v2598
        %3163 = vmatprep.subr.mxu0 0.0
        %3164 = vmatpush2.msra.mxu0 %v2597
        %3165 = vmatprep.subr.mxu0 0.0
        %3166 = vmatpush2.msra.mxu0 %v2596
        %3167 = vmatprep.subr.mxu0 0.0
        %3168 = vmatpush2.msra.mxu0 %v2595
        %3169 = vmatprep.subr.mxu0 0.0
        %3170 = vmatpush2.msra.mxu0 %v2594
        %3171 = vmatprep.subr.mxu0 0.0
        %3172 = vmatpush2.msra.mxu0 %v2593
        %3173 = vmatprep.subr.mxu0 0.0
        %3174 = vmatpush2.msra.mxu0 %v2592
        %3175 = vmatprep.subr.mxu0 0.0
        %3176 = vmatpush2.msra.mxu0 %v2591
        %3177 = vmatprep.subr.mxu0 0.0
        %3178 = vmatpush2.msra.mxu0 %v2590
        %3179 = vmatprep.subr.mxu0 0.0
        %3180 = vmatpush2.msra.mxu0 %v2589
        %3181 = vmatprep.subr.mxu0 0.0
        %3182 = vmatpush2.msra.mxu0 %v2588
        %3183 = vmatprep.mubr.f32.mxu0 %v2460
        %3184 = vmatmul.mubr.f32.gmra.mxu0 %v476
        %v3185 = vpop.f32.mrf.mxu0
        %v3186 = vadd.f32 %v2961, %v3185
        %v3187 = vpop.f32.mrf.mxu0
        %3188 = vmatprep.mubr.f32.mxu0 %v2382
        %3189 = vmatmul.mubr.f32.gmra.mxu0 %v393
        %v3190 = vpop.f32.mrf.mxu0
        %v3191 = vadd.f32 %v2966, %v3190
        %v3192 = vpop.f32.mrf.mxu0
        %3193 = vmatprep.mubr.f32.mxu0 %v2461
        %3194 = vmatmul.mubr.f32.gmra.mxu0 %v2460
        %v3195 = vpop.f32.mrf.mxu0
        %v3196 = vadd.f32 %v2971, %v3195
        %v3197 = vpop.f32.mrf.mxu0
        %3198 = vmatprep.mubr.f32.mxu0 %v2385
        %3199 = vmatmul.mubr.f32.gmra.mxu0 %v2382
        %v3200 = vpop.f32.mrf.mxu0
        %v3201 = vadd.f32 %v2976, %v3200
        %v3202 = vpop.f32.mrf.mxu0
        %3203 = vmatprep.mubr.f32.mxu0 %v2462
        %3204 = vmatmul.mubr.f32.gmra.mxu0 %v2461
        %v3205 = vpop.f32.mrf.mxu0
        %v3206 = vadd.f32 %v2981, %v3205
        %v3207 = vpop.f32.mrf.mxu0
        %3208 = vmatprep.mubr.f32.mxu0 %v2388
        %3209 = vmatmul.mubr.f32.gmra.mxu0 %v2385
        %v3210 = vpop.f32.mrf.mxu0
        %v3211 = vadd.f32 %v2986, %v3210
        %v3212 = vpop.f32.mrf.mxu0
        %3213 = vmatprep.mubr.f32.mxu0 %v2463
        %3214 = vmatmul.mubr.f32.gmra.mxu0 %v2462
        %v3215 = vpop.f32.mrf.mxu0
        %v3216 = vadd.f32 %v2991, %v3215
        %v3217 = vpop.f32.mrf.mxu0
        %3218 = vmatprep.mubr.f32.mxu0 %v2391
        %3219 = vmatmul.mubr.f32.gmra.mxu0 %v2388
        %v3220 = vpop.f32.mrf.mxu0
        %v3221 = vadd.f32 %v2996, %v3220
        %v3222 = vpop.f32.mrf.mxu0
        %3223 = vmatprep.mubr.f32.mxu0 %v2464
        %3224 = vmatmul.mubr.f32.gmra.mxu0 %v2463
        %v3225 = vpop.f32.mrf.mxu0
        %v3226 = vadd.f32 %v3001, %v3225
        %v3227 = vpop.f32.mrf.mxu0
        %3228 = vmatprep.mubr.f32.mxu0 %v2394
        %3229 = vmatmul.mubr.f32.gmra.mxu0 %v2391
        %v3230 = vpop.f32.mrf.mxu0
        %v3231 = vadd.f32 %v3006, %v3230
        %v3232 = vpop.f32.mrf.mxu0
        %3233 = vmatprep.mubr.f32.mxu0 %v2465
        %3234 = vmatmul.mubr.f32.gmra.mxu0 %v2464
        %v3235 = vpop.f32.mrf.mxu0
        %v3236 = vadd.f32 %v3011, %v3235
        %v3237 = vpop.f32.mrf.mxu0
        %3238 = vmatprep.mubr.f32.mxu0 %v2397
        %3239 = vmatmul.mubr.f32.gmra.mxu0 %v2394
        %v3240 = vpop.f32.mrf.mxu0
        %v3241 = vadd.f32 %v3016, %v3240
        %v3242 = vpop.f32.mrf.mxu0
        %3243 = vmatprep.mubr.f32.mxu0 %v2466
        %3244 = vmatmul.mubr.f32.gmra.mxu0 %v2465
        %v3245 = vpop.f32.mrf.mxu0
        %v3246 = vadd.f32 %v3021, %v3245
        %v3247 = vpop.f32.mrf.mxu0
        %3248 = vmatprep.mubr.f32.mxu0 %v2400
        %3249 = vmatmul.mubr.f32.gmra.mxu0 %v2397
        %v3250 = vpop.f32.mrf.mxu0
        %v3251 = vadd.f32 %v3026, %v3250
        %v3252 = vpop.f32.mrf.mxu0
        %3253 = vmatprep.mubr.f32.mxu0 %v2467
        %3254 = vmatmul.mubr.f32.gmra.mxu0 %v2466
        %v3255 = vpop.f32.mrf.mxu0
        %v3256 = vadd.f32 %v3031, %v3255
        %v3257 = vpop.f32.mrf.mxu0
        %3258 = vmatprep.mubr.f32.mxu0 %v2403
        %3259 = vmatmul.mubr.f32.gmra.mxu0 %v2400
        %v3260 = vpop.f32.mrf.mxu0
        %v3261 = vadd.f32 %v3036, %v3260
        %v3262 = vpop.f32.mrf.mxu0
        %3263 = vmatprep.mubr.f32.mxu0 %v2468
        %3264 = vmatmul.mubr.f32.gmra.mxu0 %v2467
        %v3265 = vpop.f32.mrf.mxu0
        %v3266 = vadd.f32 %v3041, %v3265
        %v3267 = vpop.f32.mrf.mxu0
        %3268 = vmatprep.mubr.f32.mxu0 %v2406
        %3269 = vmatmul.mubr.f32.gmra.mxu0 %v2403
        %v3270 = vpop.f32.mrf.mxu0
        %v3271 = vadd.f32 %v3046, %v3270
        %v3272 = vpop.f32.mrf.mxu0
        %3273 = vmatprep.mubr.f32.mxu0 %v2469
        %3274 = vmatmul.mubr.f32.gmra.mxu0 %v2468
        %v3275 = vpop.f32.mrf.mxu0
        %v3276 = vadd.f32 %v3051, %v3275
        %v3277 = vpop.f32.mrf.mxu0
        %3278 = vmatprep.mubr.f32.mxu0 %v2409
        %3279 = vmatmul.mubr.f32.gmra.mxu0 %v2406
        %v3280 = vpop.f32.mrf.mxu0
        %v3281 = vadd.f32 %v3056, %v3280
        %v3282 = vpop.f32.mrf.mxu0
        %3283 = vmatprep.mubr.f32.mxu0 %v2470
        %3284 = vmatmul.mubr.f32.gmra.mxu0 %v2469
        %v3285 = vpop.f32.mrf.mxu0
        %v3286 = vadd.f32 %v3061, %v3285
        %v3287 = vpop.f32.mrf.mxu0
        %3288 = vmatprep.mubr.f32.mxu0 %v2412
        %3289 = vmatmul.mubr.f32.gmra.mxu0 %v2409
        %v3290 = vpop.f32.mrf.mxu0
        %v3291 = vadd.f32 %v3066, %v3290
        %v3292 = vpop.f32.mrf.mxu0
        %3293 = vmatprep.mubr.f32.mxu0 %v2471
        %3294 = vmatmul.mubr.f32.gmra.mxu0 %v2470
        %v3295 = vpop.f32.mrf.mxu0
        %v3296 = vadd.f32 %v3071, %v3295
        %v3297 = vpop.f32.mrf.mxu0
        %3298 = vmatprep.mubr.f32.mxu0 %v2415
        %3299 = vmatmul.mubr.f32.gmra.mxu0 %v2412
        %v3300 = vpop.f32.mrf.mxu0
        %v3301 = vadd.f32 %v3076, %v3300
        %v3302 = vpop.f32.mrf.mxu0
        %3303 = vmatprep.mubr.f32.mxu0 %v2472
        %3304 = vmatmul.mubr.f32.gmra.mxu0 %v2471
        %v3305 = vpop.f32.mrf.mxu0
        %v3306 = vadd.f32 %v3081, %v3305
        %v3307 = vpop.f32.mrf.mxu0
        %3308 = vmatprep.mubr.f32.mxu0 %v2418
        %3309 = vmatmul.mubr.f32.gmra.mxu0 %v2415
        %v3310 = vpop.f32.mrf.mxu0
        %v3311 = vadd.f32 %v3086, %v3310
        %v3312 = vpop.f32.mrf.mxu0
        %3313 = vmatprep.mubr.f32.mxu0 %v2473
        %3314 = vmatmul.mubr.f32.gmra.mxu0 %v2472
        %v3315 = vpop.f32.mrf.mxu0
        %v3316 = vadd.f32 %v3091, %v3315
        %v3317 = vpop.f32.mrf.mxu0
        %3318 = vmatprep.mubr.f32.mxu0 %v2421
        %3319 = vmatmul.mubr.f32.gmra.mxu0 %v2418
        %v3320 = vpop.f32.mrf.mxu0
        %v3321 = vadd.f32 %v3096, %v3320
        %v3322 = vpop.f32.mrf.mxu0
        %3323 = vmatprep.mubr.f32.mxu0 %v2474
        %3324 = vmatmul.mubr.f32.gmra.mxu0 %v2473
        %v3325 = vpop.f32.mrf.mxu0
        %v3326 = vadd.f32 %v3101, %v3325
        %v3327 = vpop.f32.mrf.mxu0
        %3328 = vmatprep.mubr.f32.mxu0 %v2424
        %3329 = vmatmul.mubr.f32.gmra.mxu0 %v2421
        %v3330 = vpop.f32.mrf.mxu0
        %v3331 = vadd.f32 %v3106, %v3330
        %v3332 = vpop.f32.mrf.mxu0
        %3333 = vmatprep.mubr.f32.mxu0 %v2475
        %3334 = vmatmul.mubr.f32.gmra.mxu0 %v2474
        %v3335 = vpop.f32.mrf.mxu0
        %v3336 = vadd.f32 %v3111, %v3335
        %v3337 = vpop.f32.mrf.mxu0
        %3338 = vmatprep.mubr.f32.mxu0 %v2427
        %3339 = vmatmul.mubr.f32.gmra.mxu0 %v2424
        %v3340 = vpop.f32.mrf.mxu0
        %v3341 = vadd.f32 %v3116, %v3340
        %v3342 = vpop.f32.mrf.mxu0
        %3343 = vdwg.mxu0
        %3344 = vmatprep.subr.mxu0 0.0
        %3345 = vmatpush1.msra.mxu0 %v2619
        %3346 = vmatprep.subr.mxu0 0.0
        %3347 = vmatpush1.msra.mxu0 %v2618
        %3348 = vmatprep.subr.mxu0 0.0
        %3349 = vmatpush1.msra.mxu0 %v2617
        %3350 = vmatprep.subr.mxu0 0.0
        %3351 = vmatpush1.msra.mxu0 %v2616
        %3352 = vmatprep.subr.mxu0 0.0
        %3353 = vmatpush1.msra.mxu0 %v2615
        %3354 = vmatprep.subr.mxu0 0.0
        %3355 = vmatpush1.msra.mxu0 %v2614
        %3356 = vmatprep.subr.mxu0 0.0
        %3357 = vmatpush1.msra.mxu0 %v2613
        %3358 = vmatprep.subr.mxu0 0.0
        %3359 = vmatpush1.msra.mxu0 %v2612
        %3360 = vmatprep.subr.mxu0 0.0
        %3361 = vmatpush1.msra.mxu0 %v2611
        %3362 = vmatprep.subr.mxu0 0.0
        %3363 = vmatpush1.msra.mxu0 %v2610
        %3364 = vmatprep.subr.mxu0 0.0
        %3365 = vmatpush1.msra.mxu0 %v2609
        %3366 = vmatprep.subr.mxu0 0.0
        %3367 = vmatpush1.msra.mxu0 %v2608
        %3368 = vmatprep.subr.mxu0 0.0
        %3369 = vmatpush1.msra.mxu0 %v2607
        %3370 = vmatprep.subr.mxu0 0.0
        %3371 = vmatpush1.msra.mxu0 %v2606
        %3372 = vmatprep.subr.mxu0 0.0
        %3373 = vmatpush1.msra.mxu0 %v2605
        %3374 = vmatprep.subr.mxu0 0.0
        %3375 = vmatpush1.msra.mxu0 %v2604
        %3376 = vmatprep.subr.mxu0 0.0
        %3377 = vmatpush2.msra.mxu0 0.0
        %3378 = vmatprep.subr.mxu0 0.0
        %3379 = vmatpush2.msra.mxu0 0.0
        %3380 = vmatprep.subr.mxu0 0.0
        %3381 = vmatpush2.msra.mxu0 0.0
        %3382 = vmatprep.subr.mxu0 0.0
        %3383 = vmatpush2.msra.mxu0 0.0
        %3384 = vmatprep.subr.mxu0 0.0
        %3385 = vmatpush2.msra.mxu0 0.0
        %3386 = vmatprep.subr.mxu0 0.0
        %3387 = vmatpush2.msra.mxu0 0.0
        %3388 = vmatprep.subr.mxu0 0.0
        %3389 = vmatpush2.msra.mxu0 0.0
        %3390 = vmatprep.subr.mxu0 0.0
        %3391 = vmatpush2.msra.mxu0 0.0
        %3392 = vmatprep.subr.mxu0 0.0
        %3393 = vmatpush2.msra.mxu0 0.0
        %3394 = vmatprep.subr.mxu0 0.0
        %3395 = vmatpush2.msra.mxu0 0.0
        %3396 = vmatprep.subr.mxu0 0.0
        %3397 = vmatpush2.msra.mxu0 0.0
        %3398 = vmatprep.subr.mxu0 0.0
        %3399 = vmatpush2.msra.mxu0 0.0
        %3400 = vmatprep.subr.mxu0 0.0
        %3401 = vmatpush2.msra.mxu0 0.0
        %3402 = vmatprep.subr.mxu0 0.0
        %3403 = vmatpush2.msra.mxu0 0.0
        %3404 = vmatprep.subr.mxu0 0.0
        %3405 = vmatpush2.msra.mxu0 0.0
        %3406 = vmatprep.subr.mxu0 0.0
        %3407 = vmatpush2.msra.mxu0 0.0
        %3408 = vmatprep.mubr.f32.mxu0 0.0
        %3409 = vmatmul.mubr.f32.gmra.mxu0 %v2461
        %v3410 = vpop.f32.mrf.mxu0
        %v3411 = vadd.f32 %v3186, %v3410
        %v3412 = vpop.f32.mrf.mxu0
        %3413 = vmatprep.mubr.f32.mxu0 0.0
        %3414 = vmatmul.mubr.f32.gmra.mxu0 %v2385
        %v3415 = vpop.f32.mrf.mxu0
        %v3416 = vadd.f32 %v3191, %v3415
        %v3417 = vpop.f32.mrf.mxu0
        %3418 = vmatprep.mubr.f32.mxu0 0.0
        %3419 = vmatmul.mubr.f32.gmra.mxu0 %v2462
        %v3420 = vpop.f32.mrf.mxu0
        %v3421 = vadd.f32 %v3196, %v3420
        %v3422 = vpop.f32.mrf.mxu0
        %3423 = vmatprep.mubr.f32.mxu0 0.0
        %3424 = vmatmul.mubr.f32.gmra.mxu0 %v2388
        %v3425 = vpop.f32.mrf.mxu0
        %v3426 = vadd.f32 %v3201, %v3425
        %v3427 = vpop.f32.mrf.mxu0
        %3428 = vmatprep.mubr.f32.mxu0 0.0
        %3429 = vmatmul.mubr.f32.gmra.mxu0 %v2463
        %v3430 = vpop.f32.mrf.mxu0
        %v3431 = vadd.f32 %v3206, %v3430
        %v3432 = vpop.f32.mrf.mxu0
        %3433 = vmatprep.mubr.f32.mxu0 0.0
        %3434 = vmatmul.mubr.f32.gmra.mxu0 %v2391
        %v3435 = vpop.f32.mrf.mxu0
        %v3436 = vadd.f32 %v3211, %v3435
        %v3437 = vpop.f32.mrf.mxu0
        %3438 = vmatprep.mubr.f32.mxu0 0.0
        %3439 = vmatmul.mubr.f32.gmra.mxu0 %v2464
        %v3440 = vpop.f32.mrf.mxu0
        %v3441 = vadd.f32 %v3216, %v3440
        %v3442 = vpop.f32.mrf.mxu0
        %3443 = vmatprep.mubr.f32.mxu0 0.0
        %3444 = vmatmul.mubr.f32.gmra.mxu0 %v2394
        %v3445 = vpop.f32.mrf.mxu0
        %v3446 = vadd.f32 %v3221, %v3445
        %v3447 = vpop.f32.mrf.mxu0
        %3448 = vmatprep.mubr.f32.mxu0 0.0
        %3449 = vmatmul.mubr.f32.gmra.mxu0 %v2465
        %v3450 = vpop.f32.mrf.mxu0
        %v3451 = vadd.f32 %v3226, %v3450
        %v3452 = vpop.f32.mrf.mxu0
        %3453 = vmatprep.mubr.f32.mxu0 0.0
        %3454 = vmatmul.mubr.f32.gmra.mxu0 %v2397
        %v3455 = vpop.f32.mrf.mxu0
        %v3456 = vadd.f32 %v3231, %v3455
        %v3457 = vpop.f32.mrf.mxu0
        %3458 = vmatprep.mubr.f32.mxu0 0.0
        %3459 = vmatmul.mubr.f32.gmra.mxu0 %v2466
        %v3460 = vpop.f32.mrf.mxu0
        %v3461 = vadd.f32 %v3236, %v3460
        %v3462 = vpop.f32.mrf.mxu0
        %3463 = vmatprep.mubr.f32.mxu0 0.0
        %3464 = vmatmul.mubr.f32.gmra.mxu0 %v2400
        %v3465 = vpop.f32.mrf.mxu0
        %v3466 = vadd.f32 %v3241, %v3465
        %v3467 = vpop.f32.mrf.mxu0
        %3468 = vmatprep.mubr.f32.mxu0 0.0
        %3469 = vmatmul.mubr.f32.gmra.mxu0 %v2467
        %v3470 = vpop.f32.mrf.mxu0
        %v3471 = vadd.f32 %v3246, %v3470
        %v3472 = vpop.f32.mrf.mxu0
        %3473 = vmatprep.mubr.f32.mxu0 0.0
        %3474 = vmatmul.mubr.f32.gmra.mxu0 %v2403
        %v3475 = vpop.f32.mrf.mxu0
        %v3476 = vadd.f32 %v3251, %v3475
        %v3477 = vpop.f32.mrf.mxu0
        %3478 = vmatprep.mubr.f32.mxu0 0.0
        %3479 = vmatmul.mubr.f32.gmra.mxu0 %v2468
        %v3480 = vpop.f32.mrf.mxu0
        %v3481 = vadd.f32 %v3256, %v3480
        %v3482 = vpop.f32.mrf.mxu0
        %3483 = vmatprep.mubr.f32.mxu0 0.0
        %3484 = vmatmul.mubr.f32.gmra.mxu0 %v2406
        %v3485 = vpop.f32.mrf.mxu0
        %v3486 = vadd.f32 %v3261, %v3485
        %v3487 = vpop.f32.mrf.mxu0
        %3488 = vmatprep.mubr.f32.mxu0 0.0
        %3489 = vmatmul.mubr.f32.gmra.mxu0 %v2469
        %v3490 = vpop.f32.mrf.mxu0
        %v3491 = vadd.f32 %v3266, %v3490
        %v3492 = vpop.f32.mrf.mxu0
        %3493 = vmatprep.mubr.f32.mxu0 0.0
        %3494 = vmatmul.mubr.f32.gmra.mxu0 %v2409
        %v3495 = vpop.f32.mrf.mxu0
        %v3496 = vadd.f32 %v3271, %v3495
        %v3497 = vpop.f32.mrf.mxu0
        %3498 = vmatprep.mubr.f32.mxu0 0.0
        %3499 = vmatmul.mubr.f32.gmra.mxu0 %v2470
        %v3500 = vpop.f32.mrf.mxu0
        %v3501 = vadd.f32 %v3276, %v3500
        %v3502 = vpop.f32.mrf.mxu0
        %3503 = vmatprep.mubr.f32.mxu0 0.0
        %3504 = vmatmul.mubr.f32.gmra.mxu0 %v2412
        %v3505 = vpop.f32.mrf.mxu0
        %v3506 = vadd.f32 %v3281, %v3505
        %v3507 = vpop.f32.mrf.mxu0
        %3508 = vmatprep.mubr.f32.mxu0 0.0
        %3509 = vmatmul.mubr.f32.gmra.mxu0 %v2471
        %v3510 = vpop.f32.mrf.mxu0
        %v3511 = vadd.f32 %v3286, %v3510
        %v3512 = vpop.f32.mrf.mxu0
        %3513 = vmatprep.mubr.f32.mxu0 0.0
        %3514 = vmatmul.mubr.f32.gmra.mxu0 %v2415
        %v3515 = vpop.f32.mrf.mxu0
        %v3516 = vadd.f32 %v3291, %v3515
        %v3517 = vpop.f32.mrf.mxu0
        %3518 = vmatprep.mubr.f32.mxu0 0.0
        %3519 = vmatmul.mubr.f32.gmra.mxu0 %v2472
        %v3520 = vpop.f32.mrf.mxu0
        %v3521 = vadd.f32 %v3296, %v3520
        %v3522 = vpop.f32.mrf.mxu0
        %3523 = vmatprep.mubr.f32.mxu0 0.0
        %3524 = vmatmul.mubr.f32.gmra.mxu0 %v2418
        %v3525 = vpop.f32.mrf.mxu0
        %v3526 = vadd.f32 %v3301, %v3525
        %v3527 = vpop.f32.mrf.mxu0
        %3528 = vmatprep.mubr.f32.mxu0 0.0
        %3529 = vmatmul.mubr.f32.gmra.mxu0 %v2473
        %v3530 = vpop.f32.mrf.mxu0
        %v3531 = vadd.f32 %v3306, %v3530
        %v3532 = vpop.f32.mrf.mxu0
        %3533 = vmatprep.mubr.f32.mxu0 0.0
        %3534 = vmatmul.mubr.f32.gmra.mxu0 %v2421
        %v3535 = vpop.f32.mrf.mxu0
        %v3536 = vadd.f32 %v3311, %v3535
        %v3537 = vpop.f32.mrf.mxu0
        %3538 = vmatprep.mubr.f32.mxu0 0.0
        %3539 = vmatmul.mubr.f32.gmra.mxu0 %v2474
        %v3540 = vpop.f32.mrf.mxu0
        %v3541 = vadd.f32 %v3316, %v3540
        %v3542 = vpop.f32.mrf.mxu0
        %3543 = vmatprep.mubr.f32.mxu0 0.0
        %3544 = vmatmul.mubr.f32.gmra.mxu0 %v2424
        %v3545 = vpop.f32.mrf.mxu0
        %v3546 = vadd.f32 %v3321, %v3545
        %v3547 = vpop.f32.mrf.mxu0
        %3548 = vmatprep.mubr.f32.mxu0 0.0
        %3549 = vmatmul.mubr.f32.gmra.mxu0 %v2475
        %v3550 = vpop.f32.mrf.mxu0
        %v3551 = vadd.f32 %v3326, %v3550
        %v3552 = vpop.f32.mrf.mxu0
        %3553 = vmatprep.mubr.f32.mxu0 0.0
        %3554 = vmatmul.mubr.f32.gmra.mxu0 %v2427
        %v3555 = vpop.f32.mrf.mxu0
        %v3556 = vadd.f32 %v3331, %v3555
        %v3557 = vpop.f32.mrf.mxu0
        %3558 = vmatprep.mubr.f32.mxu0 0.0
        %3559 = vmatmul.mubr.f32.gmra.mxu0 %v476
        %v3560 = vpop.f32.mrf.mxu0
        %v3561 = vadd.f32 %v3336, %v3560
        %v3562 = vpop.f32.mrf.mxu0
        %3563 = vmatprep.mubr.f32.mxu0 0.0
        %3564 = vmatmul.mubr.f32.gmra.mxu0 %v393
        %v3565 = vpop.f32.mrf.mxu0
        %v3566 = vadd.f32 %v3341, %v3565
        %v3567 = vpop.f32.mrf.mxu0
        %3568 = vdwg.mxu0
        %s3569 = scalar_lea.vmem [#allocation7], 768
        %v3570 = vld [vmem:[%s3569] sm:$0xff]
        %v3571 = vld [vmem:[%s3569 + $0x8] sm:$0xff]
        %v3572 = vld [vmem:[%s3569 + $0x10] sm:$0xff]
        %v3573 = vld [vmem:[%s3569 + $0x18] sm:$0xff]
        %v3574 = vld [vmem:[%s3569 + $0x20] sm:$0xff]
        %v3575 = vld [vmem:[%s3569 + $0x28] sm:$0xff]
        %v3576 = vld [vmem:[%s3569 + $0x30] sm:$0xff]
        %v3577 = vld [vmem:[%s3569 + $0x38] sm:$0xff]
        %v3578 = vld [vmem:[%s3569 + $0x40] sm:$0xff]
        %v3579 = vld [vmem:[%s3569 + $0x48] sm:$0xff]
        %v3580 = vld [vmem:[%s3569 + $0x50] sm:$0xff]
        %v3581 = vld [vmem:[%s3569 + $0x58] sm:$0xff]
        %v3582 = vld [vmem:[%s3569 + $0x60] sm:$0xff]
        %v3583 = vld [vmem:[%s3569 + $0x68] sm:$0xff]
        %v3584 = vld [vmem:[%s3569 + $0x70] sm:$0xff]
        %v3585 = vld [vmem:[%s3569 + $0x78] sm:$0xff]
        %v3586 = vld [vmem:[%s3569 + $0x80] sm:$0xff]
        %v3587 = vld [vmem:[%s3569 + $0x88] sm:$0xff]
        %v3588 = vld [vmem:[%s3569 + $0x90] sm:$0xff]
        %v3589 = vld [vmem:[%s3569 + $0x98] sm:$0xff]
        %v3590 = vld [vmem:[%s3569 + $0xa0] sm:$0xff]
        %v3591 = vld [vmem:[%s3569 + $0xa8] sm:$0xff]
        %v3592 = vld [vmem:[%s3569 + $0xb0] sm:$0xff]
        %v3593 = vld [vmem:[%s3569 + $0xb8] sm:$0xff]
        %v3594 = vld [vmem:[%s3569 + $0xc0] sm:$0xff]
        %v3595 = vld [vmem:[%s3569 + $0xc8] sm:$0xff]
        %v3596 = vld [vmem:[%s3569 + $0xd0] sm:$0xff]
        %v3597 = vld [vmem:[%s3569 + $0xd8] sm:$0xff]
        %v3598 = vld [vmem:[%s3569 + $0xe0] sm:$0xff]
        %v3599 = vld [vmem:[%s3569 + $0xe8] sm:$0xff]
        %v3600 = vld [vmem:[%s3569 + $0xf0] sm:$0xff]
        %v3601 = vld [vmem:[%s3569 + $0xf8] sm:$0xff]
        %v3602 = vld [vmem:[%s3569 + $0x100] sm:$0xff]
        %v3603 = vld [vmem:[%s3569 + $0x108] sm:$0xff]
        %v3604 = vld [vmem:[%s3569 + $0x110] sm:$0xff]
        %v3605 = vld [vmem:[%s3569 + $0x118] sm:$0xff]
        %v3606 = vld [vmem:[%s3569 + $0x120] sm:$0xff]
        %v3607 = vld [vmem:[%s3569 + $0x128] sm:$0xff]
        %v3608 = vld [vmem:[%s3569 + $0x130] sm:$0xff]
        %v3609 = vld [vmem:[%s3569 + $0x138] sm:$0xff]
        %v3610 = vld [vmem:[%s3569 + $0x140] sm:$0xff]
        %v3611 = vld [vmem:[%s3569 + $0x148] sm:$0xff]
        %v3612 = vld [vmem:[%s3569 + $0x150] sm:$0xff]
        %v3613 = vld [vmem:[%s3569 + $0x158] sm:$0xff]
        %v3614 = vld [vmem:[%s3569 + $0x160] sm:$0xff]
        %v3615 = vld [vmem:[%s3569 + $0x168] sm:$0xff]
        %v3616 = vld [vmem:[%s3569 + $0x170] sm:$0xff]
        %v3617 = vld [vmem:[%s3569 + $0x178] sm:$0xff]
        %3618 = vmatprep.subr.mxu0 0.0
        %3619 = vmatpush1.msra.mxu0 %v3585
        %3620 = vmatprep.subr.mxu0 0.0
        %3621 = vmatpush1.msra.mxu0 %v3584
        %3622 = vmatprep.subr.mxu0 0.0
        %3623 = vmatpush1.msra.mxu0 %v3583
        %3624 = vmatprep.subr.mxu0 0.0
        %3625 = vmatpush1.msra.mxu0 %v3582
        %3626 = vmatprep.subr.mxu0 0.0
        %3627 = vmatpush1.msra.mxu0 %v3581
        %3628 = vmatprep.subr.mxu0 0.0
        %3629 = vmatpush1.msra.mxu0 %v3580
        %3630 = vmatprep.subr.mxu0 0.0
        %3631 = vmatpush1.msra.mxu0 %v3579
        %3632 = vmatprep.subr.mxu0 0.0
        %3633 = vmatpush1.msra.mxu0 %v3578
        %3634 = vmatprep.subr.mxu0 0.0
        %3635 = vmatpush1.msra.mxu0 %v3577
        %3636 = vmatprep.subr.mxu0 0.0
        %3637 = vmatpush1.msra.mxu0 %v3576
        %3638 = vmatprep.subr.mxu0 0.0
        %3639 = vmatpush1.msra.mxu0 %v3575
        %3640 = vmatprep.subr.mxu0 0.0
        %3641 = vmatpush1.msra.mxu0 %v3574
        %3642 = vmatprep.subr.mxu0 0.0
        %3643 = vmatpush1.msra.mxu0 %v3573
        %3644 = vmatprep.subr.mxu0 0.0
        %3645 = vmatpush1.msra.mxu0 %v3572
        %3646 = vmatprep.subr.mxu0 0.0
        %3647 = vmatpush1.msra.mxu0 %v3571
        %3648 = vmatprep.subr.mxu0 0.0
        %3649 = vmatpush1.msra.mxu0 %v3570
        %3650 = vmatprep.subr.mxu0 0.0
        %3651 = vmatpush2.msra.mxu0 %v3601
        %3652 = vmatprep.subr.mxu0 0.0
        %3653 = vmatpush2.msra.mxu0 %v3600
        %3654 = vmatprep.subr.mxu0 0.0
        %3655 = vmatpush2.msra.mxu0 %v3599
        %3656 = vmatprep.subr.mxu0 0.0
        %3657 = vmatpush2.msra.mxu0 %v3598
        %3658 = vmatprep.subr.mxu0 0.0
        %3659 = vmatpush2.msra.mxu0 %v3597
        %3660 = vmatprep.subr.mxu0 0.0
        %3661 = vmatpush2.msra.mxu0 %v3596
        %3662 = vmatprep.subr.mxu0 0.0
        %3663 = vmatpush2.msra.mxu0 %v3595
        %3664 = vmatprep.subr.mxu0 0.0
        %3665 = vmatpush2.msra.mxu0 %v3594
        %3666 = vmatprep.subr.mxu0 0.0
        %3667 = vmatpush2.msra.mxu0 %v3593
        %3668 = vmatprep.subr.mxu0 0.0
        %3669 = vmatpush2.msra.mxu0 %v3592
        %3670 = vmatprep.subr.mxu0 0.0
        %3671 = vmatpush2.msra.mxu0 %v3591
        %3672 = vmatprep.subr.mxu0 0.0
        %3673 = vmatpush2.msra.mxu0 %v3590
        %3674 = vmatprep.subr.mxu0 0.0
        %3675 = vmatpush2.msra.mxu0 %v3589
        %3676 = vmatprep.subr.mxu0 0.0
        %3677 = vmatpush2.msra.mxu0 %v3588
        %3678 = vmatprep.subr.mxu0 0.0
        %3679 = vmatpush2.msra.mxu0 %v3587
        %3680 = vmatprep.subr.mxu0 0.0
        %3681 = vmatpush2.msra.mxu0 %v3586
        %3682 = vmatprep.mubr.f32.mxu0 %v2478
        %3683 = vmatmul.mubr.f32.gmra.mxu0 %v495
        %v3684 = vpop.f32.mrf.mxu0
        %v3685 = vadd.f32 0.0, %v3684
        %v3686 = vpop.f32.mrf.mxu0
        %3687 = vmatprep.mubr.f32.mxu0 %v2556
        %3688 = vmatmul.mubr.f32.gmra.mxu0 %v578
        %v3689 = vpop.f32.mrf.mxu0
        %v3690 = vadd.f32 0.0, %v3689
        %v3691 = vpop.f32.mrf.mxu0
        %3692 = vmatprep.mubr.f32.mxu0 %v2481
        %3693 = vmatmul.mubr.f32.gmra.mxu0 %v2478
        %v3694 = vpop.f32.mrf.mxu0
        %v3695 = vadd.f32 0.0, %v3694
        %v3696 = vpop.f32.mrf.mxu0
        %3697 = vmatprep.mubr.f32.mxu0 %v2557
        %3698 = vmatmul.mubr.f32.gmra.mxu0 %v2556
        %v3699 = vpop.f32.mrf.mxu0
        %v3700 = vadd.f32 0.0, %v3699
        %v3701 = vpop.f32.mrf.mxu0
        %3702 = vmatprep.mubr.f32.mxu0 %v2484
        %3703 = vmatmul.mubr.f32.gmra.mxu0 %v2481
        %v3704 = vpop.f32.mrf.mxu0
        %v3705 = vadd.f32 0.0, %v3704
        %v3706 = vpop.f32.mrf.mxu0
        %3707 = vmatprep.mubr.f32.mxu0 %v2558
        %3708 = vmatmul.mubr.f32.gmra.mxu0 %v2557
        %v3709 = vpop.f32.mrf.mxu0
        %v3710 = vadd.f32 0.0, %v3709
        %v3711 = vpop.f32.mrf.mxu0
        %3712 = vmatprep.mubr.f32.mxu0 %v2487
        %3713 = vmatmul.mubr.f32.gmra.mxu0 %v2484
        %v3714 = vpop.f32.mrf.mxu0
        %v3715 = vadd.f32 0.0, %v3714
        %v3716 = vpop.f32.mrf.mxu0
        %3717 = vmatprep.mubr.f32.mxu0 %v2559
        %3718 = vmatmul.mubr.f32.gmra.mxu0 %v2558
        %v3719 = vpop.f32.mrf.mxu0
        %v3720 = vadd.f32 0.0, %v3719
        %v3721 = vpop.f32.mrf.mxu0
        %3722 = vmatprep.mubr.f32.mxu0 %v2490
        %3723 = vmatmul.mubr.f32.gmra.mxu0 %v2487
        %v3724 = vpop.f32.mrf.mxu0
        %v3725 = vadd.f32 0.0, %v3724
        %v3726 = vpop.f32.mrf.mxu0
        %3727 = vmatprep.mubr.f32.mxu0 %v2560
        %3728 = vmatmul.mubr.f32.gmra.mxu0 %v2559
        %v3729 = vpop.f32.mrf.mxu0
        %v3730 = vadd.f32 0.0, %v3729
        %v3731 = vpop.f32.mrf.mxu0
        %3732 = vmatprep.mubr.f32.mxu0 %v2493
        %3733 = vmatmul.mubr.f32.gmra.mxu0 %v2490
        %v3734 = vpop.f32.mrf.mxu0
        %v3735 = vadd.f32 0.0, %v3734
        %v3736 = vpop.f32.mrf.mxu0
        %3737 = vmatprep.mubr.f32.mxu0 %v2561
        %3738 = vmatmul.mubr.f32.gmra.mxu0 %v2560
        %v3739 = vpop.f32.mrf.mxu0
        %v3740 = vadd.f32 0.0, %v3739
        %v3741 = vpop.f32.mrf.mxu0
        %3742 = vmatprep.mubr.f32.mxu0 %v2496
        %3743 = vmatmul.mubr.f32.gmra.mxu0 %v2493
        %v3744 = vpop.f32.mrf.mxu0
        %v3745 = vadd.f32 0.0, %v3744
        %v3746 = vpop.f32.mrf.mxu0
        %3747 = vmatprep.mubr.f32.mxu0 %v2562
        %3748 = vmatmul.mubr.f32.gmra.mxu0 %v2561
        %v3749 = vpop.f32.mrf.mxu0
        %v3750 = vadd.f32 0.0, %v3749
        %v3751 = vpop.f32.mrf.mxu0
        %3752 = vmatprep.mubr.f32.mxu0 %v2499
        %3753 = vmatmul.mubr.f32.gmra.mxu0 %v2496
        %v3754 = vpop.f32.mrf.mxu0
        %v3755 = vadd.f32 0.0, %v3754
        %v3756 = vpop.f32.mrf.mxu0
        %3757 = vmatprep.mubr.f32.mxu0 %v2563
        %3758 = vmatmul.mubr.f32.gmra.mxu0 %v2562
        %v3759 = vpop.f32.mrf.mxu0
        %v3760 = vadd.f32 0.0, %v3759
        %v3761 = vpop.f32.mrf.mxu0
        %3762 = vmatprep.mubr.f32.mxu0 %v2502
        %3763 = vmatmul.mubr.f32.gmra.mxu0 %v2499
        %v3764 = vpop.f32.mrf.mxu0
        %v3765 = vadd.f32 0.0, %v3764
        %v3766 = vpop.f32.mrf.mxu0
        %3767 = vmatprep.mubr.f32.mxu0 %v2564
        %3768 = vmatmul.mubr.f32.gmra.mxu0 %v2563
        %v3769 = vpop.f32.mrf.mxu0
        %v3770 = vadd.f32 0.0, %v3769
        %v3771 = vpop.f32.mrf.mxu0
        %3772 = vmatprep.mubr.f32.mxu0 %v2505
        %3773 = vmatmul.mubr.f32.gmra.mxu0 %v2502
        %v3774 = vpop.f32.mrf.mxu0
        %v3775 = vadd.f32 0.0, %v3774
        %v3776 = vpop.f32.mrf.mxu0
        %3777 = vmatprep.mubr.f32.mxu0 %v2565
        %3778 = vmatmul.mubr.f32.gmra.mxu0 %v2564
        %v3779 = vpop.f32.mrf.mxu0
        %v3780 = vadd.f32 0.0, %v3779
        %v3781 = vpop.f32.mrf.mxu0
        %3782 = vmatprep.mubr.f32.mxu0 %v2508
        %3783 = vmatmul.mubr.f32.gmra.mxu0 %v2505
        %v3784 = vpop.f32.mrf.mxu0
        %v3785 = vadd.f32 0.0, %v3784
        %v3786 = vpop.f32.mrf.mxu0
        %3787 = vmatprep.mubr.f32.mxu0 %v2566
        %3788 = vmatmul.mubr.f32.gmra.mxu0 %v2565
        %v3789 = vpop.f32.mrf.mxu0
        %v3790 = vadd.f32 0.0, %v3789
        %v3791 = vpop.f32.mrf.mxu0
        %3792 = vmatprep.mubr.f32.mxu0 %v2511
        %3793 = vmatmul.mubr.f32.gmra.mxu0 %v2508
        %v3794 = vpop.f32.mrf.mxu0
        %v3795 = vadd.f32 0.0, %v3794
        %v3796 = vpop.f32.mrf.mxu0
        %3797 = vmatprep.mubr.f32.mxu0 %v2567
        %3798 = vmatmul.mubr.f32.gmra.mxu0 %v2566
        %v3799 = vpop.f32.mrf.mxu0
        %v3800 = vadd.f32 0.0, %v3799
        %v3801 = vpop.f32.mrf.mxu0
        %3802 = vmatprep.mubr.f32.mxu0 %v2514
        %3803 = vmatmul.mubr.f32.gmra.mxu0 %v2511
        %v3804 = vpop.f32.mrf.mxu0
        %v3805 = vadd.f32 0.0, %v3804
        %v3806 = vpop.f32.mrf.mxu0
        %3807 = vmatprep.mubr.f32.mxu0 %v2568
        %3808 = vmatmul.mubr.f32.gmra.mxu0 %v2567
        %v3809 = vpop.f32.mrf.mxu0
        %v3810 = vadd.f32 0.0, %v3809
        %v3811 = vpop.f32.mrf.mxu0
        %3812 = vmatprep.mubr.f32.mxu0 %v2517
        %3813 = vmatmul.mubr.f32.gmra.mxu0 %v2514
        %v3814 = vpop.f32.mrf.mxu0
        %v3815 = vadd.f32 0.0, %v3814
        %v3816 = vpop.f32.mrf.mxu0
        %3817 = vmatprep.mubr.f32.mxu0 %v2569
        %3818 = vmatmul.mubr.f32.gmra.mxu0 %v2568
        %v3819 = vpop.f32.mrf.mxu0
        %v3820 = vadd.f32 0.0, %v3819
        %v3821 = vpop.f32.mrf.mxu0
        %3822 = vmatprep.mubr.f32.mxu0 %v2520
        %3823 = vmatmul.mubr.f32.gmra.mxu0 %v2517
        %v3824 = vpop.f32.mrf.mxu0
        %v3825 = vadd.f32 0.0, %v3824
        %v3826 = vpop.f32.mrf.mxu0
        %3827 = vmatprep.mubr.f32.mxu0 %v2570
        %3828 = vmatmul.mubr.f32.gmra.mxu0 %v2569
        %v3829 = vpop.f32.mrf.mxu0
        %v3830 = vadd.f32 0.0, %v3829
        %v3831 = vpop.f32.mrf.mxu0
        %3832 = vmatprep.mubr.f32.mxu0 %v2523
        %3833 = vmatmul.mubr.f32.gmra.mxu0 %v2520
        %v3834 = vpop.f32.mrf.mxu0
        %v3835 = vadd.f32 0.0, %v3834
        %v3836 = vpop.f32.mrf.mxu0
        %3837 = vmatprep.mubr.f32.mxu0 %v2571
        %3838 = vmatmul.mubr.f32.gmra.mxu0 %v2570
        %v3839 = vpop.f32.mrf.mxu0
        %v3840 = vadd.f32 0.0, %v3839
        %v3841 = vpop.f32.mrf.mxu0
        %3842 = vdwg.mxu0
        %3843 = vmatprep.subr.mxu0 0.0
        %3844 = vmatpush1.msra.mxu0 %v3617
        %3845 = vmatprep.subr.mxu0 0.0
        %3846 = vmatpush1.msra.mxu0 %v3616
        %3847 = vmatprep.subr.mxu0 0.0
        %3848 = vmatpush1.msra.mxu0 %v3615
        %3849 = vmatprep.subr.mxu0 0.0
        %3850 = vmatpush1.msra.mxu0 %v3614
        %3851 = vmatprep.subr.mxu0 0.0
        %3852 = vmatpush1.msra.mxu0 %v3613
        %3853 = vmatprep.subr.mxu0 0.0
        %3854 = vmatpush1.msra.mxu0 %v3612
        %3855 = vmatprep.subr.mxu0 0.0
        %3856 = vmatpush1.msra.mxu0 %v3611
        %3857 = vmatprep.subr.mxu0 0.0
        %3858 = vmatpush1.msra.mxu0 %v3610
        %3859 = vmatprep.subr.mxu0 0.0
        %3860 = vmatpush1.msra.mxu0 %v3609
        %3861 = vmatprep.subr.mxu0 0.0
        %3862 = vmatpush1.msra.mxu0 %v3608
        %3863 = vmatprep.subr.mxu0 0.0
        %3864 = vmatpush1.msra.mxu0 %v3607
        %3865 = vmatprep.subr.mxu0 0.0
        %3866 = vmatpush1.msra.mxu0 %v3606
        %3867 = vmatprep.subr.mxu0 0.0
        %3868 = vmatpush1.msra.mxu0 %v3605
        %3869 = vmatprep.subr.mxu0 0.0
        %3870 = vmatpush1.msra.mxu0 %v3604
        %3871 = vmatprep.subr.mxu0 0.0
        %3872 = vmatpush1.msra.mxu0 %v3603
        %3873 = vmatprep.subr.mxu0 0.0
        %3874 = vmatpush1.msra.mxu0 %v3602
        %3875 = vmatprep.subr.mxu0 0.0
        %3876 = vmatpush2.msra.mxu0 0.0
        %3877 = vmatprep.subr.mxu0 0.0
        %3878 = vmatpush2.msra.mxu0 0.0
        %3879 = vmatprep.subr.mxu0 0.0
        %3880 = vmatpush2.msra.mxu0 0.0
        %3881 = vmatprep.subr.mxu0 0.0
        %3882 = vmatpush2.msra.mxu0 0.0
        %3883 = vmatprep.subr.mxu0 0.0
        %3884 = vmatpush2.msra.mxu0 0.0
        %3885 = vmatprep.subr.mxu0 0.0
        %3886 = vmatpush2.msra.mxu0 0.0
        %3887 = vmatprep.subr.mxu0 0.0
        %3888 = vmatpush2.msra.mxu0 0.0
        %3889 = vmatprep.subr.mxu0 0.0
        %3890 = vmatpush2.msra.mxu0 0.0
        %3891 = vmatprep.subr.mxu0 0.0
        %3892 = vmatpush2.msra.mxu0 0.0
        %3893 = vmatprep.subr.mxu0 0.0
        %3894 = vmatpush2.msra.mxu0 0.0
        %3895 = vmatprep.subr.mxu0 0.0
        %3896 = vmatpush2.msra.mxu0 0.0
        %3897 = vmatprep.subr.mxu0 0.0
        %3898 = vmatpush2.msra.mxu0 0.0
        %3899 = vmatprep.subr.mxu0 0.0
        %3900 = vmatpush2.msra.mxu0 0.0
        %3901 = vmatprep.subr.mxu0 0.0
        %3902 = vmatpush2.msra.mxu0 0.0
        %3903 = vmatprep.subr.mxu0 0.0
        %3904 = vmatpush2.msra.mxu0 0.0
        %3905 = vmatprep.subr.mxu0 0.0
        %3906 = vmatpush2.msra.mxu0 0.0
        %3907 = vmatprep.mubr.f32.mxu0 0.0
        %3908 = vmatmul.mubr.f32.gmra.mxu0 %v2481
        %v3909 = vpop.f32.mrf.mxu0
        %v3910 = vadd.f32 %v3685, %v3909
        %v3911 = vpop.f32.mrf.mxu0
        %3912 = vmatprep.mubr.f32.mxu0 0.0
        %3913 = vmatmul.mubr.f32.gmra.mxu0 %v2557
        %v3914 = vpop.f32.mrf.mxu0
        %v3915 = vadd.f32 %v3690, %v3914
        %v3916 = vpop.f32.mrf.mxu0
        %3917 = vmatprep.mubr.f32.mxu0 0.0
        %3918 = vmatmul.mubr.f32.gmra.mxu0 %v2484
        %v3919 = vpop.f32.mrf.mxu0
        %v3920 = vadd.f32 %v3695, %v3919
        %v3921 = vpop.f32.mrf.mxu0
        %3922 = vmatprep.mubr.f32.mxu0 0.0
        %3923 = vmatmul.mubr.f32.gmra.mxu0 %v2558
        %v3924 = vpop.f32.mrf.mxu0
        %v3925 = vadd.f32 %v3700, %v3924
        %v3926 = vpop.f32.mrf.mxu0
        %3927 = vmatprep.mubr.f32.mxu0 0.0
        %3928 = vmatmul.mubr.f32.gmra.mxu0 %v2487
        %v3929 = vpop.f32.mrf.mxu0
        %v3930 = vadd.f32 %v3705, %v3929
        %v3931 = vpop.f32.mrf.mxu0
        %3932 = vmatprep.mubr.f32.mxu0 0.0
        %3933 = vmatmul.mubr.f32.gmra.mxu0 %v2559
        %v3934 = vpop.f32.mrf.mxu0
        %v3935 = vadd.f32 %v3710, %v3934
        %v3936 = vpop.f32.mrf.mxu0
        %3937 = vmatprep.mubr.f32.mxu0 0.0
        %3938 = vmatmul.mubr.f32.gmra.mxu0 %v2490
        %v3939 = vpop.f32.mrf.mxu0
        %v3940 = vadd.f32 %v3715, %v3939
        %v3941 = vpop.f32.mrf.mxu0
        %3942 = vmatprep.mubr.f32.mxu0 0.0
        %3943 = vmatmul.mubr.f32.gmra.mxu0 %v2560
        %v3944 = vpop.f32.mrf.mxu0
        %v3945 = vadd.f32 %v3720, %v3944
        %v3946 = vpop.f32.mrf.mxu0
        %3947 = vmatprep.mubr.f32.mxu0 0.0
        %3948 = vmatmul.mubr.f32.gmra.mxu0 %v2493
        %v3949 = vpop.f32.mrf.mxu0
        %v3950 = vadd.f32 %v3725, %v3949
        %v3951 = vpop.f32.mrf.mxu0
        %3952 = vmatprep.mubr.f32.mxu0 0.0
        %3953 = vmatmul.mubr.f32.gmra.mxu0 %v2561
        %v3954 = vpop.f32.mrf.mxu0
        %v3955 = vadd.f32 %v3730, %v3954
        %v3956 = vpop.f32.mrf.mxu0
        %3957 = vmatprep.mubr.f32.mxu0 0.0
        %3958 = vmatmul.mubr.f32.gmra.mxu0 %v2496
        %v3959 = vpop.f32.mrf.mxu0
        %v3960 = vadd.f32 %v3735, %v3959
        %v3961 = vpop.f32.mrf.mxu0
        %3962 = vmatprep.mubr.f32.mxu0 0.0
        %3963 = vmatmul.mubr.f32.gmra.mxu0 %v2562
        %v3964 = vpop.f32.mrf.mxu0
        %v3965 = vadd.f32 %v3740, %v3964
        %v3966 = vpop.f32.mrf.mxu0
        %3967 = vmatprep.mubr.f32.mxu0 0.0
        %3968 = vmatmul.mubr.f32.gmra.mxu0 %v2499
        %v3969 = vpop.f32.mrf.mxu0
        %v3970 = vadd.f32 %v3745, %v3969
        %v3971 = vpop.f32.mrf.mxu0
        %3972 = vmatprep.mubr.f32.mxu0 0.0
        %3973 = vmatmul.mubr.f32.gmra.mxu0 %v2563
        %v3974 = vpop.f32.mrf.mxu0
        %v3975 = vadd.f32 %v3750, %v3974
        %v3976 = vpop.f32.mrf.mxu0
        %3977 = vmatprep.mubr.f32.mxu0 0.0
        %3978 = vmatmul.mubr.f32.gmra.mxu0 %v2502
        %v3979 = vpop.f32.mrf.mxu0
        %v3980 = vadd.f32 %v3755, %v3979
        %v3981 = vpop.f32.mrf.mxu0
        %3982 = vmatprep.mubr.f32.mxu0 0.0
        %3983 = vmatmul.mubr.f32.gmra.mxu0 %v2564
        %v3984 = vpop.f32.mrf.mxu0
        %v3985 = vadd.f32 %v3760, %v3984
        %v3986 = vpop.f32.mrf.mxu0
        %3987 = vmatprep.mubr.f32.mxu0 0.0
        %3988 = vmatmul.mubr.f32.gmra.mxu0 %v2505
        %v3989 = vpop.f32.mrf.mxu0
        %v3990 = vadd.f32 %v3765, %v3989
        %v3991 = vpop.f32.mrf.mxu0
        %3992 = vmatprep.mubr.f32.mxu0 0.0
        %3993 = vmatmul.mubr.f32.gmra.mxu0 %v2565
        %v3994 = vpop.f32.mrf.mxu0
        %v3995 = vadd.f32 %v3770, %v3994
        %v3996 = vpop.f32.mrf.mxu0
        %3997 = vmatprep.mubr.f32.mxu0 0.0
        %3998 = vmatmul.mubr.f32.gmra.mxu0 %v2508
        %v3999 = vpop.f32.mrf.mxu0
        %v4000 = vadd.f32 %v3775, %v3999
        %v4001 = vpop.f32.mrf.mxu0
        %4002 = vmatprep.mubr.f32.mxu0 0.0
        %4003 = vmatmul.mubr.f32.gmra.mxu0 %v2566
        %v4004 = vpop.f32.mrf.mxu0
        %v4005 = vadd.f32 %v3780, %v4004
        %v4006 = vpop.f32.mrf.mxu0
        %4007 = vmatprep.mubr.f32.mxu0 0.0
        %4008 = vmatmul.mubr.f32.gmra.mxu0 %v2511
        %v4009 = vpop.f32.mrf.mxu0
        %v4010 = vadd.f32 %v3785, %v4009
        %v4011 = vpop.f32.mrf.mxu0
        %4012 = vmatprep.mubr.f32.mxu0 0.0
        %4013 = vmatmul.mubr.f32.gmra.mxu0 %v2567
        %v4014 = vpop.f32.mrf.mxu0
        %v4015 = vadd.f32 %v3790, %v4014
        %v4016 = vpop.f32.mrf.mxu0
        %4017 = vmatprep.mubr.f32.mxu0 0.0
        %4018 = vmatmul.mubr.f32.gmra.mxu0 %v2514
        %v4019 = vpop.f32.mrf.mxu0
        %v4020 = vadd.f32 %v3795, %v4019
        %v4021 = vpop.f32.mrf.mxu0
        %4022 = vmatprep.mubr.f32.mxu0 0.0
        %4023 = vmatmul.mubr.f32.gmra.mxu0 %v2568
        %v4024 = vpop.f32.mrf.mxu0
        %v4025 = vadd.f32 %v3800, %v4024
        %v4026 = vpop.f32.mrf.mxu0
        %4027 = vmatprep.mubr.f32.mxu0 0.0
        %4028 = vmatmul.mubr.f32.gmra.mxu0 %v2517
        %v4029 = vpop.f32.mrf.mxu0
        %v4030 = vadd.f32 %v3805, %v4029
        %v4031 = vpop.f32.mrf.mxu0
        %4032 = vmatprep.mubr.f32.mxu0 0.0
        %4033 = vmatmul.mubr.f32.gmra.mxu0 %v2569
        %v4034 = vpop.f32.mrf.mxu0
        %v4035 = vadd.f32 %v3810, %v4034
        %v4036 = vpop.f32.mrf.mxu0
        %4037 = vmatprep.mubr.f32.mxu0 0.0
        %4038 = vmatmul.mubr.f32.gmra.mxu0 %v2520
        %v4039 = vpop.f32.mrf.mxu0
        %v4040 = vadd.f32 %v3815, %v4039
        %v4041 = vpop.f32.mrf.mxu0
        %4042 = vmatprep.mubr.f32.mxu0 0.0
        %4043 = vmatmul.mubr.f32.gmra.mxu0 %v2570
        %v4044 = vpop.f32.mrf.mxu0
        %v4045 = vadd.f32 %v3820, %v4044
        %v4046 = vpop.f32.mrf.mxu0
        %4047 = vmatprep.mubr.f32.mxu0 0.0
        %4048 = vmatmul.mubr.f32.gmra.mxu0 %v2523
        %v4049 = vpop.f32.mrf.mxu0
        %v4050 = vadd.f32 %v3825, %v4049
        %v4051 = vpop.f32.mrf.mxu0
        %4052 = vmatprep.mubr.f32.mxu0 0.0
        %4053 = vmatmul.mubr.f32.gmra.mxu0 %v2571
        %v4054 = vpop.f32.mrf.mxu0
        %v4055 = vadd.f32 %v3830, %v4054
        %v4056 = vpop.f32.mrf.mxu0
        %4057 = vmatprep.mubr.f32.mxu0 0.0
        %4058 = vmatmul.mubr.f32.gmra.mxu0 %v495
        %v4059 = vpop.f32.mrf.mxu0
        %v4060 = vadd.f32 %v3835, %v4059
        %v4061 = vpop.f32.mrf.mxu0
        %4062 = vmatprep.mubr.f32.mxu0 0.0
        %4063 = vmatmul.mubr.f32.gmra.mxu0 %v578
        %v4064 = vpop.f32.mrf.mxu0
        %v4065 = vadd.f32 %v3840, %v4064
        %v4066 = vpop.f32.mrf.mxu0
        %4067 = vdwg.mxu0
        %v4068 = vadd.f32 %v3411, %v3910
        %v4069 = vadd.f32 %v3416, %v3915
        %v4070 = vadd.f32 %v3421, %v3920
        %v4071 = vadd.f32 %v3426, %v3925
        %v4072 = vadd.f32 %v3431, %v3930
        %v4073 = vadd.f32 %v3436, %v3935
        %v4074 = vadd.f32 %v3441, %v3940
        %v4075 = vadd.f32 %v3446, %v3945
        %v4076 = vadd.f32 %v3451, %v3950
        %v4077 = vadd.f32 %v3456, %v3955
        %v4078 = vadd.f32 %v3461, %v3960
        %v4079 = vadd.f32 %v3466, %v3965
        %v4080 = vadd.f32 %v3471, %v3970
        %v4081 = vadd.f32 %v3476, %v3975
        %v4082 = vadd.f32 %v3481, %v3980
        %v4083 = vadd.f32 %v3486, %v3985
        %v4084 = vadd.f32 %v3491, %v3990
        %v4085 = vadd.f32 %v3496, %v3995
        %v4086 = vadd.f32 %v3501, %v4000
        %v4087 = vadd.f32 %v3506, %v4005
        %v4088 = vadd.f32 %v3511, %v4010
        %v4089 = vadd.f32 %v3516, %v4015
        %v4090 = vadd.f32 %v3521, %v4020
        %v4091 = vadd.f32 %v3526, %v4025
        %v4092 = vadd.f32 %v3531, %v4030
        %v4093 = vadd.f32 %v3536, %v4035
        %v4094 = vadd.f32 %v3541, %v4040
        %v4095 = vadd.f32 %v3546, %v4045
        %v4096 = vadd.f32 %v3551, %v4050
        %v4097 = vadd.f32 %v3556, %v4055
        %v4098 = vadd.f32 %v3561, %v4060
        %v4099 = vadd.f32 %v3566, %v4065
        %v4100 = vld [vmem:[%s5] sm:$0x1]
        %v4101 = vld [vmem:[%s6] sm:$0x1]
        %v4102 = vadd.f32 %v4068, %v4069
        %v4103 = vadd.f32 %v4102, %v4070
        %v4104 = vadd.f32 %v4103, %v4071
        %v4105 = vadd.f32 %v4104, %v4072
        %v4106 = vadd.f32 %v4105, %v4073
        %v4107 = vadd.f32 %v4106, %v4074
        %v4108 = vadd.f32 %v4107, %v4075
        %v4109 = vadd.f32 %v4108, %v4076
        %v4110 = vadd.f32 %v4109, %v4077
        %v4111 = vadd.f32 %v4110, %v4078
        %v4112 = vadd.f32 %v4111, %v4079
        %v4113 = vadd.f32 %v4112, %v4080
        %v4114 = vadd.f32 %v4113, %v4081
        %v4115 = vadd.f32 %v4114, %v4082
        %v4116 = vadd.f32 %v4115, %v4083
        %v4117 = vadd.f32 %v4116, %v4084
        %v4118 = vadd.f32 %v4117, %v4085
        %v4119 = vadd.f32 %v4118, %v4086
        %v4120 = vadd.f32 %v4119, %v4087
        %v4121 = vadd.f32 %v4120, %v4088
        %v4122 = vadd.f32 %v4121, %v4089
        %v4123 = vadd.f32 %v4122, %v4090
        %v4124 = vadd.f32 %v4123, %v4091
        %v4125 = vadd.f32 %v4124, %v4092
        %v4126 = vadd.f32 %v4125, %v4093
        %v4127 = vadd.f32 %v4126, %v4094
        %v4128 = vadd.f32 %v4127, %v4095
        %v4129 = vadd.f32 %v4128, %v4096
        %v4130 = vadd.f32 %v4129, %v4097
        %v4131 = vadd.f32 %v4130, %v4098
        %v4132 = vadd.f32 %v4131, %v4099
        %v4133 = vrot.slane %v4132, 4
        %v4134 = vadd.f32 %v4132, %v4133
        %v4135 = vrot.slane %v4134, 2
        %v4136 = vadd.f32 %v4134, %v4135
        %v4137 = vrot.slane %v4136, 1
        %v4138 = vadd.f32 %v4136, %v4137
        %v4139 = vmul.f32 %v4068, %v4068
        %v4140 = vmul.f32 %v4069, %v4069
        %v4141 = vmul.f32 %v4070, %v4070
        %v4142 = vmul.f32 %v4071, %v4071
        %v4143 = vmul.f32 %v4072, %v4072
        %v4144 = vmul.f32 %v4073, %v4073
        %v4145 = vmul.f32 %v4074, %v4074
        %v4146 = vmul.f32 %v4075, %v4075
        %v4147 = vmul.f32 %v4076, %v4076
        %v4148 = vmul.f32 %v4077, %v4077
        %v4149 = vmul.f32 %v4078, %v4078
        %v4150 = vmul.f32 %v4079, %v4079
        %v4151 = vmul.f32 %v4080, %v4080
        %v4152 = vmul.f32 %v4081, %v4081
        %v4153 = vmul.f32 %v4082, %v4082
        %v4154 = vmul.f32 %v4083, %v4083
        %v4155 = vmul.f32 %v4084, %v4084
        %v4156 = vmul.f32 %v4085, %v4085
        %v4157 = vmul.f32 %v4086, %v4086
        %v4158 = vmul.f32 %v4087, %v4087
        %v4159 = vmul.f32 %v4088, %v4088
        %v4160 = vmul.f32 %v4089, %v4089
        %v4161 = vmul.f32 %v4090, %v4090
        %v4162 = vmul.f32 %v4091, %v4091
        %v4163 = vmul.f32 %v4092, %v4092
        %v4164 = vmul.f32 %v4093, %v4093
        %v4165 = vmul.f32 %v4094, %v4094
        %v4166 = vmul.f32 %v4095, %v4095
        %v4167 = vmul.f32 %v4096, %v4096
        %v4168 = vmul.f32 %v4097, %v4097
        %v4169 = vmul.f32 %v4098, %v4098
        %v4170 = vmul.f32 %v4099, %v4099
        %v4171 = vadd.f32 %v4139, %v4140
        %v4172 = vadd.f32 %v4171, %v4141
        %v4173 = vadd.f32 %v4172, %v4142
        %v4174 = vadd.f32 %v4173, %v4143
        %v4175 = vadd.f32 %v4174, %v4144
        %v4176 = vadd.f32 %v4175, %v4145
        %v4177 = vadd.f32 %v4176, %v4146
        %v4178 = vadd.f32 %v4177, %v4147
        %v4179 = vadd.f32 %v4178, %v4148
        %v4180 = vadd.f32 %v4179, %v4149
        %v4181 = vadd.f32 %v4180, %v4150
        %v4182 = vadd.f32 %v4181, %v4151
        %v4183 = vadd.f32 %v4182, %v4152
        %v4184 = vadd.f32 %v4183, %v4153
        %v4185 = vadd.f32 %v4184, %v4154
        %v4186 = vadd.f32 %v4185, %v4155
        %v4187 = vadd.f32 %v4186, %v4156
        %v4188 = vadd.f32 %v4187, %v4157
        %v4189 = vadd.f32 %v4188, %v4158
        %v4190 = vadd.f32 %v4189, %v4159
        %v4191 = vadd.f32 %v4190, %v4160
        %v4192 = vadd.f32 %v4191, %v4161
        %v4193 = vadd.f32 %v4192, %v4162
        %v4194 = vadd.f32 %v4193, %v4163
        %v4195 = vadd.f32 %v4194, %v4164
        %v4196 = vadd.f32 %v4195, %v4165
        %v4197 = vadd.f32 %v4196, %v4166
        %v4198 = vadd.f32 %v4197, %v4167
        %v4199 = vadd.f32 %v4198, %v4168
        %v4200 = vadd.f32 %v4199, %v4169
        %v4201 = vadd.f32 %v4200, %v4170
        %v4202 = vrot.slane %v4201, 4
        %v4203 = vadd.f32 %v4201, %v4202
        %v4204 = vrot.slane %v4203, 2
        %v4205 = vadd.f32 %v4203, %v4204
        %v4206 = vrot.slane %v4205, 1
        %v4207 = vadd.f32 %v4205, %v4206
        %v4208 = vmul.f32 %v4138, 0.00390625
        %v4209 = vmul.f32 %v4207, 0.00390625
        %v4210 = vmul.f32 %v4208, %v4208
        %v4211 = vsub.f32 %v4209, %v4210
        %v4212 = vadd.f32 %v4211, 1e-05
        %v4213 = vrsqrt.pop %v4212
        %v4214 = vmul.f32 %v4100, %v4213
        %v4215 = vmul.f32 %v4208, %v4214
        %v4216 = vsub.f32 %v4101, %v4215
        %v4218 = vlaneseq
        %v4219 = vshrl.u32 %v4218, 7
        %v4220 = vsub.s32 0, %v4219
        %v4221 = vrot.slane %v4214, %v4220
        %v4223 = vmul.f32 %v4068, %v4221
        %v4224 = vmul.f32 %v4069, %v4221
        %v4225 = vmul.f32 %v4070, %v4221
        %v4226 = vmul.f32 %v4071, %v4221
        %v4227 = vmul.f32 %v4072, %v4221
        %v4228 = vmul.f32 %v4073, %v4221
        %v4229 = vmul.f32 %v4074, %v4221
        %v4230 = vmul.f32 %v4075, %v4221
        %v4231 = vmul.f32 %v4076, %v4221
        %v4232 = vmul.f32 %v4077, %v4221
        %v4233 = vmul.f32 %v4078, %v4221
        %v4234 = vmul.f32 %v4079, %v4221
        %v4235 = vmul.f32 %v4080, %v4221
        %v4236 = vmul.f32 %v4081, %v4221
        %v4237 = vmul.f32 %v4082, %v4221
        %v4238 = vmul.f32 %v4083, %v4221
        %v4239 = vmul.f32 %v4084, %v4221
        %v4240 = vmul.f32 %v4085, %v4221
        %v4241 = vmul.f32 %v4086, %v4221
        %v4242 = vmul.f32 %v4087, %v4221
        %v4243 = vmul.f32 %v4088, %v4221
        %v4244 = vmul.f32 %v4089, %v4221
        %v4245 = vmul.f32 %v4090, %v4221
        %v4246 = vmul.f32 %v4091, %v4221
        %v4247 = vmul.f32 %v4092, %v4221
        %v4248 = vmul.f32 %v4093, %v4221
        %v4249 = vmul.f32 %v4094, %v4221
        %v4250 = vmul.f32 %v4095, %v4221
        %v4251 = vmul.f32 %v4096, %v4221
        %v4252 = vmul.f32 %v4097, %v4221
        %v4253 = vmul.f32 %v4098, %v4221
        %v4254 = vmul.f32 %v4099, %v4221
        %v4256 = vlaneseq
        %v4257 = vshrl.u32 %v4256, 7
        %v4258 = vsub.s32 0, %v4257
        %v4259 = vrot.slane %v4216, %v4258
        %v4261 = vadd.f32 %v4223, %v4259
        %v4262 = vadd.f32 %v4224, %v4259
        %v4263 = vadd.f32 %v4225, %v4259
        %v4264 = vadd.f32 %v4226, %v4259
        %v4265 = vadd.f32 %v4227, %v4259
        %v4266 = vadd.f32 %v4228, %v4259
        %v4267 = vadd.f32 %v4229, %v4259
        %v4268 = vadd.f32 %v4230, %v4259
        %v4269 = vadd.f32 %v4231, %v4259
        %v4270 = vadd.f32 %v4232, %v4259
        %v4271 = vadd.f32 %v4233, %v4259
        %v4272 = vadd.f32 %v4234, %v4259
        %v4273 = vadd.f32 %v4235, %v4259
        %v4274 = vadd.f32 %v4236, %v4259
        %v4275 = vadd.f32 %v4237, %v4259
        %v4276 = vadd.f32 %v4238, %v4259
        %v4277 = vadd.f32 %v4239, %v4259
        %v4278 = vadd.f32 %v4240, %v4259
        %v4279 = vadd.f32 %v4241, %v4259
        %v4280 = vadd.f32 %v4242, %v4259
        %v4281 = vadd.f32 %v4243, %v4259
        %v4282 = vadd.f32 %v4244, %v4259
        %v4283 = vadd.f32 %v4245, %v4259
        %v4284 = vadd.f32 %v4246, %v4259
        %v4285 = vadd.f32 %v4247, %v4259
        %v4286 = vadd.f32 %v4248, %v4259
        %v4287 = vadd.f32 %v4249, %v4259
        %v4288 = vadd.f32 %v4250, %v4259
        %v4289 = vadd.f32 %v4251, %v4259
        %v4290 = vadd.f32 %v4252, %v4259
        %v4291 = vadd.f32 %v4253, %v4259
        %v4292 = vadd.f32 %v4254, %v4259
        %v4293 = vadd.f32 %v326, %v4261
        %v4294 = vadd.f32 %v327, %v4262
        %v4295 = vadd.f32 %v328, %v4263
        %v4296 = vadd.f32 %v329, %v4264
        %v4297 = vadd.f32 %v330, %v4265
        %v4298 = vadd.f32 %v331, %v4266
        %v4299 = vadd.f32 %v332, %v4267
        %v4300 = vadd.f32 %v333, %v4268
        %v4301 = vadd.f32 %v334, %v4269
        %v4302 = vadd.f32 %v335, %v4270
        %v4303 = vadd.f32 %v336, %v4271
        %v4304 = vadd.f32 %v337, %v4272
        %v4305 = vadd.f32 %v338, %v4273
        %v4306 = vadd.f32 %v339, %v4274
        %v4307 = vadd.f32 %v340, %v4275
        %v4308 = vadd.f32 %v341, %v4276
        %v4309 = vadd.f32 %v342, %v4277
        %v4310 = vadd.f32 %v343, %v4278
        %v4311 = vadd.f32 %v344, %v4279
        %v4312 = vadd.f32 %v345, %v4280
        %v4313 = vadd.f32 %v346, %v4281
        %v4314 = vadd.f32 %v347, %v4282
        %v4315 = vadd.f32 %v348, %v4283
        %v4316 = vadd.f32 %v349, %v4284
        %v4317 = vadd.f32 %v350, %v4285
        %v4318 = vadd.f32 %v351, %v4286
        %v4319 = vadd.f32 %v352, %v4287
        %v4320 = vadd.f32 %v353, %v4288
        %v4321 = vadd.f32 %v354, %v4289
        %v4322 = vadd.f32 %v355, %v4290
        %v4323 = vadd.f32 %v356, %v4291
        %v4324 = vadd.f32 %v357, %v4292
        %4325 = vst [vmem:[%s325] sm:$0xff] %v4293
        %4326 = vst [vmem:[%s325 + $0x8] sm:$0xff] %v4294
        %4327 = vst [vmem:[%s325 + $0x10] sm:$0xff] %v4295
        %4328 = vst [vmem:[%s325 + $0x18] sm:$0xff] %v4296
        %4329 = vst [vmem:[%s325 + $0x20] sm:$0xff] %v4297
        %4330 = vst [vmem:[%s325 + $0x28] sm:$0xff] %v4298
        %4331 = vst [vmem:[%s325 + $0x30] sm:$0xff] %v4299
        %4332 = vst [vmem:[%s325 + $0x38] sm:$0xff] %v4300
        %4333 = vst [vmem:[%s325 + $0x40] sm:$0xff] %v4301
        %4334 = vst [vmem:[%s325 + $0x48] sm:$0xff] %v4302
        %4335 = vst [vmem:[%s325 + $0x50] sm:$0xff] %v4303
        %4336 = vst [vmem:[%s325 + $0x58] sm:$0xff] %v4304
        %4337 = vst [vmem:[%s325 + $0x60] sm:$0xff] %v4305
        %4338 = vst [vmem:[%s325 + $0x68] sm:$0xff] %v4306
        %4339 = vst [vmem:[%s325 + $0x70] sm:$0xff] %v4307
        %4340 = vst [vmem:[%s325 + $0x78] sm:$0xff] %v4308
        %4341 = vst [vmem:[%s325 + $0x80] sm:$0xff] %v4309
        %4342 = vst [vmem:[%s325 + $0x88] sm:$0xff] %v4310
        %4343 = vst [vmem:[%s325 + $0x90] sm:$0xff] %v4311
        %4344 = vst [vmem:[%s325 + $0x98] sm:$0xff] %v4312
        %4345 = vst [vmem:[%s325 + $0xa0] sm:$0xff] %v4313
        %4346 = vst [vmem:[%s325 + $0xa8] sm:$0xff] %v4314
        %4347 = vst [vmem:[%s325 + $0xb0] sm:$0xff] %v4315
        %4348 = vst [vmem:[%s325 + $0xb8] sm:$0xff] %v4316
        %4349 = vst [vmem:[%s325 + $0xc0] sm:$0xff] %v4317
        %4350 = vst [vmem:[%s325 + $0xc8] sm:$0xff] %v4318
        %4351 = vst [vmem:[%s325 + $0xd0] sm:$0xff] %v4319
        %4352 = vst [vmem:[%s325 + $0xd8] sm:$0xff] %v4320
        %4353 = vst [vmem:[%s325 + $0xe0] sm:$0xff] %v4321
        %4354 = vst [vmem:[%s325 + $0xe8] sm:$0xff] %v4322
        %4355 = vst [vmem:[%s325 + $0xf0] sm:$0xff] %v4323
        %4356 = vst [vmem:[%s325 + $0xf8] sm:$0xff] %v4324
        %s4357 = sand.u32 %s185, 1
        %s4358 = scalar_lea.sflag [#allocation4], %s4357
        %s4359 = sand.u32 %s185, 1
        %s4360 = smul.addr %s4359, 256
        %s4361 = scalar_lea.vmem [#allocation8], %s4360
        // Predicated region
        $region61: #{tpu_custom_call.1} parent=47 // pred_check
          %p4362 = pneg %p195
        $region62: #{tpu_custom_call.1} parent=47 // pred_check_branch
          %4364 = sbr.rel (%p4362) target = $region64
        $region63: #{tpu_custom_call.1} parent=47 // pred_region
          %s4366 = ssub.s32 4096, 4096
          %4367 = vsyncadd %s4358, %s4366
          %s4368 = smul.addr %s25, 32
          %s4369 = smul.addr %s4368, 128
          %s4370 = scalar_lea.hbm %s7, %s4369
          %s4371 = sshll.u32 %s4361, 4
          %s4372 = int_to_ptr.vmem [resolvable:$true] %s4371
          %4377 = dma.vmem_to_hbm [thread:$0]  %s4372, 4096, %s4370, %s4358, 128, 128, 8
        $region64: #{tpu_custom_call.1} parent=47 // pred_fallthru
          _
      $region48: #{tpu_custom_call.1} parent=5 // pred_fallthru
        _
      %p4378 = scmp.le.s32.totalorder 2, %s20
      // Predicated region
      $region65: #{tpu_custom_call.1} parent=5 // pred_check
        %p4379 = pneg %p4378
      $region66: #{tpu_custom_call.1} parent=5 // pred_check_branch
        %4381 = sbr.rel (%p4379) target = $region68
      $region67: #{tpu_custom_call.1} parent=5 // pred_region
        %s4382 = ssub.s32 %s20, 2
        // Predicated region
        $region69: #{tpu_custom_call.1} parent=67 // pred_check
          %p4383 = pneg %p201
        $region70: #{tpu_custom_call.1} parent=67 // pred_check_branch
          %4385 = sbr.rel (%p4383) target = $region72
        $region71: #{tpu_custom_call.1} parent=67 // pred_region
          %s4386 = sand.u32 %s186, 1
          %s4387 = scalar_lea.sflag [#allocation4], %s4386
          %s4388 = sand.u32 %s186, 1
          %s4389 = smul.addr %s4388, 256
          %s4390 = scalar_lea.vmem [#allocation8], %s4389
          %4391 = dma.done %s4387, 4096
        $region72: #{tpu_custom_call.1} parent=67 // pred_fallthru
          _
      $region68: #{tpu_custom_call.1} parent=5 // pred_fallthru
        _
    $region6: #{tpu_custom_call.1} parent=1 // loop_footer
      %s24 = sadd.s32 1, %s20
    $region7: #{tpu_custom_call.1} parent=1 // loop_footer_branch
      %19 = sbr.rel target = $region3
    $region8: #{tpu_custom_call.1} parent=1 // loop_exit
      _
    %4392 = vsyncpa [#allocation3], 1
    %s4393 = scalar_lea.sflag [#allocation3], 1
    %4394 = vsyncpa %s4393, 1
    %4395 = vsyncpa [#allocation6], 1
    %4396 = vsyncpa [#allocation4], 1
    %s4397 = scalar_lea.sflag [#allocation4], 1
    %4398 = vsyncpa %s4397, 1

</llo_original>
